<compile_context>
chip_gen: v7x
topology: tpu7x:2x2x1
jax: 0.10.0
libtpu: 0.0.40
codegen_flags: <defaults>
</compile_context>

<pallas_src>
import jax
import jax.numpy as jnp
from jax.experimental import pallas as pl
from jax.experimental.pallas import tpu as pltpu

# ---- module config (small but structurally identical to the reference) ----
NUM_TOKENS = 8
TOKEN_DIM = 32
FEAT = NUM_TOKENS * TOKEN_DIM            # 256 == args.num_tokens * args.token_dim

# (seq_len, hidden_dim) per distill target; reference uses (197,768)/(257,384),
# scaled down here to TPU-friendly small shapes.
DISTILL_TARGETS = {
    "clip-vit-base-patch16": (12, 128),
    "dinov2-small": (16, 256),
}

LN_EPS = 1e-5  # torch.nn.LayerNorm default

_NAMES = list(DISTILL_TARGETS.keys())
SEQ_A, HID_A = DISTILL_TARGETS[_NAMES[0]]
SEQ_B, HID_B = DISTILL_TARGETS[_NAMES[1]]
OUT_A = SEQ_A * HID_A                     # 1536
OUT_B = SEQ_B * HID_B                     # 4096
HID_AB = HID_A + HID_B                    # 384  (fused first-layer width)


def _full_model_kernel(x_ref, gamma_ref, beta_ref,
                       w1_ref, b1_ref,
                       w2a_ref, b2a_ref,
                       w2b_ref, b2b_ref,
                       ya_ref, yb_ref):
    # ---------- LayerNorm over the flattened feature dim (single pass) ----------
    x = x_ref[...]                                            # (Bm, F) f32
    inv_f = jnp.float32(1.0 / FEAT)
    s = jnp.sum(x, axis=-1, keepdims=True)
    sq = jnp.sum(x * x, axis=-1, keepdims=True)
    mean = s * inv_f
    var = sq * inv_f - mean * mean                            # E[x^2] - mean^2
    xn = (x - mean) * jax.lax.rsqrt(var + LN_EPS)
    xn = xn * gamma_ref[...] + beta_ref[...]                  # (Bm, F) f32
    xn_bf = xn.astype(jnp.bfloat16)

    # ---------- fused first layer for BOTH heads (one MXU weight push) ----------
    # w1 = [w1a || w1b] : (F, HID_A + HID_B), bf16; accumulate in f32.
    h = jnp.dot(xn_bf, w1_ref[...],
                preferred_element_type=jnp.float32) + b1_ref[...]
    h = jnp.maximum(h, 0.0)
    ha = h[:, :HID_A].astype(jnp.bfloat16)                    # lane-aligned slice
    hb = h[:, HID_A:].astype(jnp.bfloat16)

    # ---------- second layers (MXU, bf16 operands, f32 accumulation) ----------
    ya_ref[...] = jnp.dot(ha, w2a_ref[...],
                          preferred_element_type=jnp.float32) + b2a_ref[...]
    yb_ref[...] = jnp.dot(hb, w2b_ref[...],
                          preferred_element_type=jnp.float32) + b2b_ref[...]


def init_params(key):
    """Deterministic synthetic f32 parameters matching the module's shapes."""
    params = {
        "ln_gamma": jnp.ones((FEAT,), jnp.float32),   # torch LayerNorm default
        "ln_beta": jnp.zeros((FEAT,), jnp.float32),
    }
    for name, (seq_len, hid) in DISTILL_TARGETS.items():
        key, k1, k2, k3, k4 = jax.random.split(key, 5)
        params[f"{name}_w1"] = jax.random.normal(k1, (FEAT, hid), jnp.float32) * 0.02
        params[f"{name}_b1"] = jax.random.normal(k2, (hid,), jnp.float32) * 0.02
        params[f"{name}_w2"] = jax.random.normal(k3, (hid, seq_len * hid), jnp.float32) * 0.02
        params[f"{name}_b2"] = jax.random.normal(k4, (seq_len * hid,), jnp.float32) * 0.02
    return params


def pack_params(params):
    """Fuse the first-layer weights and cast weight matrices to bf16 (do once)."""
    w1 = jnp.concatenate([params[f"{_NAMES[0]}_w1"],
                          params[f"{_NAMES[1]}_w1"]], axis=1)        # (F, 384)
    b1 = jnp.concatenate([params[f"{_NAMES[0]}_b1"],
                          params[f"{_NAMES[1]}_b1"]], axis=0)        # (384,)
    return {
        "ln_gamma": params["ln_gamma"].reshape(1, FEAT),
        "ln_beta": params["ln_beta"].reshape(1, FEAT),
        "w1": w1.astype(jnp.bfloat16),
        "b1": b1.reshape(1, HID_AB).astype(jnp.float32),
        "w2a": params[f"{_NAMES[0]}_w2"].astype(jnp.bfloat16),
        "b2a": params[f"{_NAMES[0]}_b2"].reshape(1, OUT_A).astype(jnp.float32),
        "w2b": params[f"{_NAMES[1]}_w2"].astype(jnp.bfloat16),
        "b2b": params[f"{_NAMES[1]}_b2"].reshape(1, OUT_B).astype(jnp.float32),
    }


def _round_up(n, m):
    return ((n + m - 1) // m) * m


def full_model_forward(feats, pp):
    """feats: (B, num_tokens, token_dim) backbone output -> dict of (B, seq, hid)."""
    B = feats.shape[0]
    x2d = feats.reshape(B, FEAT).astype(jnp.float32)          # == torch x.view(B, -1)

    # Batch tile: multiple of 8 sublanes, capped at 128 rows to stay well inside
    # the scoped-VMEM default on every generation (incl. v5e 16 MiB, v7x 32 MiB).
    Bm = min(128, _round_up(B, 8))
    Bp = _round_up(B, Bm)
    if Bp != B:
        x2d = jnp.pad(x2d, ((0, Bp - B), (0, 0)))             # zero rows; sliced off below
    grid = (Bp // Bm,)

    # Weights/biases: constant index_map -> VMEM-resident across all grid steps.
    def wspec(shape):
        return pl.BlockSpec(shape, lambda i: (0, 0))

    ya, yb = pl.pallas_call(
        _full_model_kernel,
        out_shape=(jax.ShapeDtypeStruct((Bp, OUT_A), jnp.float32),
                   jax.ShapeDtypeStruct((Bp, OUT_B), jnp.float32)),
        grid=grid,
        in_specs=[
            pl.BlockSpec((Bm, FEAT), lambda i: (i, 0)),        # activations: pipelined
            wspec((1, FEAT)),                                  # ln gamma
            wspec((1, FEAT)),                                  # ln beta
            wspec((FEAT, HID_AB)),                             # fused w1 (bf16)
            wspec((1, HID_AB)),                                # fused b1
            wspec((HID_A, OUT_A)),                             # w2a (bf16)
            wspec((1, OUT_A)),                                 # b2a
            wspec((HID_B, OUT_B)),                             # w2b (bf16)
            wspec((1, OUT_B)),                                 # b2b
        ],
        out_specs=(pl.BlockSpec((Bm, OUT_A), lambda i: (i, 0)),
                   pl.BlockSpec((Bm, OUT_B), lambda i: (i, 0))),
        compiler_params=pltpu.CompilerParams(
            dimension_semantics=("parallel",)),                # megacore on v7x
    )(x2d, pp["ln_gamma"], pp["ln_beta"],
      pp["w1"], pp["b1"], pp["w2a"], pp["b2a"], pp["w2b"], pp["b2b"])

    return {
        _NAMES[0]: ya[:B].reshape(B, SEQ_A, HID_A),            # == torch y.view(-1, S, H)
        _NAMES[1]: yb[:B].reshape(B, SEQ_B, HID_B),
    }


def _reference_forward(feats, pp):
    """Pure-JAX reference mirroring the kernel math (bf16 weights, f32 accum)."""
    B = feats.shape[0]
    x = feats.reshape(B, FEAT).astype(jnp.float32)
    mean = jnp.mean(x, axis=-1, keepdims=True)
    var = jnp.mean((x - mean) ** 2, axis=-1, keepdims=True)
    xn = (x - mean) / jnp.sqrt(var + LN_EPS)
    xn = xn * pp["ln_gamma"] + pp["ln_beta"]
    xn_bf = xn.astype(jnp.bfloat16)

    h = jnp.dot(xn_bf, pp["w1"], preferred_element_type=jnp.float32) + pp["b1"]
    h = jnp.maximum(h, 0.0)
    ha = h[:, :HID_A].astype(jnp.bfloat16)
    hb = h[:, HID_A:].astype(jnp.bfloat16)
    ya = jnp.dot(ha, pp["w2a"], preferred_element_type=jnp.float32) + pp["b2a"]
    yb = jnp.dot(hb, pp["w2b"], preferred_element_type=jnp.float32) + pp["b2b"]
    return {
        _NAMES[0]: ya.reshape(B, SEQ_A, HID_A),
        _NAMES[1]: yb.reshape(B, SEQ_B, HID_B),
    }


if __name__ == "__main__":
    key = jax.random.PRNGKey(0)
    kp, kx = jax.random.split(key)
    params = init_params(kp)
    packed = pack_params(params)

    # Backbone output features (B, num_tokens, token_dim).
    feats = jax.random.normal(kx, (2, NUM_TOKENS, TOKEN_DIM), jnp.float32)

    out = full_model_forward(feats, packed)
    out = jax.block_until_ready(out)

    ref = _reference_forward(feats, packed)
    for name in DISTILL_TARGETS:
        assert out[name].shape == ref[name].shape
        # bf16 matmul operands -> relaxed tolerance vs the pure-f32 check.
        assert jnp.allclose(out[name], ref[name], atol=1e-2, rtol=1e-2)

    print("KERNEL_OK")
</pallas_src>

<mosaic_0001>
module attributes {stable_mosaic.version = 11 : i64} {
  func.func @_full_model_kernel(%arg0: i32, %arg1: memref<8x256xf32, #tpu.memory_space<vmem>>, %arg2: memref<1x256xf32, #tpu.memory_space<vmem>>, %arg3: memref<1x256xf32, #tpu.memory_space<vmem>>, %arg4: memref<256x384xbf16, #tpu.memory_space<vmem>>, %arg5: memref<1x384xf32, #tpu.memory_space<vmem>>, %arg6: memref<128x1536xbf16, #tpu.memory_space<vmem>>, %arg7: memref<1x1536xf32, #tpu.memory_space<vmem>>, %arg8: memref<256x4096xbf16, #tpu.memory_space<vmem>>, %arg9: memref<1x4096xf32, #tpu.memory_space<vmem>>, %arg10: memref<8x1536xf32, #tpu.memory_space<vmem>>, %arg11: memref<8x4096xf32, #tpu.memory_space<vmem>>) attributes {dimension_semantics = [#tpu.dimension_semantics<parallel>], iteration_bounds = array<i64: 1>, scalar_prefetch = 0 : i64, scratch_operands = 0 : i64, tpu.core_type = #tpu.core_type<tc>, window_params = [{transform_indices = @transform_0, window_bounds = array<i64: 8, 256>}, {pipeline_mode = #tpu.pipeline_mode<synchronous>, transform_indices = @transform_1, window_bounds = array<i64: 1, 256>}, {pipeline_mode = #tpu.pipeline_mode<synchronous>, transform_indices = @transform_2, window_bounds = array<i64: 1, 256>}, {pipeline_mode = #tpu.pipeline_mode<synchronous>, transform_indices = @transform_3, window_bounds = array<i64: 256, 384>}, {pipeline_mode = #tpu.pipeline_mode<synchronous>, transform_indices = @transform_4, window_bounds = array<i64: 1, 384>}, {pipeline_mode = #tpu.pipeline_mode<synchronous>, transform_indices = @transform_5, window_bounds = array<i64: 128, 1536>}, {pipeline_mode = #tpu.pipeline_mode<synchronous>, transform_indices = @transform_6, window_bounds = array<i64: 1, 1536>}, {pipeline_mode = #tpu.pipeline_mode<synchronous>, transform_indices = @transform_7, window_bounds = array<i64: 256, 4096>}, {pipeline_mode = #tpu.pipeline_mode<synchronous>, transform_indices = @transform_8, window_bounds = array<i64: 1, 4096>}, {transform_indices = @transform_9, window_bounds = array<i64: 8, 1536>}, {transform_indices = @transform_10, window_bounds = array<i64: 8, 4096>}]} {
    %c0 = arith.constant 0 : index
    %c0_0 = arith.constant 0 : index
    %0 = vector.load %arg1[%c0, %c0_0] : memref<8x256xf32, #tpu.memory_space<vmem>>, vector<8x256xf32>
    %cst = arith.constant dense<0.000000e+00> : vector<8xf32>
    %1 = vector.multi_reduction <add>, %0, %cst [1] : vector<8x256xf32> to vector<8xf32>
    %2 = vector.shape_cast %1 : vector<8xf32> to vector<8x1xf32>
    %3 = arith.mulf %0, %0 : vector<8x256xf32>
    %cst_1 = arith.constant dense<0.000000e+00> : vector<8xf32>
    %4 = vector.multi_reduction <add>, %3, %cst_1 [1] : vector<8x256xf32> to vector<8xf32>
    %5 = vector.shape_cast %4 : vector<8xf32> to vector<8x1xf32>
    %cst_2 = arith.constant 3.906250e-03 : f32
    %6 = vector.broadcast %cst_2 : f32 to vector<8x1xf32>
    %7 = arith.mulf %2, %6 : vector<8x1xf32>
    %cst_3 = arith.constant 3.906250e-03 : f32
    %8 = vector.broadcast %cst_3 : f32 to vector<8x1xf32>
    %9 = arith.mulf %5, %8 : vector<8x1xf32>
    %10 = arith.mulf %7, %7 : vector<8x1xf32>
    %11 = arith.subf %9, %10 : vector<8x1xf32>
    %12 = vector.broadcast %7 : vector<8x1xf32> to vector<8x256xf32>
    %13 = arith.subf %0, %12 : vector<8x256xf32>
    %cst_4 = arith.constant 9.99999974E-6 : f32
    %14 = vector.broadcast %cst_4 : f32 to vector<8x1xf32>
    %15 = arith.addf %11, %14 : vector<8x1xf32>
    %16 = math.rsqrt %15 : vector<8x1xf32>
    %17 = vector.broadcast %16 : vector<8x1xf32> to vector<8x256xf32>
    %18 = arith.mulf %13, %17 : vector<8x256xf32>
    %c0_5 = arith.constant 0 : index
    %c0_6 = arith.constant 0 : index
    %19 = vector.load %arg2[%c0_5, %c0_6] : memref<1x256xf32, #tpu.memory_space<vmem>>, vector<1x256xf32>
    %20 = vector.broadcast %19 : vector<1x256xf32> to vector<8x256xf32>
    %21 = arith.mulf %18, %20 : vector<8x256xf32>
    %c0_7 = arith.constant 0 : index
    %c0_8 = arith.constant 0 : index
    %22 = vector.load %arg3[%c0_7, %c0_8] : memref<1x256xf32, #tpu.memory_space<vmem>>, vector<1x256xf32>
    %23 = vector.broadcast %22 : vector<1x256xf32> to vector<8x256xf32>
    %24 = arith.addf %21, %23 : vector<8x256xf32>
    %25 = arith.truncf %24 : vector<8x256xf32> to vector<8x256xbf16>
    %c0_9 = arith.constant 0 : index
    %c0_10 = arith.constant 0 : index
    %26 = vector.load %arg4[%c0_9, %c0_10] : memref<256x384xbf16, #tpu.memory_space<vmem>>, vector<256x384xbf16>
    %cst_11 = arith.constant dense<0.000000e+00> : vector<8x384xf32>
    %27 = tpu.matmul %25, %26, %cst_11 {dimension_numbers = #tpu.dot_dimension_numbers<[1], [0], [0], [1], [0, 0, 1, 1], [], []>} : vector<8x256xbf16>, vector<256x384xbf16>, vector<8x384xf32> -> vector<8x384xf32>
    %c0_12 = arith.constant 0 : index
    %c0_13 = arith.constant 0 : index
    %28 = vector.load %arg5[%c0_12, %c0_13] : memref<1x384xf32, #tpu.memory_space<vmem>>, vector<1x384xf32>
    %29 = vector.broadcast %28 : vector<1x384xf32> to vector<8x384xf32>
    %30 = arith.addf %27, %29 : vector<8x384xf32>
    %cst_14 = arith.constant 0.000000e+00 : f32
    %31 = vector.broadcast %cst_14 : f32 to vector<8x384xf32>
    %32 = arith.maximumf %30, %31 : vector<8x384xf32>
    %33 = vector.extract_strided_slice %32 {offsets = [0, 0], sizes = [8, 128], strides = [1, 1]} : vector<8x384xf32> to vector<8x128xf32>
    %34 = arith.truncf %33 : vector<8x128xf32> to vector<8x128xbf16>
    %35 = vector.extract_strided_slice %32 {offsets = [0, 128], sizes = [8, 256], strides = [1, 1]} : vector<8x384xf32> to vector<8x256xf32>
    %36 = arith.truncf %35 : vector<8x256xf32> to vector<8x256xbf16>
    %c0_15 = arith.constant 0 : index
    %c0_16 = arith.constant 0 : index
    %37 = vector.load %arg6[%c0_15, %c0_16] : memref<128x1536xbf16, #tpu.memory_space<vmem>>, vector<128x1536xbf16>
    %cst_17 = arith.constant dense<0.000000e+00> : vector<8x1536xf32>
    %38 = tpu.matmul %34, %37, %cst_17 {dimension_numbers = #tpu.dot_dimension_numbers<[1], [0], [0], [1], [0, 0, 1, 1], [], []>} : vector<8x128xbf16>, vector<128x1536xbf16>, vector<8x1536xf32> -> vector<8x1536xf32>
    %c0_18 = arith.constant 0 : index
    %c0_19 = arith.constant 0 : index
    %39 = vector.load %arg7[%c0_18, %c0_19] : memref<1x1536xf32, #tpu.memory_space<vmem>>, vector<1x1536xf32>
    %40 = vector.broadcast %39 : vector<1x1536xf32> to vector<8x1536xf32>
    %41 = arith.addf %38, %40 : vector<8x1536xf32>
    %c0_20 = arith.constant 0 : index
    %c0_21 = arith.constant 0 : index
    %42 = vector.load %arg10[%c0_20, %c0_21] : memref<8x1536xf32, #tpu.memory_space<vmem>>, vector<8x1536xf32>
    tpu.vector_store %arg10[%c0_20, %c0_21], %41 {strides = array<i32>} : memref<8x1536xf32, #tpu.memory_space<vmem>>, vector<8x1536xf32>,
    %c0_22 = arith.constant 0 : index
    %c0_23 = arith.constant 0 : index
    %43 = vector.load %arg8[%c0_22, %c0_23] : memref<256x4096xbf16, #tpu.memory_space<vmem>>, vector<256x4096xbf16>
    %cst_24 = arith.constant dense<0.000000e+00> : vector<8x4096xf32>
    %44 = tpu.matmul %36, %43, %cst_24 {dimension_numbers = #tpu.dot_dimension_numbers<[1], [0], [0], [1], [0, 0, 1, 1], [], []>} : vector<8x256xbf16>, vector<256x4096xbf16>, vector<8x4096xf32> -> vector<8x4096xf32>
    %c0_25 = arith.constant 0 : index
    %c0_26 = arith.constant 0 : index
    %45 = vector.load %arg9[%c0_25, %c0_26] : memref<1x4096xf32, #tpu.memory_space<vmem>>, vector<1x4096xf32>
    %46 = vector.broadcast %45 : vector<1x4096xf32> to vector<8x4096xf32>
    %47 = arith.addf %44, %46 : vector<8x4096xf32>
    %c0_27 = arith.constant 0 : index
    %c0_28 = arith.constant 0 : index
    %48 = vector.load %arg11[%c0_27, %c0_28] : memref<8x4096xf32, #tpu.memory_space<vmem>>, vector<8x4096xf32>
    tpu.vector_store %arg11[%c0_27, %c0_28], %47 {strides = array<i32>} : memref<8x4096xf32, #tpu.memory_space<vmem>>, vector<8x4096xf32>,
    return
  }
  func.func @transform_0(%arg0: i32) -> (i32, i32) {
    %c0_i32 = arith.constant 0 : i32
    %c0_i32_0 = arith.constant 0 : i32
    return %arg0, %c0_i32 : i32, i32
  }
  func.func @transform_1(%arg0: i32) -> (i32, i32) {
    %c0_i32 = arith.constant 0 : i32
    %c0_i32_0 = arith.constant 0 : i32
    %c0_i32_1 = arith.constant 0 : i32
    return %c0_i32, %c0_i32_0 : i32, i32
  }
  func.func @transform_2(%arg0: i32) -> (i32, i32) {
    %c0_i32 = arith.constant 0 : i32
    %c0_i32_0 = arith.constant 0 : i32
    %c0_i32_1 = arith.constant 0 : i32
    return %c0_i32, %c0_i32_0 : i32, i32
  }
  func.func @transform_3(%arg0: i32) -> (i32, i32) {
    %c0_i32 = arith.constant 0 : i32
    %c0_i32_0 = arith.constant 0 : i32
    %c0_i32_1 = arith.constant 0 : i32
    return %c0_i32, %c0_i32_0 : i32, i32
  }
  func.func @transform_4(%arg0: i32) -> (i32, i32) {
    %c0_i32 = arith.constant 0 : i32
    %c0_i32_0 = arith.constant 0 : i32
    %c0_i32_1 = arith.constant 0 : i32
    return %c0_i32, %c0_i32_0 : i32, i32
  }
  func.func @transform_5(%arg0: i32) -> (i32, i32) {
    %c0_i32 = arith.constant 0 : i32
    %c0_i32_0 = arith.constant 0 : i32
    %c0_i32_1 = arith.constant 0 : i32
    return %c0_i32, %c0_i32_0 : i32, i32
  }
  func.func @transform_6(%arg0: i32) -> (i32, i32) {
    %c0_i32 = arith.constant 0 : i32
    %c0_i32_0 = arith.constant 0 : i32
    %c0_i32_1 = arith.constant 0 : i32
    return %c0_i32, %c0_i32_0 : i32, i32
  }
  func.func @transform_7(%arg0: i32) -> (i32, i32) {
    %c0_i32 = arith.constant 0 : i32
    %c0_i32_0 = arith.constant 0 : i32
    %c0_i32_1 = arith.constant 0 : i32
    return %c0_i32, %c0_i32_0 : i32, i32
  }
  func.func @transform_8(%arg0: i32) -> (i32, i32) {
    %c0_i32 = arith.constant 0 : i32
    %c0_i32_0 = arith.constant 0 : i32
    %c0_i32_1 = arith.constant 0 : i32
    return %c0_i32, %c0_i32_0 : i32, i32
  }
  func.func @transform_9(%arg0: i32) -> (i32, i32) {
    %c0_i32 = arith.constant 0 : i32
    %c0_i32_0 = arith.constant 0 : i32
    return %arg0, %c0_i32 : i32, i32
  }
  func.func @transform_10(%arg0: i32) -> (i32, i32) {
    %c0_i32 = arith.constant 0 : i32
    %c0_i32_0 = arith.constant 0 : i32
    return %arg0, %c0_i32 : i32, i32
  }
}

</mosaic_0001>

<llo_original>
// kernel: tpu_custom_call.1
$region0: #{tpu_custom_call.1}
  #allocation0 [shape = 'u32[]', space=smem, size = 0x4, offset = 0x4, fixed_abs, tag = 'smem constant byte address 0x4 - core index']
  #allocation1 [shape = 'u32[144,128]{1,0:T(1,128)}', space=vmem, size = 0x12000, scoped, tag = 'internal scratch']
  %s0 = inlined_call_operand.hbm [shape: f32[8,256], index: 0, kind: input, shape index: {}]
  %s1 = inlined_call_operand.hbm [shape: f32[1,256], index: 1, kind: input, shape index: {}]
  %s2 = inlined_call_operand.hbm [shape: f32[1,256], index: 2, kind: input, shape index: {}]
  %s3 = inlined_call_operand.hbm [shape: bf16[256,384], index: 3, kind: input, shape index: {}]
  %s4 = inlined_call_operand.hbm [shape: f32[1,384], index: 4, kind: input, shape index: {}]
  %s5 = inlined_call_operand.hbm [shape: bf16[128,1536], index: 5, kind: input, shape index: {}]
  %s6 = inlined_call_operand.hbm [shape: f32[1,1536], index: 6, kind: input, shape index: {}]
  %s7 = inlined_call_operand.hbm [shape: bf16[256,4096], index: 7, kind: input, shape index: {}]
  %s8 = inlined_call_operand.hbm [shape: f32[1,4096], index: 8, kind: input, shape index: {}]
  %s9 = inlined_call_operand.hbm [shape: f32[8,1536], index: 9, kind: output, shape index: {0}]
  %s10 = inlined_call_operand.hbm [shape: f32[8,4096], index: 10, kind: output, shape index: {1}]
  %11 = xla_tuple %s9, %s10
  %s12 = sld [smem:[#allocation0]]
  $region90: #{tpu_custom_call.1} parent=0
    _
  %s14 = ssub.s32 1, %s12
  %s15 = scalar_select 0, %s14, %s12
  $region1: #{tpu_custom_call.1} parent=0
    #allocation2 [shape = 'u8[8192]{0}', space=vmem, size = 0x2000, scoped, tag = 'input window, operand 0, single buffered']
    #allocation3 [shape = 's32[1]{0}', space=sflag, size = 0x4, scoped, tag = 'scoped memory for tpu_custom_call.1']
    #allocation4 [shape = 's32[1]{0}', space=sflag, size = 0x4, scoped, tag = 'scoped memory for tpu_custom_call.1']
    #allocation5 [shape = 'u8[1024]{0}', space=vmem, size = 0x400, scoped, tag = 'input window, operand 1, single buffered']
    #allocation6 [shape = 's32[1]{0}', space=sflag, size = 0x4, scoped, tag = 'scoped memory for tpu_custom_call.1']
    #allocation7 [shape = 'u8[1024]{0}', space=vmem, size = 0x400, scoped, tag = 'input window, operand 2, single buffered']
    #allocation8 [shape = 'u8[196608]{0}', space=vmem, size = 0x30000, scoped, tag = 'input window, operand 3, single buffered']
    #allocation9 [shape = 's32[1]{0}', space=sflag, size = 0x4, scoped, tag = 'scoped memory for tpu_custom_call.1']
    #allocation10 [shape = 'u8[1536]{0}', space=vmem, size = 0x800, scoped, tag = 'input window, operand 4, single buffered']
    #allocation11 [shape = 'u8[393216]{0}', space=vmem, size = 0x60000, scoped, tag = 'input window, operand 5, single buffered']
    #allocation12 [shape = 's32[1]{0}', space=sflag, size = 0x4, scoped, tag = 'scoped memory for tpu_custom_call.1']
    #allocation13 [shape = 'u8[6144]{0}', space=vmem, size = 0x1800, scoped, tag = 'input window, operand 6, single buffered']
    #allocation14 [shape = 'u8[2097152]{0}', space=vmem, size = 0x200000, scoped, tag = 'input window, operand 7, single buffered']
    #allocation15 [shape = 's32[1]{0}', space=sflag, size = 0x4, scoped, tag = 'scoped memory for tpu_custom_call.1']
    #allocation16 [shape = 'u8[16384]{0}', space=vmem, size = 0x4000, scoped, tag = 'input window, operand 8, single buffered']
    #allocation17 [shape = 'u8[49152]{0}', space=vmem, size = 0xc000, scoped, tag = 'output window, operand 0, single buffered']
    #allocation18 [shape = 'u8[131072]{0}', space=vmem, size = 0x20000, scoped, tag = 'output window, operand 1, single buffered']
    #allocation19 [shape = 's32[1]{0}', space=sflag, size = 0x4, scoped, tag = 'scoped memory for tpu_custom_call.1']
    %16 = vsyncpa [#allocation3], 0
    %17 = vsyncpa [#allocation6], 0
    %18 = vsyncpa [#allocation9], 0
    %19 = vsyncpa [#allocation12], 0
    %20 = vsyncpa [#allocation15], 0
    %21 = vsyncpa [#allocation4], 0
    %22 = vsyncpa [#allocation19], 0
    // Predicated region
    $region2: #{tpu_custom_call.1} parent=1 // pred_check
      _
    $region3: #{tpu_custom_call.1} parent=1 // pred_check_branch
      %24 = sbr.rel (0) target = $region5
    $region4: #{tpu_custom_call.1} parent=1 // pred_region
      %s26 = ssub.s32 256, 256
      %27 = vsyncadd [#allocation3], %s26
      %s29 = sshll.u32 [#allocation2], 4
      %s30 = int_to_ptr.vmem [resolvable:$true] %s29
      %32 = dma.hbm_to_vmem [thread:$0]  %s0, 256, %s30, [#allocation3]
    $region5: #{tpu_custom_call.1} parent=1 // pred_fallthru
      _
    // Predicated region
    $region6: #{tpu_custom_call.1} parent=1 // pred_check
      _
    $region7: #{tpu_custom_call.1} parent=1 // pred_check_branch
      %34 = sbr.rel (0) target = $region9
    $region8: #{tpu_custom_call.1} parent=1 // pred_region
      %s36 = ssub.s32 32, 32
      %37 = vsyncadd [#allocation6], %s36
      %s39 = sshll.u32 [#allocation5], 4
      %s40 = int_to_ptr.vmem [resolvable:$true] %s39
      %42 = dma.hbm_to_vmem [thread:$0]  %s1, 32, %s40, [#allocation6]
    $region9: #{tpu_custom_call.1} parent=1 // pred_fallthru
      _
    // Predicated region
    $region10: #{tpu_custom_call.1} parent=1 // pred_check
      _
    $region11: #{tpu_custom_call.1} parent=1 // pred_check_branch
      %44 = sbr.rel (0) target = $region13
    $region12: #{tpu_custom_call.1} parent=1 // pred_region
      %s46 = ssub.s32 32, 32
      %47 = vsyncadd [#allocation6], %s46
      %s49 = sshll.u32 [#allocation7], 4
      %s50 = int_to_ptr.vmem [resolvable:$true] %s49
      %52 = dma.hbm_to_vmem [thread:$0]  %s2, 32, %s50, [#allocation6]
    $region13: #{tpu_custom_call.1} parent=1 // pred_fallthru
      _
    // Predicated region
    $region14: #{tpu_custom_call.1} parent=1 // pred_check
      _
    $region15: #{tpu_custom_call.1} parent=1 // pred_check_branch
      %54 = sbr.rel (0) target = $region17
    $region16: #{tpu_custom_call.1} parent=1 // pred_region
      %s56 = ssub.s32 6144, 6144
      %57 = vsyncadd [#allocation9], %s56
      %s58 = sshll.u32 [#allocation8], 4
      %s59 = int_to_ptr.vmem [resolvable:$true] %s58
      %64 = dma.hbm_to_vmem [thread:$0]  %s3, 6144, %s59, [#allocation9], 192, 192, 12
    $region17: #{tpu_custom_call.1} parent=1 // pred_fallthru
      _
    // Predicated region
    $region18: #{tpu_custom_call.1} parent=1 // pred_check
      _
    $region19: #{tpu_custom_call.1} parent=1 // pred_check_branch
      %66 = sbr.rel (0) target = $region21
    $region20: #{tpu_custom_call.1} parent=1 // pred_region
      %s68 = ssub.s32 48, 48
      %69 = vsyncadd [#allocation9], %s68
      %s71 = sshll.u32 [#allocation10], 4
      %s72 = int_to_ptr.vmem [resolvable:$true] %s71
      %74 = dma.hbm_to_vmem [thread:$0]  %s4, 48, %s72, [#allocation9]
    $region21: #{tpu_custom_call.1} parent=1 // pred_fallthru
      _
    // Predicated region
    $region22: #{tpu_custom_call.1} parent=1 // pred_check
      _
    $region23: #{tpu_custom_call.1} parent=1 // pred_check_branch
      %76 = sbr.rel (0) target = $region25
    $region24: #{tpu_custom_call.1} parent=1 // pred_region
      %s78 = ssub.s32 12288, 12288
      %79 = vsyncadd [#allocation12], %s78
      %s80 = sshll.u32 [#allocation11], 4
      %s81 = int_to_ptr.vmem [resolvable:$true] %s80
      %86 = dma.hbm_to_vmem [thread:$0]  %s5, 12288, %s81, [#allocation12], 768, 768, 48
    $region25: #{tpu_custom_call.1} parent=1 // pred_fallthru
      _
    // Predicated region
    $region26: #{tpu_custom_call.1} parent=1 // pred_check
      _
    $region27: #{tpu_custom_call.1} parent=1 // pred_check_branch
      %88 = sbr.rel (0) target = $region29
    $region28: #{tpu_custom_call.1} parent=1 // pred_region
      %s90 = ssub.s32 192, 192
      %91 = vsyncadd [#allocation12], %s90
      %s93 = sshll.u32 [#allocation13], 4
      %s94 = int_to_ptr.vmem [resolvable:$true] %s93
      %96 = dma.hbm_to_vmem [thread:$0]  %s6, 192, %s94, [#allocation12]
    $region29: #{tpu_custom_call.1} parent=1 // pred_fallthru
      _
    // Predicated region
    $region30: #{tpu_custom_call.1} parent=1 // pred_check
      _
    $region31: #{tpu_custom_call.1} parent=1 // pred_check_branch
      %98 = sbr.rel (0) target = $region33
    $region32: #{tpu_custom_call.1} parent=1 // pred_region
      %s100 = ssub.s32 65536, 65536
      %101 = vsyncadd [#allocation15], %s100
      %s102 = sshll.u32 [#allocation14], 4
      %s103 = int_to_ptr.vmem [resolvable:$true] %s102
      %108 = dma.hbm_to_vmem [thread:$0]  %s7, 65536, %s103, [#allocation15], 2048, 2048, 128
    $region33: #{tpu_custom_call.1} parent=1 // pred_fallthru
      _
    // Predicated region
    $region34: #{tpu_custom_call.1} parent=1 // pred_check
      _
    $region35: #{tpu_custom_call.1} parent=1 // pred_check_branch
      %110 = sbr.rel (0) target = $region37
    $region36: #{tpu_custom_call.1} parent=1 // pred_region
      %s112 = ssub.s32 512, 512
      %113 = vsyncadd [#allocation15], %s112
      %s115 = sshll.u32 [#allocation16], 4
      %s116 = int_to_ptr.vmem [resolvable:$true] %s115
      %118 = dma.hbm_to_vmem [thread:$0]  %s8, 512, %s116, [#allocation15]
    $region37: #{tpu_custom_call.1} parent=1 // pred_fallthru
      _
    // Predicated region
    $region38: #{tpu_custom_call.1} parent=1 // pred_check
      _
    $region39: #{tpu_custom_call.1} parent=1 // pred_check_branch
      %120 = sbr.rel (0) target = $region41
    $region40: #{tpu_custom_call.1} parent=1 // pred_region
      %121 = dma.done [#allocation3], 256
    $region41: #{tpu_custom_call.1} parent=1 // pred_fallthru
      _
    // Predicated region
    $region42: #{tpu_custom_call.1} parent=1 // pred_check
      _
    $region43: #{tpu_custom_call.1} parent=1 // pred_check_branch
      %123 = sbr.rel (0) target = $region45
    $region44: #{tpu_custom_call.1} parent=1 // pred_region
      %124 = dma.done [#allocation6], 32
    $region45: #{tpu_custom_call.1} parent=1 // pred_fallthru
      _
    // Predicated region
    $region46: #{tpu_custom_call.1} parent=1 // pred_check
      _
    $region47: #{tpu_custom_call.1} parent=1 // pred_check_branch
      %126 = sbr.rel (0) target = $region49
    $region48: #{tpu_custom_call.1} parent=1 // pred_region
      %127 = dma.done [#allocation6], 32
    $region49: #{tpu_custom_call.1} parent=1 // pred_fallthru
      _
    // Predicated region
    $region50: #{tpu_custom_call.1} parent=1 // pred_check
      _
    $region51: #{tpu_custom_call.1} parent=1 // pred_check_branch
      %129 = sbr.rel (0) target = $region53
    $region52: #{tpu_custom_call.1} parent=1 // pred_region
      %130 = dma.done [#allocation9], 6144
    $region53: #{tpu_custom_call.1} parent=1 // pred_fallthru
      _
    // Predicated region
    $region54: #{tpu_custom_call.1} parent=1 // pred_check
      _
    $region55: #{tpu_custom_call.1} parent=1 // pred_check_branch
      %132 = sbr.rel (0) target = $region57
    $region56: #{tpu_custom_call.1} parent=1 // pred_region
      %133 = dma.done [#allocation9], 48
    $region57: #{tpu_custom_call.1} parent=1 // pred_fallthru
      _
    // Predicated region
    $region58: #{tpu_custom_call.1} parent=1 // pred_check
      _
    $region59: #{tpu_custom_call.1} parent=1 // pred_check_branch
      %135 = sbr.rel (0) target = $region61
    $region60: #{tpu_custom_call.1} parent=1 // pred_region
      %136 = dma.done [#allocation12], 12288
    $region61: #{tpu_custom_call.1} parent=1 // pred_fallthru
      _
    // Predicated region
    $region62: #{tpu_custom_call.1} parent=1 // pred_check
      _
    $region63: #{tpu_custom_call.1} parent=1 // pred_check_branch
      %138 = sbr.rel (0) target = $region65
    $region64: #{tpu_custom_call.1} parent=1 // pred_region
      %139 = dma.done [#allocation12], 192
    $region65: #{tpu_custom_call.1} parent=1 // pred_fallthru
      _
    // Predicated region
    $region66: #{tpu_custom_call.1} parent=1 // pred_check
      _
    $region67: #{tpu_custom_call.1} parent=1 // pred_check_branch
      %141 = sbr.rel (0) target = $region69
    $region68: #{tpu_custom_call.1} parent=1 // pred_region
      %142 = dma.done [#allocation15], 65536
    $region69: #{tpu_custom_call.1} parent=1 // pred_fallthru
      _
    // Predicated region
    $region70: #{tpu_custom_call.1} parent=1 // pred_check
      _
    $region71: #{tpu_custom_call.1} parent=1 // pred_check_branch
      %144 = sbr.rel (0) target = $region73
    $region72: #{tpu_custom_call.1} parent=1 // pred_region
      %145 = dma.done [#allocation15], 512
    $region73: #{tpu_custom_call.1} parent=1 // pred_fallthru
      _
    %v147 = vld [vmem:[#allocation2] sm:$0xff]
    %v148 = vld [vmem:[#allocation2 + $0x8] sm:$0xff]
    %v149 = vadd.f32 %v147, %v148
    %150 = vadd.xlane.f32.xlu0 %v149
    %v151 = vpop.xlane.xlu0 %150
    %v152 = vmul.f32 %v147, %v147
    %v153 = vmul.f32 %v148, %v148
    %v154 = vadd.f32 %v152, %v153
    %155 = vadd.xlane.f32.xlu0 %v154
    %v156 = vpop.xlane.xlu0 %155
    %v157 = vmul.f32 %v151, 0.00390625
    %v158 = vmul.f32 %v156, 0.00390625
    %v159 = vmul.f32 %v157, %v157
    %v160 = vsub.f32 %v158, %v159
    %v161 = vsub.f32 %v147, %v157
    %v162 = vsub.f32 %v148, %v157
    %v163 = vadd.f32 %v160, 1e-05
    %v164 = vrsqrt.pop %v163
    %v165 = vmul.f32 %v161, %v164
    %v166 = vmul.f32 %v162, %v164
    %v167 = vld [vmem:[#allocation5] sm:$0x3]
    %v169 = vlaneseq
    %v170 = vshrl.u32 %v169, 7
    %v171 = vsub.s32 0, %v170
    %v172 = vrot.slane %v167, %v171
    %v173 = vlaneseq
    %v174 = vshrl.u32 %v173, 7
    %v175 = vsub.s32 1, %v174
    %v176 = vrot.slane %v167, %v175
    %v179 = vmul.f32 %v165, %v172
    %v180 = vmul.f32 %v166, %v176
    %v181 = vld [vmem:[#allocation7] sm:$0x3]
    %v183 = vlaneseq
    %v184 = vshrl.u32 %v183, 7
    %v185 = vsub.s32 0, %v184
    %v186 = vrot.slane %v181, %v185
    %v187 = vlaneseq
    %v188 = vshrl.u32 %v187, 7
    %v189 = vsub.s32 1, %v188
    %v190 = vrot.slane %v181, %v189
    %v193 = vadd.f32 %v179, %v186
    %v194 = vadd.f32 %v180, %v190
    %v195 = vpack.c.bf16 %v193, %v193
    %v196 = vpack.c.bf16 %v194, %v194
    %v197 = vld [vmem:[#allocation8] sm:$0xff]
    %v198 = vld [vmem:[#allocation8 + $0x8] sm:$0xf]
    %v199 = vld [vmem:[#allocation8 + $0xc] sm:$0xff]
    %v200 = vld [vmem:[#allocation8 + $0x14] sm:$0xf]
    %v201 = vld [vmem:[#allocation8 + $0x18] sm:$0xff]
    %v202 = vld [vmem:[#allocation8 + $0x20] sm:$0xf]
    %v203 = vld [vmem:[#allocation8 + $0x24] sm:$0xff]
    %v204 = vld [vmem:[#allocation8 + $0x2c] sm:$0xf]
    %v205 = vld [vmem:[#allocation8 + $0x30] sm:$0xff]
    %v206 = vld [vmem:[#allocation8 + $0x38] sm:$0xf]
    %v207 = vld [vmem:[#allocation8 + $0x3c] sm:$0xff]
    %v208 = vld [vmem:[#allocation8 + $0x44] sm:$0xf]
    %v209 = vld [vmem:[#allocation8 + $0x48] sm:$0xff]
    %v210 = vld [vmem:[#allocation8 + $0x50] sm:$0xf]
    %v211 = vld [vmem:[#allocation8 + $0x54] sm:$0xff]
    %v212 = vld [vmem:[#allocation8 + $0x5c] sm:$0xf]
    %v213 = vld [vmem:[#allocation8 + $0x60] sm:$0xff]
    %v214 = vld [vmem:[#allocation8 + $0x68] sm:$0xf]
    %v215 = vld [vmem:[#allocation8 + $0x6c] sm:$0xff]
    %v216 = vld [vmem:[#allocation8 + $0x74] sm:$0xf]
    %v217 = vld [vmem:[#allocation8 + $0x78] sm:$0xff]
    %v218 = vld [vmem:[#allocation8 + $0x80] sm:$0xf]
    %v219 = vld [vmem:[#allocation8 + $0x84] sm:$0xff]
    %v220 = vld [vmem:[#allocation8 + $0x8c] sm:$0xf]
    %v221 = vld [vmem:[#allocation8 + $0x90] sm:$0xff]
    %v222 = vld [vmem:[#allocation8 + $0x98] sm:$0xf]
    %v223 = vld [vmem:[#allocation8 + $0x9c] sm:$0xff]
    %v224 = vld [vmem:[#allocation8 + $0xa4] sm:$0xf]
    %v225 = vld [vmem:[#allocation8 + $0xa8] sm:$0xff]
    %v226 = vld [vmem:[#allocation8 + $0xb0] sm:$0xf]
    %v227 = vld [vmem:[#allocation8 + $0xb4] sm:$0xff]
    %v228 = vld [vmem:[#allocation8 + $0xbc] sm:$0xf]
    %v229 = vld [vmem:[#allocation8 + $0xc0] sm:$0xff]
    %v230 = vld [vmem:[#allocation8 + $0xc8] sm:$0xf]
    %v231 = vld [vmem:[#allocation8 + $0xcc] sm:$0xff]
    %v232 = vld [vmem:[#allocation8 + $0xd4] sm:$0xf]
    %v233 = vld [vmem:[#allocation8 + $0xd8] sm:$0xff]
    %v234 = vld [vmem:[#allocation8 + $0xe0] sm:$0xf]
    %v235 = vld [vmem:[#allocation8 + $0xe4] sm:$0xff]
    %v236 = vld [vmem:[#allocation8 + $0xec] sm:$0xf]
    %v237 = vld [vmem:[#allocation8 + $0xf0] sm:$0xff]
    %v238 = vld [vmem:[#allocation8 + $0xf8] sm:$0xf]
    %v239 = vld [vmem:[#allocation8 + $0xfc] sm:$0xff]
    %v240 = vld [vmem:[#allocation8 + $0x104] sm:$0xf]
    %v241 = vld [vmem:[#allocation8 + $0x108] sm:$0xff]
    %v242 = vld [vmem:[#allocation8 + $0x110] sm:$0xf]
    %v243 = vld [vmem:[#allocation8 + $0x114] sm:$0xff]
    %v244 = vld [vmem:[#allocation8 + $0x11c] sm:$0xf]
    %v245 = vld [vmem:[#allocation8 + $0x120] sm:$0xff]
    %v246 = vld [vmem:[#allocation8 + $0x128] sm:$0xf]
    %v247 = vld [vmem:[#allocation8 + $0x12c] sm:$0xff]
    %v248 = vld [vmem:[#allocation8 + $0x134] sm:$0xf]
    %v249 = vld [vmem:[#allocation8 + $0x138] sm:$0xff]
    %v250 = vld [vmem:[#allocation8 + $0x140] sm:$0xf]
    %v251 = vld [vmem:[#allocation8 + $0x144] sm:$0xff]
    %v252 = vld [vmem:[#allocation8 + $0x14c] sm:$0xf]
    %v253 = vld [vmem:[#allocation8 + $0x150] sm:$0xff]
    %v254 = vld [vmem:[#allocation8 + $0x158] sm:$0xf]
    %v255 = vld [vmem:[#allocation8 + $0x15c] sm:$0xff]
    %v256 = vld [vmem:[#allocation8 + $0x164] sm:$0xf]
    %v257 = vld [vmem:[#allocation8 + $0x168] sm:$0xff]
    %v258 = vld [vmem:[#allocation8 + $0x170] sm:$0xf]
    %v259 = vld [vmem:[#allocation8 + $0x174] sm:$0xff]
    %v260 = vld [vmem:[#allocation8 + $0x17c] sm:$0xf]
    %v261 = vld [vmem:[#allocation10] sm:$0x7]
    %v263 = vlaneseq
    %v264 = vshrl.u32 %v263, 7
    %v265 = vsub.s32 0, %v264
    %v266 = vrot.slane %v261, %v265
    %v267 = vlaneseq
    %v268 = vshrl.u32 %v267, 7
    %v269 = vsub.s32 1, %v268
    %v270 = vrot.slane %v261, %v269
    %v271 = vlaneseq
    %v272 = vshrl.u32 %v271, 7
    %v273 = vsub.s32 2, %v272
    %v274 = vrot.slane %v261, %v273
    %v342 = vunpack.c.l.b16 %v197
    %v343 = vunpack.c.h.b16 %v197
    %v344 = vunpack.c.l.b16 %v198
    %v345 = vunpack.c.l.b16 %v199
    %v346 = vunpack.c.h.b16 %v199
    %v347 = vunpack.c.l.b16 %v200
    %v348 = vunpack.c.l.b16 %v201
    %v349 = vunpack.c.h.b16 %v201
    %v350 = vunpack.c.l.b16 %v202
    %v351 = vunpack.c.l.b16 %v203
    %v352 = vunpack.c.h.b16 %v203
    %v353 = vunpack.c.l.b16 %v204
    %v354 = vunpack.c.l.b16 %v205
    %v355 = vunpack.c.h.b16 %v205
    %v356 = vunpack.c.l.b16 %v206
    %v357 = vunpack.c.l.b16 %v207
    %v358 = vunpack.c.h.b16 %v207
    %v359 = vunpack.c.l.b16 %v208
    %v360 = vunpack.c.l.b16 %v209
    %v361 = vunpack.c.h.b16 %v209
    %v362 = vunpack.c.l.b16 %v210
    %v363 = vunpack.c.l.b16 %v211
    %v364 = vunpack.c.h.b16 %v211
    %v365 = vunpack.c.l.b16 %v212
    %v366 = vunpack.c.l.b16 %v213
    %v367 = vunpack.c.h.b16 %v213
    %v368 = vunpack.c.l.b16 %v214
    %v369 = vunpack.c.l.b16 %v215
    %v370 = vunpack.c.h.b16 %v215
    %v371 = vunpack.c.l.b16 %v216
    %v372 = vunpack.c.l.b16 %v217
    %v373 = vunpack.c.h.b16 %v217
    %v374 = vunpack.c.l.b16 %v218
    %v375 = vunpack.c.l.b16 %v219
    %v376 = vunpack.c.h.b16 %v219
    %v377 = vunpack.c.l.b16 %v220
    %v378 = vunpack.c.l.b16 %v221
    %v379 = vunpack.c.h.b16 %v221
    %v380 = vunpack.c.l.b16 %v222
    %v381 = vunpack.c.l.b16 %v223
    %v382 = vunpack.c.h.b16 %v223
    %v383 = vunpack.c.l.b16 %v224
    %v384 = vunpack.c.l.b16 %v225
    %v385 = vunpack.c.h.b16 %v225
    %v386 = vunpack.c.l.b16 %v226
    %v387 = vunpack.c.l.b16 %v227
    %v388 = vunpack.c.h.b16 %v227
    %v389 = vunpack.c.l.b16 %v228
    %v390 = vunpack.c.l.b16 %v229
    %v391 = vunpack.c.h.b16 %v229
    %v392 = vunpack.c.l.b16 %v230
    %v393 = vunpack.c.l.b16 %v231
    %v394 = vunpack.c.h.b16 %v231
    %v395 = vunpack.c.l.b16 %v232
    %v396 = vunpack.c.l.b16 %v233
    %v397 = vunpack.c.h.b16 %v233
    %v398 = vunpack.c.l.b16 %v234
    %v399 = vunpack.c.l.b16 %v235
    %v400 = vunpack.c.h.b16 %v235
    %v401 = vunpack.c.l.b16 %v236
    %v402 = vunpack.c.l.b16 %v237
    %v403 = vunpack.c.h.b16 %v237
    %v404 = vunpack.c.l.b16 %v238
    %v405 = vunpack.c.l.b16 %v239
    %v406 = vunpack.c.h.b16 %v239
    %v407 = vunpack.c.l.b16 %v240
    %v408 = vunpack.c.l.b16 %v241
    %v409 = vunpack.c.h.b16 %v241
    %v410 = vunpack.c.l.b16 %v242
    %v411 = vunpack.c.l.b16 %v243
    %v412 = vunpack.c.h.b16 %v243
    %v413 = vunpack.c.l.b16 %v244
    %v414 = vunpack.c.l.b16 %v245
    %v415 = vunpack.c.h.b16 %v245
    %v416 = vunpack.c.l.b16 %v246
    %v417 = vunpack.c.l.b16 %v247
    %v418 = vunpack.c.h.b16 %v247
    %v419 = vunpack.c.l.b16 %v248
    %v420 = vunpack.c.l.b16 %v249
    %v421 = vunpack.c.h.b16 %v249
    %v422 = vunpack.c.l.b16 %v250
    %v423 = vunpack.c.l.b16 %v251
    %v424 = vunpack.c.h.b16 %v251
    %v425 = vunpack.c.l.b16 %v252
    %v426 = vunpack.c.l.b16 %v253
    %v427 = vunpack.c.h.b16 %v253
    %v428 = vunpack.c.l.b16 %v254
    %v429 = vunpack.c.l.b16 %v255
    %v430 = vunpack.c.h.b16 %v255
    %v431 = vunpack.c.l.b16 %v256
    %v432 = vunpack.c.l.b16 %v257
    %v433 = vunpack.c.h.b16 %v257
    %v434 = vunpack.c.l.b16 %v258
    %v435 = vunpack.c.l.b16 %v259
    %v436 = vunpack.c.h.b16 %v259
    %v437 = vunpack.c.l.b16 %v260
    %v438 = vpack.c.b16 %v345, %v342
    %v439 = vpack.c.b16 %v346, %v343
    %v440 = vpack.c.b16 %v347, %v344
    %v441 = vpack.c.b16 %v351, %v348
    %v442 = vpack.c.b16 %v352, %v349
    %v443 = vpack.c.b16 %v353, %v350
    %v444 = vpack.c.b16 %v357, %v354
    %v445 = vpack.c.b16 %v358, %v355
    %v446 = vpack.c.b16 %v359, %v356
    %v447 = vpack.c.b16 %v363, %v360
    %v448 = vpack.c.b16 %v364, %v361
    %v449 = vpack.c.b16 %v365, %v362
    %v450 = vpack.c.b16 %v369, %v366
    %v451 = vpack.c.b16 %v370, %v367
    %v452 = vpack.c.b16 %v371, %v368
    %v453 = vpack.c.b16 %v375, %v372
    %v454 = vpack.c.b16 %v376, %v373
    %v455 = vpack.c.b16 %v377, %v374
    %v456 = vpack.c.b16 %v381, %v378
    %v457 = vpack.c.b16 %v382, %v379
    %v458 = vpack.c.b16 %v383, %v380
    %v459 = vpack.c.b16 %v387, %v384
    %v460 = vpack.c.b16 %v388, %v385
    %v461 = vpack.c.b16 %v389, %v386
    %v462 = vpack.c.b16 %v393, %v390
    %v463 = vpack.c.b16 %v394, %v391
    %v464 = vpack.c.b16 %v395, %v392
    %v465 = vpack.c.b16 %v399, %v396
    %v466 = vpack.c.b16 %v400, %v397
    %v467 = vpack.c.b16 %v401, %v398
    %v468 = vpack.c.b16 %v405, %v402
    %v469 = vpack.c.b16 %v406, %v403
    %v470 = vpack.c.b16 %v407, %v404
    %v471 = vpack.c.b16 %v411, %v408
    %v472 = vpack.c.b16 %v412, %v409
    %v473 = vpack.c.b16 %v413, %v410
    %v474 = vpack.c.b16 %v417, %v414
    %v475 = vpack.c.b16 %v418, %v415
    %v476 = vpack.c.b16 %v419, %v416
    %v477 = vpack.c.b16 %v423, %v420
    %v478 = vpack.c.b16 %v424, %v421
    %v479 = vpack.c.b16 %v425, %v422
    %v480 = vpack.c.b16 %v429, %v426
    %v481 = vpack.c.b16 %v430, %v427
    %v482 = vpack.c.b16 %v431, %v428
    %v483 = vpack.c.b16 %v435, %v432
    %v484 = vpack.c.b16 %v436, %v433
    %v485 = vpack.c.b16 %v437, %v434
    %534 = vmatprep.subr.bf16.mxu0 %v439
    %535 = vmatpush1.bf16.msra.mxu0 %v438
    %536 = vmatprep.subr.bf16.mxu0 %v442
    %537 = vmatpush1.bf16.msra.mxu0 %v441
    %538 = vmatprep.subr.bf16.mxu0 %v445
    %539 = vmatpush1.bf16.msra.mxu0 %v444
    %540 = vmatprep.subr.bf16.mxu0 %v448
    %541 = vmatpush1.bf16.msra.mxu0 %v447
    %542 = vmatprep.subr.bf16.mxu0 %v451
    %543 = vmatpush1.bf16.msra.mxu0 %v450
    %544 = vmatprep.subr.bf16.mxu0 %v454
    %545 = vmatpush1.bf16.msra.mxu0 %v453
    %546 = vmatprep.subr.bf16.mxu0 %v457
    %547 = vmatpush1.bf16.msra.mxu0 %v456
    %548 = vmatprep.subr.bf16.mxu0 %v460
    %549 = vmatpush1.bf16.msra.mxu0 %v459
    %550 = vmatprep.subr.bf16.mxu0 %v463
    %551 = vmatpush1.bf16.msra.mxu0 %v462
    %552 = vmatprep.subr.bf16.mxu0 %v466
    %553 = vmatpush1.bf16.msra.mxu0 %v465
    %554 = vmatprep.subr.bf16.mxu0 %v469
    %555 = vmatpush1.bf16.msra.mxu0 %v468
    %556 = vmatprep.subr.bf16.mxu0 %v472
    %557 = vmatpush1.bf16.msra.mxu0 %v471
    %558 = vmatprep.subr.bf16.mxu0 %v475
    %559 = vmatpush1.bf16.msra.mxu0 %v474
    %560 = vmatprep.subr.bf16.mxu0 %v478
    %561 = vmatpush1.bf16.msra.mxu0 %v477
    %562 = vmatprep.subr.bf16.mxu0 %v481
    %563 = vmatpush1.bf16.msra.mxu0 %v480
    %564 = vmatprep.subr.bf16.mxu0 %v484
    %565 = vmatpush1.bf16.msra.mxu0 %v483
    %566 = vmatprep.mubr.bf16.mxu0 %v196
    %567 = vmatmul.mubr.bf16.gmra.mrb[0].mxu0 %v195
    %v568 = vpop.f32.mrb[0].mxu0
    %v569 = vadd.f32 %v266, %v568
    %v570 = vpop.f32.mrb[0].mxu0
    %v571 = vadd.f32 %v270, %v570
    %v572 = vpop.f32.mrb[0].mxu0
    %v573 = vpop.f32.mrb[0].mxu0
    %574 = vdwg.mxu0
    %575 = vmatprep.subr.bf16.mxu0 0
    %576 = vmatpush1.bf16.msra.mxu0 %v440
    %577 = vmatprep.subr.bf16.mxu0 0
    %578 = vmatpush1.bf16.msra.mxu0 %v443
    %579 = vmatprep.subr.bf16.mxu0 0
    %580 = vmatpush1.bf16.msra.mxu0 %v446
    %581 = vmatprep.subr.bf16.mxu0 0
    %582 = vmatpush1.bf16.msra.mxu0 %v449
    %583 = vmatprep.subr.bf16.mxu0 0
    %584 = vmatpush1.bf16.msra.mxu0 %v452
    %585 = vmatprep.subr.bf16.mxu0 0
    %586 = vmatpush1.bf16.msra.mxu0 %v455
    %587 = vmatprep.subr.bf16.mxu0 0
    %588 = vmatpush1.bf16.msra.mxu0 %v458
    %589 = vmatprep.subr.bf16.mxu0 0
    %590 = vmatpush1.bf16.msra.mxu0 %v461
    %591 = vmatprep.subr.bf16.mxu0 0
    %592 = vmatpush1.bf16.msra.mxu0 %v464
    %593 = vmatprep.subr.bf16.mxu0 0
    %594 = vmatpush1.bf16.msra.mxu0 %v467
    %595 = vmatprep.subr.bf16.mxu0 0
    %596 = vmatpush1.bf16.msra.mxu0 %v470
    %597 = vmatprep.subr.bf16.mxu0 0
    %598 = vmatpush1.bf16.msra.mxu0 %v473
    %599 = vmatprep.subr.bf16.mxu0 0
    %600 = vmatpush1.bf16.msra.mxu0 %v476
    %601 = vmatprep.subr.bf16.mxu0 0
    %602 = vmatpush1.bf16.msra.mxu0 %v479
    %603 = vmatprep.subr.bf16.mxu0 0
    %604 = vmatpush1.bf16.msra.mxu0 %v482
    %605 = vmatprep.subr.bf16.mxu0 0
    %606 = vmatpush1.bf16.msra.mxu0 %v485
    %607 = vmatprep.mubr.bf16.mxu0 %v196
    %608 = vmatmul.mubr.bf16.gmra.mrb[0].mxu0 %v195
    %v609 = vpop.f32.mrb[0].mxu0
    %v610 = vadd.f32 %v274, %v609
    %v611 = vpop.f32.mrb[0].mxu0
    %v612 = vpop.f32.mrb[0].mxu0
    %v613 = vpop.f32.mrb[0].mxu0
    %614 = vdwg.mxu0
    %v615 = vmax.f32 %v569, 0.0
    %v616 = vmax.f32 %v571, 0.0
    %v617 = vmax.f32 %v610, 0.0
    %v618 = vpack.c.bf16 %v615, %v615
    %v619 = vpack.c.bf16 %v616, %v616
    %v620 = vpack.c.bf16 %v617, %v617
    %v621 = vld [vmem:[#allocation11] sm:$0xff]
    %v622 = vld [vmem:[#allocation11 + $0x8] sm:$0xff]
    %v623 = vld [vmem:[#allocation11 + $0x10] sm:$0xff]
    %v624 = vld [vmem:[#allocation11 + $0x18] sm:$0xff]
    %v625 = vld [vmem:[#allocation11 + $0x20] sm:$0xff]
    %v626 = vld [vmem:[#allocation11 + $0x28] sm:$0xff]
    %v627 = vld [vmem:[#allocation11 + $0x30] sm:$0xff]
    %v628 = vld [vmem:[#allocation11 + $0x38] sm:$0xff]
    %v629 = vld [vmem:[#allocation11 + $0x40] sm:$0xff]
    %v630 = vld [vmem:[#allocation11 + $0x48] sm:$0xff]
    %v631 = vld [vmem:[#allocation11 + $0x50] sm:$0xff]
    %v632 = vld [vmem:[#allocation11 + $0x58] sm:$0xff]
    %v633 = vld [vmem:[#allocation11 + $0x60] sm:$0xff]
    %v634 = vld [vmem:[#allocation11 + $0x68] sm:$0xff]
    %v635 = vld [vmem:[#allocation11 + $0x70] sm:$0xff]
    %v636 = vld [vmem:[#allocation11 + $0x78] sm:$0xff]
    %v637 = vld [vmem:[#allocation11 + $0x80] sm:$0xff]
    %v638 = vld [vmem:[#allocation11 + $0x88] sm:$0xff]
    %v639 = vld [vmem:[#allocation11 + $0x90] sm:$0xff]
    %v640 = vld [vmem:[#allocation11 + $0x98] sm:$0xff]
    %v641 = vld [vmem:[#allocation11 + $0xa0] sm:$0xff]
    %v642 = vld [vmem:[#allocation11 + $0xa8] sm:$0xff]
    %v643 = vld [vmem:[#allocation11 + $0xb0] sm:$0xff]
    %v644 = vld [vmem:[#allocation11 + $0xb8] sm:$0xff]
    %v645 = vld [vmem:[#allocation11 + $0xc0] sm:$0xff]
    %v646 = vld [vmem:[#allocation11 + $0xc8] sm:$0xff]
    %v647 = vld [vmem:[#allocation11 + $0xd0] sm:$0xff]
    %v648 = vld [vmem:[#allocation11 + $0xd8] sm:$0xff]
    %v649 = vld [vmem:[#allocation11 + $0xe0] sm:$0xff]
    %v650 = vld [vmem:[#allocation11 + $0xe8] sm:$0xff]
    %v651 = vld [vmem:[#allocation11 + $0xf0] sm:$0xff]
    %v652 = vld [vmem:[#allocation11 + $0xf8] sm:$0xff]
    %v653 = vld [vmem:[#allocation11 + $0x100] sm:$0xff]
    %v654 = vld [vmem:[#allocation11 + $0x108] sm:$0xff]
    %v655 = vld [vmem:[#allocation11 + $0x110] sm:$0xff]
    %v656 = vld [vmem:[#allocation11 + $0x118] sm:$0xff]
    %v657 = vld [vmem:[#allocation11 + $0x120] sm:$0xff]
    %v658 = vld [vmem:[#allocation11 + $0x128] sm:$0xff]
    %v659 = vld [vmem:[#allocation11 + $0x130] sm:$0xff]
    %v660 = vld [vmem:[#allocation11 + $0x138] sm:$0xff]
    %v661 = vld [vmem:[#allocation11 + $0x140] sm:$0xff]
    %v662 = vld [vmem:[#allocation11 + $0x148] sm:$0xff]
    %v663 = vld [vmem:[#allocation11 + $0x150] sm:$0xff]
    %v664 = vld [vmem:[#allocation11 + $0x158] sm:$0xff]
    %v665 = vld [vmem:[#allocation11 + $0x160] sm:$0xff]
    %v666 = vld [vmem:[#allocation11 + $0x168] sm:$0xff]
    %v667 = vld [vmem:[#allocation11 + $0x170] sm:$0xff]
    %v668 = vld [vmem:[#allocation11 + $0x178] sm:$0xff]
    %v669 = vld [vmem:[#allocation11 + $0x180] sm:$0xff]
    %v670 = vld [vmem:[#allocation11 + $0x188] sm:$0xff]
    %v671 = vld [vmem:[#allocation11 + $0x190] sm:$0xff]
    %v672 = vld [vmem:[#allocation11 + $0x198] sm:$0xff]
    %v673 = vld [vmem:[#allocation11 + $0x1a0] sm:$0xff]
    %v674 = vld [vmem:[#allocation11 + $0x1a8] sm:$0xff]
    %v675 = vld [vmem:[#allocation11 + $0x1b0] sm:$0xff]
    %v676 = vld [vmem:[#allocation11 + $0x1b8] sm:$0xff]
    %v677 = vld [vmem:[#allocation11 + $0x1c0] sm:$0xff]
    %v678 = vld [vmem:[#allocation11 + $0x1c8] sm:$0xff]
    %v679 = vld [vmem:[#allocation11 + $0x1d0] sm:$0xff]
    %v680 = vld [vmem:[#allocation11 + $0x1d8] sm:$0xff]
    %v681 = vld [vmem:[#allocation11 + $0x1e0] sm:$0xff]
    %v682 = vld [vmem:[#allocation11 + $0x1e8] sm:$0xff]
    %v683 = vld [vmem:[#allocation11 + $0x1f0] sm:$0xff]
    %v684 = vld [vmem:[#allocation11 + $0x1f8] sm:$0xff]
    %v685 = vld [vmem:[#allocation11 + $0x200] sm:$0xff]
    %v686 = vld [vmem:[#allocation11 + $0x208] sm:$0xff]
    %v687 = vld [vmem:[#allocation11 + $0x210] sm:$0xff]
    %v688 = vld [vmem:[#allocation11 + $0x218] sm:$0xff]
    %v689 = vld [vmem:[#allocation11 + $0x220] sm:$0xff]
    %v690 = vld [vmem:[#allocation11 + $0x228] sm:$0xff]
    %v691 = vld [vmem:[#allocation11 + $0x230] sm:$0xff]
    %v692 = vld [vmem:[#allocation11 + $0x238] sm:$0xff]
    %v693 = vld [vmem:[#allocation11 + $0x240] sm:$0xff]
    %v694 = vld [vmem:[#allocation11 + $0x248] sm:$0xff]
    %v695 = vld [vmem:[#allocation11 + $0x250] sm:$0xff]
    %v696 = vld [vmem:[#allocation11 + $0x258] sm:$0xff]
    %v697 = vld [vmem:[#allocation11 + $0x260] sm:$0xff]
    %v698 = vld [vmem:[#allocation11 + $0x268] sm:$0xff]
    %v699 = vld [vmem:[#allocation11 + $0x270] sm:$0xff]
    %v700 = vld [vmem:[#allocation11 + $0x278] sm:$0xff]
    %v701 = vld [vmem:[#allocation11 + $0x280] sm:$0xff]
    %v702 = vld [vmem:[#allocation11 + $0x288] sm:$0xff]
    %v703 = vld [vmem:[#allocation11 + $0x290] sm:$0xff]
    %v704 = vld [vmem:[#allocation11 + $0x298] sm:$0xff]
    %v705 = vld [vmem:[#allocation11 + $0x2a0] sm:$0xff]
    %v706 = vld [vmem:[#allocation11 + $0x2a8] sm:$0xff]
    %v707 = vld [vmem:[#allocation11 + $0x2b0] sm:$0xff]
    %v708 = vld [vmem:[#allocation11 + $0x2b8] sm:$0xff]
    %v709 = vld [vmem:[#allocation11 + $0x2c0] sm:$0xff]
    %v710 = vld [vmem:[#allocation11 + $0x2c8] sm:$0xff]
    %v711 = vld [vmem:[#allocation11 + $0x2d0] sm:$0xff]
    %v712 = vld [vmem:[#allocation11 + $0x2d8] sm:$0xff]
    %v713 = vld [vmem:[#allocation11 + $0x2e0] sm:$0xff]
    %v714 = vld [vmem:[#allocation11 + $0x2e8] sm:$0xff]
    %v715 = vld [vmem:[#allocation11 + $0x2f0] sm:$0xff]
    %v716 = vld [vmem:[#allocation11 + $0x2f8] sm:$0xff]
    %v717 = vld [vmem:[#allocation13] sm:$0xff]
    %v718 = vld [vmem:[#allocation13 + $0x8] sm:$0xf]
    %v721 = vlaneseq
    %v722 = vshrl.u32 %v721, 7
    %v723 = vsub.s32 0, %v722
    %v724 = vrot.slane %v717, %v723
    %v725 = vlaneseq
    %v726 = vshrl.u32 %v725, 7
    %v727 = vsub.s32 1, %v726
    %v728 = vrot.slane %v717, %v727
    %v729 = vlaneseq
    %v730 = vshrl.u32 %v729, 7
    %v731 = vsub.s32 2, %v730
    %v732 = vrot.slane %v717, %v731
    %v733 = vlaneseq
    %v734 = vshrl.u32 %v733, 7
    %v735 = vsub.s32 3, %v734
    %v736 = vrot.slane %v717, %v735
    %v737 = vlaneseq
    %v738 = vshrl.u32 %v737, 7
    %v739 = vsub.s32 4, %v738
    %v740 = vrot.slane %v717, %v739
    %v741 = vlaneseq
    %v742 = vshrl.u32 %v741, 7
    %v743 = vsub.s32 5, %v742
    %v744 = vrot.slane %v717, %v743
    %v745 = vlaneseq
    %v746 = vshrl.u32 %v745, 7
    %v747 = vsub.s32 6, %v746
    %v748 = vrot.slane %v717, %v747
    %v749 = vlaneseq
    %v750 = vshrl.u32 %v749, 7
    %v751 = vsub.s32 7, %v750
    %v752 = vrot.slane %v717, %v751
    %v753 = vlaneseq
    %v754 = vshrl.u32 %v753, 7
    %v755 = vsub.s32 0, %v754
    %v756 = vrot.slane %v718, %v755
    %v757 = vlaneseq
    %v758 = vshrl.u32 %v757, 7
    %v759 = vsub.s32 1, %v758
    %v760 = vrot.slane %v718, %v759
    %v761 = vlaneseq
    %v762 = vshrl.u32 %v761, 7
    %v763 = vsub.s32 2, %v762
    %v764 = vrot.slane %v718, %v763
    %v765 = vlaneseq
    %v766 = vshrl.u32 %v765, 7
    %v767 = vsub.s32 3, %v766
    %v768 = vrot.slane %v718, %v767
    %v877 = vunpack.c.l.b16 %v621
    %v878 = vunpack.c.h.b16 %v621
    %v879 = vunpack.c.l.b16 %v622
    %v880 = vunpack.c.h.b16 %v622
    %v881 = vunpack.c.l.b16 %v623
    %v882 = vunpack.c.h.b16 %v623
    %v883 = vunpack.c.l.b16 %v624
    %v884 = vunpack.c.h.b16 %v624
    %v885 = vunpack.c.l.b16 %v625
    %v886 = vunpack.c.h.b16 %v625
    %v887 = vunpack.c.l.b16 %v626
    %v888 = vunpack.c.h.b16 %v626
    %v889 = vunpack.c.l.b16 %v627
    %v890 = vunpack.c.h.b16 %v627
    %v891 = vunpack.c.l.b16 %v628
    %v892 = vunpack.c.h.b16 %v628
    %v893 = vunpack.c.l.b16 %v629
    %v894 = vunpack.c.h.b16 %v629
    %v895 = vunpack.c.l.b16 %v630
    %v896 = vunpack.c.h.b16 %v630
    %v897 = vunpack.c.l.b16 %v631
    %v898 = vunpack.c.h.b16 %v631
    %v899 = vunpack.c.l.b16 %v632
    %v900 = vunpack.c.h.b16 %v632
    %v901 = vunpack.c.l.b16 %v633
    %v902 = vunpack.c.h.b16 %v633
    %v903 = vunpack.c.l.b16 %v634
    %v904 = vunpack.c.h.b16 %v634
    %v905 = vunpack.c.l.b16 %v635
    %v906 = vunpack.c.h.b16 %v635
    %v907 = vunpack.c.l.b16 %v636
    %v908 = vunpack.c.h.b16 %v636
    %v909 = vunpack.c.l.b16 %v637
    %v910 = vunpack.c.h.b16 %v637
    %v911 = vunpack.c.l.b16 %v638
    %v912 = vunpack.c.h.b16 %v638
    %v913 = vunpack.c.l.b16 %v639
    %v914 = vunpack.c.h.b16 %v639
    %v915 = vunpack.c.l.b16 %v640
    %v916 = vunpack.c.h.b16 %v640
    %v917 = vunpack.c.l.b16 %v641
    %v918 = vunpack.c.h.b16 %v641
    %v919 = vunpack.c.l.b16 %v642
    %v920 = vunpack.c.h.b16 %v642
    %v921 = vunpack.c.l.b16 %v643
    %v922 = vunpack.c.h.b16 %v643
    %v923 = vunpack.c.l.b16 %v644
    %v924 = vunpack.c.h.b16 %v644
    %v925 = vunpack.c.l.b16 %v645
    %v926 = vunpack.c.h.b16 %v645
    %v927 = vunpack.c.l.b16 %v646
    %v928 = vunpack.c.h.b16 %v646
    %v929 = vunpack.c.l.b16 %v647
    %v930 = vunpack.c.h.b16 %v647
    %v931 = vunpack.c.l.b16 %v648
    %v932 = vunpack.c.h.b16 %v648
    %v933 = vunpack.c.l.b16 %v649
    %v934 = vunpack.c.h.b16 %v649
    %v935 = vunpack.c.l.b16 %v650
    %v936 = vunpack.c.h.b16 %v650
    %v937 = vunpack.c.l.b16 %v651
    %v938 = vunpack.c.h.b16 %v651
    %v939 = vunpack.c.l.b16 %v652
    %v940 = vunpack.c.h.b16 %v652
    %v941 = vunpack.c.l.b16 %v653
    %v942 = vunpack.c.h.b16 %v653
    %v943 = vunpack.c.l.b16 %v654
    %v944 = vunpack.c.h.b16 %v654
    %v945 = vunpack.c.l.b16 %v655
    %v946 = vunpack.c.h.b16 %v655
    %v947 = vunpack.c.l.b16 %v656
    %v948 = vunpack.c.h.b16 %v656
    %v949 = vunpack.c.l.b16 %v657
    %v950 = vunpack.c.h.b16 %v657
    %v951 = vunpack.c.l.b16 %v658
    %v952 = vunpack.c.h.b16 %v658
    %v953 = vunpack.c.l.b16 %v659
    %v954 = vunpack.c.h.b16 %v659
    %v955 = vunpack.c.l.b16 %v660
    %v956 = vunpack.c.h.b16 %v660
    %v957 = vunpack.c.l.b16 %v661
    %v958 = vunpack.c.h.b16 %v661
    %v959 = vunpack.c.l.b16 %v662
    %v960 = vunpack.c.h.b16 %v662
    %v961 = vunpack.c.l.b16 %v663
    %v962 = vunpack.c.h.b16 %v663
    %v963 = vunpack.c.l.b16 %v664
    %v964 = vunpack.c.h.b16 %v664
    %v965 = vunpack.c.l.b16 %v665
    %v966 = vunpack.c.h.b16 %v665
    %v967 = vunpack.c.l.b16 %v666
    %v968 = vunpack.c.h.b16 %v666
    %v969 = vunpack.c.l.b16 %v667
    %v970 = vunpack.c.h.b16 %v667
    %v971 = vunpack.c.l.b16 %v668
    %v972 = vunpack.c.h.b16 %v668
    %v973 = vunpack.c.l.b16 %v669
    %v974 = vunpack.c.h.b16 %v669
    %v975 = vunpack.c.l.b16 %v670
    %v976 = vunpack.c.h.b16 %v670
    %v977 = vunpack.c.l.b16 %v671
    %v978 = vunpack.c.h.b16 %v671
    %v979 = vunpack.c.l.b16 %v672
    %v980 = vunpack.c.h.b16 %v672
    %v981 = vunpack.c.l.b16 %v673
    %v982 = vunpack.c.h.b16 %v673
    %v983 = vunpack.c.l.b16 %v674
    %v984 = vunpack.c.h.b16 %v674
    %v985 = vunpack.c.l.b16 %v675
    %v986 = vunpack.c.h.b16 %v675
    %v987 = vunpack.c.l.b16 %v676
    %v988 = vunpack.c.h.b16 %v676
    %v989 = vunpack.c.l.b16 %v677
    %v990 = vunpack.c.h.b16 %v677
    %v991 = vunpack.c.l.b16 %v678
    %v992 = vunpack.c.h.b16 %v678
    %v993 = vunpack.c.l.b16 %v679
    %v994 = vunpack.c.h.b16 %v679
    %v995 = vunpack.c.l.b16 %v680
    %v996 = vunpack.c.h.b16 %v680
    %v997 = vunpack.c.l.b16 %v681
    %v998 = vunpack.c.h.b16 %v681
    %v999 = vunpack.c.l.b16 %v682
    %v1000 = vunpack.c.h.b16 %v682
    %v1001 = vunpack.c.l.b16 %v683
    %v1002 = vunpack.c.h.b16 %v683
    %v1003 = vunpack.c.l.b16 %v684
    %v1004 = vunpack.c.h.b16 %v684
    %v1005 = vunpack.c.l.b16 %v685
    %v1006 = vunpack.c.h.b16 %v685
    %v1007 = vunpack.c.l.b16 %v686
    %v1008 = vunpack.c.h.b16 %v686
    %v1009 = vunpack.c.l.b16 %v687
    %v1010 = vunpack.c.h.b16 %v687
    %v1011 = vunpack.c.l.b16 %v688
    %v1012 = vunpack.c.h.b16 %v688
    %v1013 = vunpack.c.l.b16 %v689
    %v1014 = vunpack.c.h.b16 %v689
    %v1015 = vunpack.c.l.b16 %v690
    %v1016 = vunpack.c.h.b16 %v690
    %v1017 = vunpack.c.l.b16 %v691
    %v1018 = vunpack.c.h.b16 %v691
    %v1019 = vunpack.c.l.b16 %v692
    %v1020 = vunpack.c.h.b16 %v692
    %v1021 = vunpack.c.l.b16 %v693
    %v1022 = vunpack.c.h.b16 %v693
    %v1023 = vunpack.c.l.b16 %v694
    %v1024 = vunpack.c.h.b16 %v694
    %v1025 = vunpack.c.l.b16 %v695
    %v1026 = vunpack.c.h.b16 %v695
    %v1027 = vunpack.c.l.b16 %v696
    %v1028 = vunpack.c.h.b16 %v696
    %v1029 = vunpack.c.l.b16 %v697
    %v1030 = vunpack.c.h.b16 %v697
    %v1031 = vunpack.c.l.b16 %v698
    %v1032 = vunpack.c.h.b16 %v698
    %v1033 = vunpack.c.l.b16 %v699
    %v1034 = vunpack.c.h.b16 %v699
    %v1035 = vunpack.c.l.b16 %v700
    %v1036 = vunpack.c.h.b16 %v700
    %v1037 = vunpack.c.l.b16 %v701
    %v1038 = vunpack.c.h.b16 %v701
    %v1039 = vunpack.c.l.b16 %v702
    %v1040 = vunpack.c.h.b16 %v702
    %v1041 = vunpack.c.l.b16 %v703
    %v1042 = vunpack.c.h.b16 %v703
    %v1043 = vunpack.c.l.b16 %v704
    %v1044 = vunpack.c.h.b16 %v704
    %v1045 = vunpack.c.l.b16 %v705
    %v1046 = vunpack.c.h.b16 %v705
    %v1047 = vunpack.c.l.b16 %v706
    %v1048 = vunpack.c.h.b16 %v706
    %v1049 = vunpack.c.l.b16 %v707
    %v1050 = vunpack.c.h.b16 %v707
    %v1051 = vunpack.c.l.b16 %v708
    %v1052 = vunpack.c.h.b16 %v708
    %v1053 = vunpack.c.l.b16 %v709
    %v1054 = vunpack.c.h.b16 %v709
    %v1055 = vunpack.c.l.b16 %v710
    %v1056 = vunpack.c.h.b16 %v710
    %v1057 = vunpack.c.l.b16 %v711
    %v1058 = vunpack.c.h.b16 %v711
    %v1059 = vunpack.c.l.b16 %v712
    %v1060 = vunpack.c.h.b16 %v712
    %v1061 = vunpack.c.l.b16 %v713
    %v1062 = vunpack.c.h.b16 %v713
    %v1063 = vunpack.c.l.b16 %v714
    %v1064 = vunpack.c.h.b16 %v714
    %v1065 = vunpack.c.l.b16 %v715
    %v1066 = vunpack.c.h.b16 %v715
    %v1067 = vunpack.c.l.b16 %v716
    %v1068 = vunpack.c.h.b16 %v716
    %v1069 = vpack.c.b16 %v889, %v877
    %v1070 = vpack.c.b16 %v890, %v878
    %v1071 = vpack.c.b16 %v891, %v879
    %v1072 = vpack.c.b16 %v892, %v880
    %v1073 = vpack.c.b16 %v893, %v881
    %v1074 = vpack.c.b16 %v894, %v882
    %v1075 = vpack.c.b16 %v895, %v883
    %v1076 = vpack.c.b16 %v896, %v884
    %v1077 = vpack.c.b16 %v897, %v885
    %v1078 = vpack.c.b16 %v898, %v886
    %v1079 = vpack.c.b16 %v899, %v887
    %v1080 = vpack.c.b16 %v900, %v888
    %v1081 = vpack.c.b16 %v913, %v901
    %v1082 = vpack.c.b16 %v914, %v902
    %v1083 = vpack.c.b16 %v915, %v903
    %v1084 = vpack.c.b16 %v916, %v904
    %v1085 = vpack.c.b16 %v917, %v905
    %v1086 = vpack.c.b16 %v918, %v906
    %v1087 = vpack.c.b16 %v919, %v907
    %v1088 = vpack.c.b16 %v920, %v908
    %v1089 = vpack.c.b16 %v921, %v909
    %v1090 = vpack.c.b16 %v922, %v910
    %v1091 = vpack.c.b16 %v923, %v911
    %v1092 = vpack.c.b16 %v924, %v912
    %v1093 = vpack.c.b16 %v937, %v925
    %v1094 = vpack.c.b16 %v938, %v926
    %v1095 = vpack.c.b16 %v939, %v927
    %v1096 = vpack.c.b16 %v940, %v928
    %v1097 = vpack.c.b16 %v941, %v929
    %v1098 = vpack.c.b16 %v942, %v930
    %v1099 = vpack.c.b16 %v943, %v931
    %v1100 = vpack.c.b16 %v944, %v932
    %v1101 = vpack.c.b16 %v945, %v933
    %v1102 = vpack.c.b16 %v946, %v934
    %v1103 = vpack.c.b16 %v947, %v935
    %v1104 = vpack.c.b16 %v948, %v936
    %v1105 = vpack.c.b16 %v961, %v949
    %v1106 = vpack.c.b16 %v962, %v950
    %v1107 = vpack.c.b16 %v963, %v951
    %v1108 = vpack.c.b16 %v964, %v952
    %v1109 = vpack.c.b16 %v965, %v953
    %v1110 = vpack.c.b16 %v966, %v954
    %v1111 = vpack.c.b16 %v967, %v955
    %v1112 = vpack.c.b16 %v968, %v956
    %v1113 = vpack.c.b16 %v969, %v957
    %v1114 = vpack.c.b16 %v970, %v958
    %v1115 = vpack.c.b16 %v971, %v959
    %v1116 = vpack.c.b16 %v972, %v960
    %v1117 = vpack.c.b16 %v985, %v973
    %v1118 = vpack.c.b16 %v986, %v974
    %v1119 = vpack.c.b16 %v987, %v975
    %v1120 = vpack.c.b16 %v988, %v976
    %v1121 = vpack.c.b16 %v989, %v977
    %v1122 = vpack.c.b16 %v990, %v978
    %v1123 = vpack.c.b16 %v991, %v979
    %v1124 = vpack.c.b16 %v992, %v980
    %v1125 = vpack.c.b16 %v993, %v981
    %v1126 = vpack.c.b16 %v994, %v982
    %v1127 = vpack.c.b16 %v995, %v983
    %v1128 = vpack.c.b16 %v996, %v984
    %v1129 = vpack.c.b16 %v1009, %v997
    %v1130 = vpack.c.b16 %v1010, %v998
    %v1131 = vpack.c.b16 %v1011, %v999
    %v1132 = vpack.c.b16 %v1012, %v1000
    %v1133 = vpack.c.b16 %v1013, %v1001
    %v1134 = vpack.c.b16 %v1014, %v1002
    %v1135 = vpack.c.b16 %v1015, %v1003
    %v1136 = vpack.c.b16 %v1016, %v1004
    %v1137 = vpack.c.b16 %v1017, %v1005
    %v1138 = vpack.c.b16 %v1018, %v1006
    %v1139 = vpack.c.b16 %v1019, %v1007
    %v1140 = vpack.c.b16 %v1020, %v1008
    %v1141 = vpack.c.b16 %v1033, %v1021
    %v1142 = vpack.c.b16 %v1034, %v1022
    %v1143 = vpack.c.b16 %v1035, %v1023
    %v1144 = vpack.c.b16 %v1036, %v1024
    %v1145 = vpack.c.b16 %v1037, %v1025
    %v1146 = vpack.c.b16 %v1038, %v1026
    %v1147 = vpack.c.b16 %v1039, %v1027
    %v1148 = vpack.c.b16 %v1040, %v1028
    %v1149 = vpack.c.b16 %v1041, %v1029
    %v1150 = vpack.c.b16 %v1042, %v1030
    %v1151 = vpack.c.b16 %v1043, %v1031
    %v1152 = vpack.c.b16 %v1044, %v1032
    %v1153 = vpack.c.b16 %v1057, %v1045
    %v1154 = vpack.c.b16 %v1058, %v1046
    %v1155 = vpack.c.b16 %v1059, %v1047
    %v1156 = vpack.c.b16 %v1060, %v1048
    %v1157 = vpack.c.b16 %v1061, %v1049
    %v1158 = vpack.c.b16 %v1062, %v1050
    %v1159 = vpack.c.b16 %v1063, %v1051
    %v1160 = vpack.c.b16 %v1064, %v1052
    %v1161 = vpack.c.b16 %v1065, %v1053
    %v1162 = vpack.c.b16 %v1066, %v1054
    %v1163 = vpack.c.b16 %v1067, %v1055
    %v1164 = vpack.c.b16 %v1068, %v1056
    %1261 = vmatprep.subr.bf16.mxu0 %v1070
    %1262 = vmatpush1.bf16.msra.mxu0 %v1069
    %1263 = vmatprep.subr.bf16.mxu0 %v1082
    %1264 = vmatpush1.bf16.msra.mxu0 %v1081
    %1265 = vmatprep.subr.bf16.mxu0 %v1094
    %1266 = vmatpush1.bf16.msra.mxu0 %v1093
    %1267 = vmatprep.subr.bf16.mxu0 %v1106
    %1268 = vmatpush1.bf16.msra.mxu0 %v1105
    %1269 = vmatprep.subr.bf16.mxu0 %v1118
    %1270 = vmatpush1.bf16.msra.mxu0 %v1117
    %1271 = vmatprep.subr.bf16.mxu0 %v1130
    %1272 = vmatpush1.bf16.msra.mxu0 %v1129
    %1273 = vmatprep.subr.bf16.mxu0 %v1142
    %1274 = vmatpush1.bf16.msra.mxu0 %v1141
    %1275 = vmatprep.subr.bf16.mxu0 %v1154
    %1276 = vmatpush1.bf16.msra.mxu0 %v1153
    %1277 = vmatprep.subr.bf16.mxu0 0
    %1278 = vmatpush1.bf16.msra.mxu0 0
    %1279 = vmatprep.subr.bf16.mxu0 0
    %1280 = vmatpush1.bf16.msra.mxu0 0
    %1281 = vmatprep.subr.bf16.mxu0 0
    %1282 = vmatpush1.bf16.msra.mxu0 0
    %1283 = vmatprep.subr.bf16.mxu0 0
    %1284 = vmatpush1.bf16.msra.mxu0 0
    %1285 = vmatprep.subr.bf16.mxu0 0
    %1286 = vmatpush1.bf16.msra.mxu0 0
    %1287 = vmatprep.subr.bf16.mxu0 0
    %1288 = vmatpush1.bf16.msra.mxu0 0
    %1289 = vmatprep.subr.bf16.mxu0 0
    %1290 = vmatpush1.bf16.msra.mxu0 0
    %1291 = vmatprep.subr.bf16.mxu0 0
    %1292 = vmatpush1.bf16.msra.mxu0 0
    %1293 = vmatprep.mubr.bf16.mxu0 0
    %1294 = vmatmul.mubr.bf16.gmra.mrb[0].mxu0 %v618
    %v1295 = vpop.f32.mrb[0].mxu0
    %v1296 = vadd.f32 %v724, %v1295
    %v1297 = vpop.f32.mrb[0].mxu0
    %v1298 = vadd.f32 %v728, %v1297
    %v1299 = vpop.f32.mrb[0].mxu0
    %v1300 = vpop.f32.mrb[0].mxu0
    %1301 = vdwg.mxu0
    %1302 = vmatprep.subr.bf16.mxu0 %v1072
    %1303 = vmatpush1.bf16.msra.mxu0 %v1071
    %1304 = vmatprep.subr.bf16.mxu0 %v1084
    %1305 = vmatpush1.bf16.msra.mxu0 %v1083
    %1306 = vmatprep.subr.bf16.mxu0 %v1096
    %1307 = vmatpush1.bf16.msra.mxu0 %v1095
    %1308 = vmatprep.subr.bf16.mxu0 %v1108
    %1309 = vmatpush1.bf16.msra.mxu0 %v1107
    %1310 = vmatprep.subr.bf16.mxu0 %v1120
    %1311 = vmatpush1.bf16.msra.mxu0 %v1119
    %1312 = vmatprep.subr.bf16.mxu0 %v1132
    %1313 = vmatpush1.bf16.msra.mxu0 %v1131
    %1314 = vmatprep.subr.bf16.mxu0 %v1144
    %1315 = vmatpush1.bf16.msra.mxu0 %v1143
    %1316 = vmatprep.subr.bf16.mxu0 %v1156
    %1317 = vmatpush1.bf16.msra.mxu0 %v1155
    %1318 = vmatprep.subr.bf16.mxu0 0
    %1319 = vmatpush1.bf16.msra.mxu0 0
    %1320 = vmatprep.subr.bf16.mxu0 0
    %1321 = vmatpush1.bf16.msra.mxu0 0
    %1322 = vmatprep.subr.bf16.mxu0 0
    %1323 = vmatpush1.bf16.msra.mxu0 0
    %1324 = vmatprep.subr.bf16.mxu0 0
    %1325 = vmatpush1.bf16.msra.mxu0 0
    %1326 = vmatprep.subr.bf16.mxu0 0
    %1327 = vmatpush1.bf16.msra.mxu0 0
    %1328 = vmatprep.subr.bf16.mxu0 0
    %1329 = vmatpush1.bf16.msra.mxu0 0
    %1330 = vmatprep.subr.bf16.mxu0 0
    %1331 = vmatpush1.bf16.msra.mxu0 0
    %1332 = vmatprep.subr.bf16.mxu0 0
    %1333 = vmatpush1.bf16.msra.mxu0 0
    %1334 = vmatprep.mubr.bf16.mxu0 0
    %1335 = vmatmul.mubr.bf16.gmra.mrb[0].mxu0 %v618
    %v1336 = vpop.f32.mrb[0].mxu0
    %v1337 = vadd.f32 %v732, %v1336
    %v1338 = vpop.f32.mrb[0].mxu0
    %v1339 = vadd.f32 %v736, %v1338
    %v1340 = vpop.f32.mrb[0].mxu0
    %v1341 = vpop.f32.mrb[0].mxu0
    %1342 = vdwg.mxu0
    %1343 = vmatprep.subr.bf16.mxu0 %v1074
    %1344 = vmatpush1.bf16.msra.mxu0 %v1073
    %1345 = vmatprep.subr.bf16.mxu0 %v1086
    %1346 = vmatpush1.bf16.msra.mxu0 %v1085
    %1347 = vmatprep.subr.bf16.mxu0 %v1098
    %1348 = vmatpush1.bf16.msra.mxu0 %v1097
    %1349 = vmatprep.subr.bf16.mxu0 %v1110
    %1350 = vmatpush1.bf16.msra.mxu0 %v1109
    %1351 = vmatprep.subr.bf16.mxu0 %v1122
    %1352 = vmatpush1.bf16.msra.mxu0 %v1121
    %1353 = vmatprep.subr.bf16.mxu0 %v1134
    %1354 = vmatpush1.bf16.msra.mxu0 %v1133
    %1355 = vmatprep.subr.bf16.mxu0 %v1146
    %1356 = vmatpush1.bf16.msra.mxu0 %v1145
    %1357 = vmatprep.subr.bf16.mxu0 %v1158
    %1358 = vmatpush1.bf16.msra.mxu0 %v1157
    %1359 = vmatprep.subr.bf16.mxu0 0
    %1360 = vmatpush1.bf16.msra.mxu0 0
    %1361 = vmatprep.subr.bf16.mxu0 0
    %1362 = vmatpush1.bf16.msra.mxu0 0
    %1363 = vmatprep.subr.bf16.mxu0 0
    %1364 = vmatpush1.bf16.msra.mxu0 0
    %1365 = vmatprep.subr.bf16.mxu0 0
    %1366 = vmatpush1.bf16.msra.mxu0 0
    %1367 = vmatprep.subr.bf16.mxu0 0
    %1368 = vmatpush1.bf16.msra.mxu0 0
    %1369 = vmatprep.subr.bf16.mxu0 0
    %1370 = vmatpush1.bf16.msra.mxu0 0
    %1371 = vmatprep.subr.bf16.mxu0 0
    %1372 = vmatpush1.bf16.msra.mxu0 0
    %1373 = vmatprep.subr.bf16.mxu0 0
    %1374 = vmatpush1.bf16.msra.mxu0 0
    %1375 = vmatprep.mubr.bf16.mxu0 0
    %1376 = vmatmul.mubr.bf16.gmra.mrb[0].mxu0 %v618
    %v1377 = vpop.f32.mrb[0].mxu0
    %v1378 = vadd.f32 %v740, %v1377
    %v1379 = vpop.f32.mrb[0].mxu0
    %v1380 = vadd.f32 %v744, %v1379
    %v1381 = vpop.f32.mrb[0].mxu0
    %v1382 = vpop.f32.mrb[0].mxu0
    %1383 = vdwg.mxu0
    %1384 = vmatprep.subr.bf16.mxu0 %v1076
    %1385 = vmatpush1.bf16.msra.mxu0 %v1075
    %1386 = vmatprep.subr.bf16.mxu0 %v1088
    %1387 = vmatpush1.bf16.msra.mxu0 %v1087
    %1388 = vmatprep.subr.bf16.mxu0 %v1100
    %1389 = vmatpush1.bf16.msra.mxu0 %v1099
    %1390 = vmatprep.subr.bf16.mxu0 %v1112
    %1391 = vmatpush1.bf16.msra.mxu0 %v1111
    %1392 = vmatprep.subr.bf16.mxu0 %v1124
    %1393 = vmatpush1.bf16.msra.mxu0 %v1123
    %1394 = vmatprep.subr.bf16.mxu0 %v1136
    %1395 = vmatpush1.bf16.msra.mxu0 %v1135
    %1396 = vmatprep.subr.bf16.mxu0 %v1148
    %1397 = vmatpush1.bf16.msra.mxu0 %v1147
    %1398 = vmatprep.subr.bf16.mxu0 %v1160
    %1399 = vmatpush1.bf16.msra.mxu0 %v1159
    %1400 = vmatprep.subr.bf16.mxu0 0
    %1401 = vmatpush1.bf16.msra.mxu0 0
    %1402 = vmatprep.subr.bf16.mxu0 0
    %1403 = vmatpush1.bf16.msra.mxu0 0
    %1404 = vmatprep.subr.bf16.mxu0 0
    %1405 = vmatpush1.bf16.msra.mxu0 0
    %1406 = vmatprep.subr.bf16.mxu0 0
    %1407 = vmatpush1.bf16.msra.mxu0 0
    %1408 = vmatprep.subr.bf16.mxu0 0
    %1409 = vmatpush1.bf16.msra.mxu0 0
    %1410 = vmatprep.subr.bf16.mxu0 0
    %1411 = vmatpush1.bf16.msra.mxu0 0
    %1412 = vmatprep.subr.bf16.mxu0 0
    %1413 = vmatpush1.bf16.msra.mxu0 0
    %1414 = vmatprep.subr.bf16.mxu0 0
    %1415 = vmatpush1.bf16.msra.mxu0 0
    %1416 = vmatprep.mubr.bf16.mxu0 0
    %1417 = vmatmul.mubr.bf16.gmra.mrb[0].mxu0 %v618
    %v1418 = vpop.f32.mrb[0].mxu0
    %v1419 = vadd.f32 %v748, %v1418
    %v1420 = vpop.f32.mrb[0].mxu0
    %v1421 = vadd.f32 %v752, %v1420
    %v1422 = vpop.f32.mrb[0].mxu0
    %v1423 = vpop.f32.mrb[0].mxu0
    %1424 = vdwg.mxu0
    %1425 = vmatprep.subr.bf16.mxu0 %v1078
    %1426 = vmatpush1.bf16.msra.mxu0 %v1077
    %1427 = vmatprep.subr.bf16.mxu0 %v1090
    %1428 = vmatpush1.bf16.msra.mxu0 %v1089
    %1429 = vmatprep.subr.bf16.mxu0 %v1102
    %1430 = vmatpush1.bf16.msra.mxu0 %v1101
    %1431 = vmatprep.subr.bf16.mxu0 %v1114
    %1432 = vmatpush1.bf16.msra.mxu0 %v1113
    %1433 = vmatprep.subr.bf16.mxu0 %v1126
    %1434 = vmatpush1.bf16.msra.mxu0 %v1125
    %1435 = vmatprep.subr.bf16.mxu0 %v1138
    %1436 = vmatpush1.bf16.msra.mxu0 %v1137
    %1437 = vmatprep.subr.bf16.mxu0 %v1150
    %1438 = vmatpush1.bf16.msra.mxu0 %v1149
    %1439 = vmatprep.subr.bf16.mxu0 %v1162
    %1440 = vmatpush1.bf16.msra.mxu0 %v1161
    %1441 = vmatprep.subr.bf16.mxu0 0
    %1442 = vmatpush1.bf16.msra.mxu0 0
    %1443 = vmatprep.subr.bf16.mxu0 0
    %1444 = vmatpush1.bf16.msra.mxu0 0
    %1445 = vmatprep.subr.bf16.mxu0 0
    %1446 = vmatpush1.bf16.msra.mxu0 0
    %1447 = vmatprep.subr.bf16.mxu0 0
    %1448 = vmatpush1.bf16.msra.mxu0 0
    %1449 = vmatprep.subr.bf16.mxu0 0
    %1450 = vmatpush1.bf16.msra.mxu0 0
    %1451 = vmatprep.subr.bf16.mxu0 0
    %1452 = vmatpush1.bf16.msra.mxu0 0
    %1453 = vmatprep.subr.bf16.mxu0 0
    %1454 = vmatpush1.bf16.msra.mxu0 0
    %1455 = vmatprep.subr.bf16.mxu0 0
    %1456 = vmatpush1.bf16.msra.mxu0 0
    %1457 = vmatprep.mubr.bf16.mxu0 0
    %1458 = vmatmul.mubr.bf16.gmra.mrb[0].mxu0 %v618
    %v1459 = vpop.f32.mrb[0].mxu0
    %v1460 = vadd.f32 %v756, %v1459
    %v1461 = vpop.f32.mrb[0].mxu0
    %v1462 = vadd.f32 %v760, %v1461
    %v1463 = vpop.f32.mrb[0].mxu0
    %v1464 = vpop.f32.mrb[0].mxu0
    %1465 = vdwg.mxu0
    %1466 = vmatprep.subr.bf16.mxu0 %v1080
    %1467 = vmatpush1.bf16.msra.mxu0 %v1079
    %1468 = vmatprep.subr.bf16.mxu0 %v1092
    %1469 = vmatpush1.bf16.msra.mxu0 %v1091
    %1470 = vmatprep.subr.bf16.mxu0 %v1104
    %1471 = vmatpush1.bf16.msra.mxu0 %v1103
    %1472 = vmatprep.subr.bf16.mxu0 %v1116
    %1473 = vmatpush1.bf16.msra.mxu0 %v1115
    %1474 = vmatprep.subr.bf16.mxu0 %v1128
    %1475 = vmatpush1.bf16.msra.mxu0 %v1127
    %1476 = vmatprep.subr.bf16.mxu0 %v1140
    %1477 = vmatpush1.bf16.msra.mxu0 %v1139
    %1478 = vmatprep.subr.bf16.mxu0 %v1152
    %1479 = vmatpush1.bf16.msra.mxu0 %v1151
    %1480 = vmatprep.subr.bf16.mxu0 %v1164
    %1481 = vmatpush1.bf16.msra.mxu0 %v1163
    %1482 = vmatprep.subr.bf16.mxu0 0
    %1483 = vmatpush1.bf16.msra.mxu0 0
    %1484 = vmatprep.subr.bf16.mxu0 0
    %1485 = vmatpush1.bf16.msra.mxu0 0
    %1486 = vmatprep.subr.bf16.mxu0 0
    %1487 = vmatpush1.bf16.msra.mxu0 0
    %1488 = vmatprep.subr.bf16.mxu0 0
    %1489 = vmatpush1.bf16.msra.mxu0 0
    %1490 = vmatprep.subr.bf16.mxu0 0
    %1491 = vmatpush1.bf16.msra.mxu0 0
    %1492 = vmatprep.subr.bf16.mxu0 0
    %1493 = vmatpush1.bf16.msra.mxu0 0
    %1494 = vmatprep.subr.bf16.mxu0 0
    %1495 = vmatpush1.bf16.msra.mxu0 0
    %1496 = vmatprep.subr.bf16.mxu0 0
    %1497 = vmatpush1.bf16.msra.mxu0 0
    %1498 = vmatprep.mubr.bf16.mxu0 0
    %1499 = vmatmul.mubr.bf16.gmra.mrb[0].mxu0 %v618
    %v1500 = vpop.f32.mrb[0].mxu0
    %v1501 = vadd.f32 %v764, %v1500
    %v1502 = vpop.f32.mrb[0].mxu0
    %v1503 = vadd.f32 %v768, %v1502
    %v1504 = vpop.f32.mrb[0].mxu0
    %v1505 = vpop.f32.mrb[0].mxu0
    %1506 = vdwg.mxu0
    %1507 = vst [vmem:[#allocation17] sm:$0xff] %v1296
    %1508 = vst [vmem:[#allocation17 + $0x8] sm:$0xff] %v1298
    %1509 = vst [vmem:[#allocation17 + $0x10] sm:$0xff] %v1337
    %1510 = vst [vmem:[#allocation17 + $0x18] sm:$0xff] %v1339
    %1511 = vst [vmem:[#allocation17 + $0x20] sm:$0xff] %v1378
    %1512 = vst [vmem:[#allocation17 + $0x28] sm:$0xff] %v1380
    %1513 = vst [vmem:[#allocation17 + $0x30] sm:$0xff] %v1419
    %1514 = vst [vmem:[#allocation17 + $0x38] sm:$0xff] %v1421
    %1515 = vst [vmem:[#allocation17 + $0x40] sm:$0xff] %v1460
    %1516 = vst [vmem:[#allocation17 + $0x48] sm:$0xff] %v1462
    %1517 = vst [vmem:[#allocation17 + $0x50] sm:$0xff] %v1501
    %1518 = vst [vmem:[#allocation17 + $0x58] sm:$0xff] %v1503
    %v1519 = vld [vmem:[#allocation14] sm:$0xff]
    %v1520 = vld [vmem:[#allocation14 + $0x8] sm:$0xff]
    %v1521 = vld [vmem:[#allocation14 + $0x10] sm:$0xff]
    %v1522 = vld [vmem:[#allocation14 + $0x18] sm:$0xff]
    %v1523 = vld [vmem:[#allocation14 + $0x20] sm:$0xff]
    %v1524 = vld [vmem:[#allocation14 + $0x28] sm:$0xff]
    %v1525 = vld [vmem:[#allocation14 + $0x30] sm:$0xff]
    %v1526 = vld [vmem:[#allocation14 + $0x38] sm:$0xff]
    %v1527 = vld [vmem:[#allocation14 + $0x40] sm:$0xff]
    %v1528 = vld [vmem:[#allocation14 + $0x48] sm:$0xff]
    %v1529 = vld [vmem:[#allocation14 + $0x50] sm:$0xff]
    %v1530 = vld [vmem:[#allocation14 + $0x58] sm:$0xff]
    %v1531 = vld [vmem:[#allocation14 + $0x60] sm:$0xff]
    %v1532 = vld [vmem:[#allocation14 + $0x68] sm:$0xff]
    %v1533 = vld [vmem:[#allocation14 + $0x70] sm:$0xff]
    %v1534 = vld [vmem:[#allocation14 + $0x78] sm:$0xff]
    %v1535 = vld [vmem:[#allocation14 + $0x80] sm:$0xff]
    %v1536 = vld [vmem:[#allocation14 + $0x88] sm:$0xff]
    %v1537 = vld [vmem:[#allocation14 + $0x90] sm:$0xff]
    %v1538 = vld [vmem:[#allocation14 + $0x98] sm:$0xff]
    %v1539 = vld [vmem:[#allocation14 + $0xa0] sm:$0xff]
    %v1540 = vld [vmem:[#allocation14 + $0xa8] sm:$0xff]
    %v1541 = vld [vmem:[#allocation14 + $0xb0] sm:$0xff]
    %v1542 = vld [vmem:[#allocation14 + $0xb8] sm:$0xff]
    %v1543 = vld [vmem:[#allocation14 + $0xc0] sm:$0xff]
    %v1544 = vld [vmem:[#allocation14 + $0xc8] sm:$0xff]
    %v1545 = vld [vmem:[#allocation14 + $0xd0] sm:$0xff]
    %v1546 = vld [vmem:[#allocation14 + $0xd8] sm:$0xff]
    %v1547 = vld [vmem:[#allocation14 + $0xe0] sm:$0xff]
    %v1548 = vld [vmem:[#allocation14 + $0xe8] sm:$0xff]
    %v1549 = vld [vmem:[#allocation14 + $0xf0] sm:$0xff]
    %v1550 = vld [vmem:[#allocation14 + $0xf8] sm:$0xff]
    %v1551 = vld [vmem:[#allocation14 + $0x100] sm:$0xff]
    %v1552 = vld [vmem:[#allocation14 + $0x108] sm:$0xff]
    %v1553 = vld [vmem:[#allocation14 + $0x110] sm:$0xff]
    %v1554 = vld [vmem:[#allocation14 + $0x118] sm:$0xff]
    %v1555 = vld [vmem:[#allocation14 + $0x120] sm:$0xff]
    %v1556 = vld [vmem:[#allocation14 + $0x128] sm:$0xff]
    %v1557 = vld [vmem:[#allocation14 + $0x130] sm:$0xff]
    %v1558 = vld [vmem:[#allocation14 + $0x138] sm:$0xff]
    %v1559 = vld [vmem:[#allocation14 + $0x140] sm:$0xff]
    %v1560 = vld [vmem:[#allocation14 + $0x148] sm:$0xff]
    %v1561 = vld [vmem:[#allocation14 + $0x150] sm:$0xff]
    %v1562 = vld [vmem:[#allocation14 + $0x158] sm:$0xff]
    %v1563 = vld [vmem:[#allocation14 + $0x160] sm:$0xff]
    %v1564 = vld [vmem:[#allocation14 + $0x168] sm:$0xff]
    %v1565 = vld [vmem:[#allocation14 + $0x170] sm:$0xff]
    %v1566 = vld [vmem:[#allocation14 + $0x178] sm:$0xff]
    %v1567 = vld [vmem:[#allocation14 + $0x180] sm:$0xff]
    %v1568 = vld [vmem:[#allocation14 + $0x188] sm:$0xff]
    %v1569 = vld [vmem:[#allocation14 + $0x190] sm:$0xff]
    %v1570 = vld [vmem:[#allocation14 + $0x198] sm:$0xff]
    %v1571 = vld [vmem:[#allocation14 + $0x1a0] sm:$0xff]
    %v1572 = vld [vmem:[#allocation14 + $0x1a8] sm:$0xff]
    %v1573 = vld [vmem:[#allocation14 + $0x1b0] sm:$0xff]
    %v1574 = vld [vmem:[#allocation14 + $0x1b8] sm:$0xff]
    %v1575 = vld [vmem:[#allocation14 + $0x1c0] sm:$0xff]
    %v1576 = vld [vmem:[#allocation14 + $0x1c8] sm:$0xff]
    %v1577 = vld [vmem:[#allocation14 + $0x1d0] sm:$0xff]
    %v1578 = vld [vmem:[#allocation14 + $0x1d8] sm:$0xff]
    %v1579 = vld [vmem:[#allocation14 + $0x1e0] sm:$0xff]
    %v1580 = vld [vmem:[#allocation14 + $0x1e8] sm:$0xff]
    %v1581 = vld [vmem:[#allocation14 + $0x1f0] sm:$0xff]
    %v1582 = vld [vmem:[#allocation14 + $0x1f8] sm:$0xff]
    %v1583 = vld [vmem:[#allocation14 + $0x200] sm:$0xff]
    %v1584 = vld [vmem:[#allocation14 + $0x208] sm:$0xff]
    %v1585 = vld [vmem:[#allocation14 + $0x210] sm:$0xff]
    %v1586 = vld [vmem:[#allocation14 + $0x218] sm:$0xff]
    %v1587 = vld [vmem:[#allocation14 + $0x220] sm:$0xff]
    %v1588 = vld [vmem:[#allocation14 + $0x228] sm:$0xff]
    %v1589 = vld [vmem:[#allocation14 + $0x230] sm:$0xff]
    %v1590 = vld [vmem:[#allocation14 + $0x238] sm:$0xff]
    %v1591 = vld [vmem:[#allocation14 + $0x240] sm:$0xff]
    %v1592 = vld [vmem:[#allocation14 + $0x248] sm:$0xff]
    %v1593 = vld [vmem:[#allocation14 + $0x250] sm:$0xff]
    %v1594 = vld [vmem:[#allocation14 + $0x258] sm:$0xff]
    %v1595 = vld [vmem:[#allocation14 + $0x260] sm:$0xff]
    %v1596 = vld [vmem:[#allocation14 + $0x268] sm:$0xff]
    %v1597 = vld [vmem:[#allocation14 + $0x270] sm:$0xff]
    %v1598 = vld [vmem:[#allocation14 + $0x278] sm:$0xff]
    %v1599 = vld [vmem:[#allocation14 + $0x280] sm:$0xff]
    %v1600 = vld [vmem:[#allocation14 + $0x288] sm:$0xff]
    %v1601 = vld [vmem:[#allocation14 + $0x290] sm:$0xff]
    %v1602 = vld [vmem:[#allocation14 + $0x298] sm:$0xff]
    %v1603 = vld [vmem:[#allocation14 + $0x2a0] sm:$0xff]
    %v1604 = vld [vmem:[#allocation14 + $0x2a8] sm:$0xff]
    %v1605 = vld [vmem:[#allocation14 + $0x2b0] sm:$0xff]
    %v1606 = vld [vmem:[#allocation14 + $0x2b8] sm:$0xff]
    %v1607 = vld [vmem:[#allocation14 + $0x2c0] sm:$0xff]
    %v1608 = vld [vmem:[#allocation14 + $0x2c8] sm:$0xff]
    %v1609 = vld [vmem:[#allocation14 + $0x2d0] sm:$0xff]
    %v1610 = vld [vmem:[#allocation14 + $0x2d8] sm:$0xff]
    %v1611 = vld [vmem:[#allocation14 + $0x2e0] sm:$0xff]
    %v1612 = vld [vmem:[#allocation14 + $0x2e8] sm:$0xff]
    %v1613 = vld [vmem:[#allocation14 + $0x2f0] sm:$0xff]
    %v1614 = vld [vmem:[#allocation14 + $0x2f8] sm:$0xff]
    %v1615 = vld [vmem:[#allocation14 + $0x300] sm:$0xff]
    %v1616 = vld [vmem:[#allocation14 + $0x308] sm:$0xff]
    %v1617 = vld [vmem:[#allocation14 + $0x310] sm:$0xff]
    %v1618 = vld [vmem:[#allocation14 + $0x318] sm:$0xff]
    %v1619 = vld [vmem:[#allocation14 + $0x320] sm:$0xff]
    %v1620 = vld [vmem:[#allocation14 + $0x328] sm:$0xff]
    %v1621 = vld [vmem:[#allocation14 + $0x330] sm:$0xff]
    %v1622 = vld [vmem:[#allocation14 + $0x338] sm:$0xff]
    %v1623 = vld [vmem:[#allocation14 + $0x340] sm:$0xff]
    %v1624 = vld [vmem:[#allocation14 + $0x348] sm:$0xff]
    %v1625 = vld [vmem:[#allocation14 + $0x350] sm:$0xff]
    %v1626 = vld [vmem:[#allocation14 + $0x358] sm:$0xff]
    %v1627 = vld [vmem:[#allocation14 + $0x360] sm:$0xff]
    %v1628 = vld [vmem:[#allocation14 + $0x368] sm:$0xff]
    %v1629 = vld [vmem:[#allocation14 + $0x370] sm:$0xff]
    %v1630 = vld [vmem:[#allocation14 + $0x378] sm:$0xff]
    %v1631 = vld [vmem:[#allocation14 + $0x380] sm:$0xff]
    %v1632 = vld [vmem:[#allocation14 + $0x388] sm:$0xff]
    %v1633 = vld [vmem:[#allocation14 + $0x390] sm:$0xff]
    %v1634 = vld [vmem:[#allocation14 + $0x398] sm:$0xff]
    %v1635 = vld [vmem:[#allocation14 + $0x3a0] sm:$0xff]
    %v1636 = vld [vmem:[#allocation14 + $0x3a8] sm:$0xff]
    %v1637 = vld [vmem:[#allocation14 + $0x3b0] sm:$0xff]
    %v1638 = vld [vmem:[#allocation14 + $0x3b8] sm:$0xff]
    %v1639 = vld [vmem:[#allocation14 + $0x3c0] sm:$0xff]
    %v1640 = vld [vmem:[#allocation14 + $0x3c8] sm:$0xff]
    %v1641 = vld [vmem:[#allocation14 + $0x3d0] sm:$0xff]
    %v1642 = vld [vmem:[#allocation14 + $0x3d8] sm:$0xff]
    %v1643 = vld [vmem:[#allocation14 + $0x3e0] sm:$0xff]
    %v1644 = vld [vmem:[#allocation14 + $0x3e8] sm:$0xff]
    %v1645 = vld [vmem:[#allocation14 + $0x3f0] sm:$0xff]
    %v1646 = vld [vmem:[#allocation14 + $0x3f8] sm:$0xff]
    %v1647 = vld [vmem:[#allocation14 + $0x400] sm:$0xff]
    %v1648 = vld [vmem:[#allocation14 + $0x408] sm:$0xff]
    %v1649 = vld [vmem:[#allocation14 + $0x410] sm:$0xff]
    %v1650 = vld [vmem:[#allocation14 + $0x418] sm:$0xff]
    %v1651 = vld [vmem:[#allocation14 + $0x420] sm:$0xff]
    %v1652 = vld [vmem:[#allocation14 + $0x428] sm:$0xff]
    %v1653 = vld [vmem:[#allocation14 + $0x430] sm:$0xff]
    %v1654 = vld [vmem:[#allocation14 + $0x438] sm:$0xff]
    %v1655 = vld [vmem:[#allocation14 + $0x440] sm:$0xff]
    %v1656 = vld [vmem:[#allocation14 + $0x448] sm:$0xff]
    %v1657 = vld [vmem:[#allocation14 + $0x450] sm:$0xff]
    %v1658 = vld [vmem:[#allocation14 + $0x458] sm:$0xff]
    %v1659 = vld [vmem:[#allocation14 + $0x460] sm:$0xff]
    %v1660 = vld [vmem:[#allocation14 + $0x468] sm:$0xff]
    %v1661 = vld [vmem:[#allocation14 + $0x470] sm:$0xff]
    %v1662 = vld [vmem:[#allocation14 + $0x478] sm:$0xff]
    %v1663 = vld [vmem:[#allocation14 + $0x480] sm:$0xff]
    %v1664 = vld [vmem:[#allocation14 + $0x488] sm:$0xff]
    %v1665 = vld [vmem:[#allocation14 + $0x490] sm:$0xff]
    %v1666 = vld [vmem:[#allocation14 + $0x498] sm:$0xff]
    %v1667 = vld [vmem:[#allocation14 + $0x4a0] sm:$0xff]
    %v1668 = vld [vmem:[#allocation14 + $0x4a8] sm:$0xff]
    %v1669 = vld [vmem:[#allocation14 + $0x4b0] sm:$0xff]
    %v1670 = vld [vmem:[#allocation14 + $0x4b8] sm:$0xff]
    %v1671 = vld [vmem:[#allocation14 + $0x4c0] sm:$0xff]
    %v1672 = vld [vmem:[#allocation14 + $0x4c8] sm:$0xff]
    %v1673 = vld [vmem:[#allocation14 + $0x4d0] sm:$0xff]
    %v1674 = vld [vmem:[#allocation14 + $0x4d8] sm:$0xff]
    %v1675 = vld [vmem:[#allocation14 + $0x4e0] sm:$0xff]
    %v1676 = vld [vmem:[#allocation14 + $0x4e8] sm:$0xff]
    %v1677 = vld [vmem:[#allocation14 + $0x4f0] sm:$0xff]
    %v1678 = vld [vmem:[#allocation14 + $0x4f8] sm:$0xff]
    %v1679 = vld [vmem:[#allocation14 + $0x500] sm:$0xff]
    %v1680 = vld [vmem:[#allocation14 + $0x508] sm:$0xff]
    %v1681 = vld [vmem:[#allocation14 + $0x510] sm:$0xff]
    %v1682 = vld [vmem:[#allocation14 + $0x518] sm:$0xff]
    %v1683 = vld [vmem:[#allocation14 + $0x520] sm:$0xff]
    %v1684 = vld [vmem:[#allocation14 + $0x528] sm:$0xff]
    %v1685 = vld [vmem:[#allocation14 + $0x530] sm:$0xff]
    %v1686 = vld [vmem:[#allocation14 + $0x538] sm:$0xff]
    %v1687 = vld [vmem:[#allocation14 + $0x540] sm:$0xff]
    %v1688 = vld [vmem:[#allocation14 + $0x548] sm:$0xff]
    %v1689 = vld [vmem:[#allocation14 + $0x550] sm:$0xff]
    %v1690 = vld [vmem:[#allocation14 + $0x558] sm:$0xff]
    %v1691 = vld [vmem:[#allocation14 + $0x560] sm:$0xff]
    %v1692 = vld [vmem:[#allocation14 + $0x568] sm:$0xff]
    %v1693 = vld [vmem:[#allocation14 + $0x570] sm:$0xff]
    %v1694 = vld [vmem:[#allocation14 + $0x578] sm:$0xff]
    %v1695 = vld [vmem:[#allocation14 + $0x580] sm:$0xff]
    %v1696 = vld [vmem:[#allocation14 + $0x588] sm:$0xff]
    %v1697 = vld [vmem:[#allocation14 + $0x590] sm:$0xff]
    %v1698 = vld [vmem:[#allocation14 + $0x598] sm:$0xff]
    %v1699 = vld [vmem:[#allocation14 + $0x5a0] sm:$0xff]
    %v1700 = vld [vmem:[#allocation14 + $0x5a8] sm:$0xff]
    %v1701 = vld [vmem:[#allocation14 + $0x5b0] sm:$0xff]
    %v1702 = vld [vmem:[#allocation14 + $0x5b8] sm:$0xff]
    %v1703 = vld [vmem:[#allocation14 + $0x5c0] sm:$0xff]
    %v1704 = vld [vmem:[#allocation14 + $0x5c8] sm:$0xff]
    %v1705 = vld [vmem:[#allocation14 + $0x5d0] sm:$0xff]
    %v1706 = vld [vmem:[#allocation14 + $0x5d8] sm:$0xff]
    %v1707 = vld [vmem:[#allocation14 + $0x5e0] sm:$0xff]
    %v1708 = vld [vmem:[#allocation14 + $0x5e8] sm:$0xff]
    %v1709 = vld [vmem:[#allocation14 + $0x5f0] sm:$0xff]
    %v1710 = vld [vmem:[#allocation14 + $0x5f8] sm:$0xff]
    %v1711 = vld [vmem:[#allocation14 + $0x600] sm:$0xff]
    %v1712 = vld [vmem:[#allocation14 + $0x608] sm:$0xff]
    %v1713 = vld [vmem:[#allocation14 + $0x610] sm:$0xff]
    %v1714 = vld [vmem:[#allocation14 + $0x618] sm:$0xff]
    %v1715 = vld [vmem:[#allocation14 + $0x620] sm:$0xff]
    %v1716 = vld [vmem:[#allocation14 + $0x628] sm:$0xff]
    %v1717 = vld [vmem:[#allocation14 + $0x630] sm:$0xff]
    %v1718 = vld [vmem:[#allocation14 + $0x638] sm:$0xff]
    %v1719 = vld [vmem:[#allocation14 + $0x640] sm:$0xff]
    %v1720 = vld [vmem:[#allocation14 + $0x648] sm:$0xff]
    %v1721 = vld [vmem:[#allocation14 + $0x650] sm:$0xff]
    %v1722 = vld [vmem:[#allocation14 + $0x658] sm:$0xff]
    %v1723 = vld [vmem:[#allocation14 + $0x660] sm:$0xff]
    %v1724 = vld [vmem:[#allocation14 + $0x668] sm:$0xff]
    %v1725 = vld [vmem:[#allocation14 + $0x670] sm:$0xff]
    %v1726 = vld [vmem:[#allocation14 + $0x678] sm:$0xff]
    %v1727 = vld [vmem:[#allocation14 + $0x680] sm:$0xff]
    %v1728 = vld [vmem:[#allocation14 + $0x688] sm:$0xff]
    %v1729 = vld [vmem:[#allocation14 + $0x690] sm:$0xff]
    %v1730 = vld [vmem:[#allocation14 + $0x698] sm:$0xff]
    %v1731 = vld [vmem:[#allocation14 + $0x6a0] sm:$0xff]
    %v1732 = vld [vmem:[#allocation14 + $0x6a8] sm:$0xff]
    %v1733 = vld [vmem:[#allocation14 + $0x6b0] sm:$0xff]
    %v1734 = vld [vmem:[#allocation14 + $0x6b8] sm:$0xff]
    %v1735 = vld [vmem:[#allocation14 + $0x6c0] sm:$0xff]
    %v1736 = vld [vmem:[#allocation14 + $0x6c8] sm:$0xff]
    %v1737 = vld [vmem:[#allocation14 + $0x6d0] sm:$0xff]
    %v1738 = vld [vmem:[#allocation14 + $0x6d8] sm:$0xff]
    %v1739 = vld [vmem:[#allocation14 + $0x6e0] sm:$0xff]
    %v1740 = vld [vmem:[#allocation14 + $0x6e8] sm:$0xff]
    %v1741 = vld [vmem:[#allocation14 + $0x6f0] sm:$0xff]
    %v1742 = vld [vmem:[#allocation14 + $0x6f8] sm:$0xff]
    %v1743 = vld [vmem:[#allocation14 + $0x700] sm:$0xff]
    %v1744 = vld [vmem:[#allocation14 + $0x708] sm:$0xff]
    %v1745 = vld [vmem:[#allocation14 + $0x710] sm:$0xff]
    %v1746 = vld [vmem:[#allocation14 + $0x718] sm:$0xff]
    %v1747 = vld [vmem:[#allocation14 + $0x720] sm:$0xff]
    %v1748 = vld [vmem:[#allocation14 + $0x728] sm:$0xff]
    %v1749 = vld [vmem:[#allocation14 + $0x730] sm:$0xff]
    %v1750 = vld [vmem:[#allocation14 + $0x738] sm:$0xff]
    %v1751 = vld [vmem:[#allocation14 + $0x740] sm:$0xff]
    %v1752 = vld [vmem:[#allocation14 + $0x748] sm:$0xff]
    %v1753 = vld [vmem:[#allocation14 + $0x750] sm:$0xff]
    %v1754 = vld [vmem:[#allocation14 + $0x758] sm:$0xff]
    %v1755 = vld [vmem:[#allocation14 + $0x760] sm:$0xff]
    %v1756 = vld [vmem:[#allocation14 + $0x768] sm:$0xff]
    %v1757 = vld [vmem:[#allocation14 + $0x770] sm:$0xff]
    %v1758 = vld [vmem:[#allocation14 + $0x778] sm:$0xff]
    %v1759 = vld [vmem:[#allocation14 + $0x780] sm:$0xff]
    %v1760 = vld [vmem:[#allocation14 + $0x788] sm:$0xff]
    %v1761 = vld [vmem:[#allocation14 + $0x790] sm:$0xff]
    %v1762 = vld [vmem:[#allocation14 + $0x798] sm:$0xff]
    %v1763 = vld [vmem:[#allocation14 + $0x7a0] sm:$0xff]
    %v1764 = vld [vmem:[#allocation14 + $0x7a8] sm:$0xff]
    %v1765 = vld [vmem:[#allocation14 + $0x7b0] sm:$0xff]
    %v1766 = vld [vmem:[#allocation14 + $0x7b8] sm:$0xff]
    %v1767 = vld [vmem:[#allocation14 + $0x7c0] sm:$0xff]
    %v1768 = vld [vmem:[#allocation14 + $0x7c8] sm:$0xff]
    %v1769 = vld [vmem:[#allocation14 + $0x7d0] sm:$0xff]
    %v1770 = vld [vmem:[#allocation14 + $0x7d8] sm:$0xff]
    %v1771 = vld [vmem:[#allocation14 + $0x7e0] sm:$0xff]
    %v1772 = vld [vmem:[#allocation14 + $0x7e8] sm:$0xff]
    %v1773 = vld [vmem:[#allocation14 + $0x7f0] sm:$0xff]
    %v1774 = vld [vmem:[#allocation14 + $0x7f8] sm:$0xff]
    %v1775 = vld [vmem:[#allocation14 + $0x800] sm:$0xff]
    %v1776 = vld [vmem:[#allocation14 + $0x808] sm:$0xff]
    %v1777 = vld [vmem:[#allocation14 + $0x810] sm:$0xff]
    %v1778 = vld [vmem:[#allocation14 + $0x818] sm:$0xff]
    %v1779 = vld [vmem:[#allocation14 + $0x820] sm:$0xff]
    %v1780 = vld [vmem:[#allocation14 + $0x828] sm:$0xff]
    %v1781 = vld [vmem:[#allocation14 + $0x830] sm:$0xff]
    %v1782 = vld [vmem:[#allocation14 + $0x838] sm:$0xff]
    %v1783 = vld [vmem:[#allocation14 + $0x840] sm:$0xff]
    %v1784 = vld [vmem:[#allocation14 + $0x848] sm:$0xff]
    %v1785 = vld [vmem:[#allocation14 + $0x850] sm:$0xff]
    %v1786 = vld [vmem:[#allocation14 + $0x858] sm:$0xff]
    %v1787 = vld [vmem:[#allocation14 + $0x860] sm:$0xff]
    %v1788 = vld [vmem:[#allocation14 + $0x868] sm:$0xff]
    %v1789 = vld [vmem:[#allocation14 + $0x870] sm:$0xff]
    %v1790 = vld [vmem:[#allocation14 + $0x878] sm:$0xff]
    %v1791 = vld [vmem:[#allocation14 + $0x880] sm:$0xff]
    %v1792 = vld [vmem:[#allocation14 + $0x888] sm:$0xff]
    %v1793 = vld [vmem:[#allocation14 + $0x890] sm:$0xff]
    %v1794 = vld [vmem:[#allocation14 + $0x898] sm:$0xff]
    %v1795 = vld [vmem:[#allocation14 + $0x8a0] sm:$0xff]
    %v1796 = vld [vmem:[#allocation14 + $0x8a8] sm:$0xff]
    %v1797 = vld [vmem:[#allocation14 + $0x8b0] sm:$0xff]
    %v1798 = vld [vmem:[#allocation14 + $0x8b8] sm:$0xff]
    %v1799 = vld [vmem:[#allocation14 + $0x8c0] sm:$0xff]
    %v1800 = vld [vmem:[#allocation14 + $0x8c8] sm:$0xff]
    %v1801 = vld [vmem:[#allocation14 + $0x8d0] sm:$0xff]
    %v1802 = vld [vmem:[#allocation14 + $0x8d8] sm:$0xff]
    %v1803 = vld [vmem:[#allocation14 + $0x8e0] sm:$0xff]
    %v1804 = vld [vmem:[#allocation14 + $0x8e8] sm:$0xff]
    %v1805 = vld [vmem:[#allocation14 + $0x8f0] sm:$0xff]
    %v1806 = vld [vmem:[#allocation14 + $0x8f8] sm:$0xff]
    %v1807 = vld [vmem:[#allocation14 + $0x900] sm:$0xff]
    %v1808 = vld [vmem:[#allocation14 + $0x908] sm:$0xff]
    %v1809 = vld [vmem:[#allocation14 + $0x910] sm:$0xff]
    %v1810 = vld [vmem:[#allocation14 + $0x918] sm:$0xff]
    %v1811 = vld [vmem:[#allocation14 + $0x920] sm:$0xff]
    %v1812 = vld [vmem:[#allocation14 + $0x928] sm:$0xff]
    %v1813 = vld [vmem:[#allocation14 + $0x930] sm:$0xff]
    %v1814 = vld [vmem:[#allocation14 + $0x938] sm:$0xff]
    %v1815 = vld [vmem:[#allocation14 + $0x940] sm:$0xff]
    %v1816 = vld [vmem:[#allocation14 + $0x948] sm:$0xff]
    %v1817 = vld [vmem:[#allocation14 + $0x950] sm:$0xff]
    %v1818 = vld [vmem:[#allocation14 + $0x958] sm:$0xff]
    %v1819 = vld [vmem:[#allocation14 + $0x960] sm:$0xff]
    %v1820 = vld [vmem:[#allocation14 + $0x968] sm:$0xff]
    %v1821 = vld [vmem:[#allocation14 + $0x970] sm:$0xff]
    %v1822 = vld [vmem:[#allocation14 + $0x978] sm:$0xff]
    %v1823 = vld [vmem:[#allocation14 + $0x980] sm:$0xff]
    %v1824 = vld [vmem:[#allocation14 + $0x988] sm:$0xff]
    %v1825 = vld [vmem:[#allocation14 + $0x990] sm:$0xff]
    %v1826 = vld [vmem:[#allocation14 + $0x998] sm:$0xff]
    %v1827 = vld [vmem:[#allocation14 + $0x9a0] sm:$0xff]
    %v1828 = vld [vmem:[#allocation14 + $0x9a8] sm:$0xff]
    %v1829 = vld [vmem:[#allocation14 + $0x9b0] sm:$0xff]
    %v1830 = vld [vmem:[#allocation14 + $0x9b8] sm:$0xff]
    %v1831 = vld [vmem:[#allocation14 + $0x9c0] sm:$0xff]
    %v1832 = vld [vmem:[#allocation14 + $0x9c8] sm:$0xff]
    %v1833 = vld [vmem:[#allocation14 + $0x9d0] sm:$0xff]
    %v1834 = vld [vmem:[#allocation14 + $0x9d8] sm:$0xff]
    %v1835 = vld [vmem:[#allocation14 + $0x9e0] sm:$0xff]
    %v1836 = vld [vmem:[#allocation14 + $0x9e8] sm:$0xff]
    %v1837 = vld [vmem:[#allocation14 + $0x9f0] sm:$0xff]
    %v1838 = vld [vmem:[#allocation14 + $0x9f8] sm:$0xff]
    %v1839 = vld [vmem:[#allocation14 + $0xa00] sm:$0xff]
    %v1840 = vld [vmem:[#allocation14 + $0xa08] sm:$0xff]
    %v1841 = vld [vmem:[#allocation14 + $0xa10] sm:$0xff]
    %v1842 = vld [vmem:[#allocation14 + $0xa18] sm:$0xff]
    %v1843 = vld [vmem:[#allocation14 + $0xa20] sm:$0xff]
    %v1844 = vld [vmem:[#allocation14 + $0xa28] sm:$0xff]
    %v1845 = vld [vmem:[#allocation14 + $0xa30] sm:$0xff]
    %v1846 = vld [vmem:[#allocation14 + $0xa38] sm:$0xff]
    %v1847 = vld [vmem:[#allocation14 + $0xa40] sm:$0xff]
    %v1848 = vld [vmem:[#allocation14 + $0xa48] sm:$0xff]
    %v1849 = vld [vmem:[#allocation14 + $0xa50] sm:$0xff]
    %v1850 = vld [vmem:[#allocation14 + $0xa58] sm:$0xff]
    %v1851 = vld [vmem:[#allocation14 + $0xa60] sm:$0xff]
    %v1852 = vld [vmem:[#allocation14 + $0xa68] sm:$0xff]
    %v1853 = vld [vmem:[#allocation14 + $0xa70] sm:$0xff]
    %v1854 = vld [vmem:[#allocation14 + $0xa78] sm:$0xff]
    %v1855 = vld [vmem:[#allocation14 + $0xa80] sm:$0xff]
    %v1856 = vld [vmem:[#allocation14 + $0xa88] sm:$0xff]
    %v1857 = vld [vmem:[#allocation14 + $0xa90] sm:$0xff]
    %v1858 = vld [vmem:[#allocation14 + $0xa98] sm:$0xff]
    %v1859 = vld [vmem:[#allocation14 + $0xaa0] sm:$0xff]
    %v1860 = vld [vmem:[#allocation14 + $0xaa8] sm:$0xff]
    %v1861 = vld [vmem:[#allocation14 + $0xab0] sm:$0xff]
    %v1862 = vld [vmem:[#allocation14 + $0xab8] sm:$0xff]
    %v1863 = vld [vmem:[#allocation14 + $0xac0] sm:$0xff]
    %v1864 = vld [vmem:[#allocation14 + $0xac8] sm:$0xff]
    %v1865 = vld [vmem:[#allocation14 + $0xad0] sm:$0xff]
    %v1866 = vld [vmem:[#allocation14 + $0xad8] sm:$0xff]
    %v1867 = vld [vmem:[#allocation14 + $0xae0] sm:$0xff]
    %v1868 = vld [vmem:[#allocation14 + $0xae8] sm:$0xff]
    %v1869 = vld [vmem:[#allocation14 + $0xaf0] sm:$0xff]
    %v1870 = vld [vmem:[#allocation14 + $0xaf8] sm:$0xff]
    %v1871 = vld [vmem:[#allocation14 + $0xb00] sm:$0xff]
    %v1872 = vld [vmem:[#allocation14 + $0xb08] sm:$0xff]
    %v1873 = vld [vmem:[#allocation14 + $0xb10] sm:$0xff]
    %v1874 = vld [vmem:[#allocation14 + $0xb18] sm:$0xff]
    %v1875 = vld [vmem:[#allocation14 + $0xb20] sm:$0xff]
    %v1876 = vld [vmem:[#allocation14 + $0xb28] sm:$0xff]
    %v1877 = vld [vmem:[#allocation14 + $0xb30] sm:$0xff]
    %v1878 = vld [vmem:[#allocation14 + $0xb38] sm:$0xff]
    %v1879 = vld [vmem:[#allocation14 + $0xb40] sm:$0xff]
    %v1880 = vld [vmem:[#allocation14 + $0xb48] sm:$0xff]
    %v1881 = vld [vmem:[#allocation14 + $0xb50] sm:$0xff]
    %v1882 = vld [vmem:[#allocation14 + $0xb58] sm:$0xff]
    %v1883 = vld [vmem:[#allocation14 + $0xb60] sm:$0xff]
    %v1884 = vld [vmem:[#allocation14 + $0xb68] sm:$0xff]
    %v1885 = vld [vmem:[#allocation14 + $0xb70] sm:$0xff]
    %v1886 = vld [vmem:[#allocation14 + $0xb78] sm:$0xff]
    %v1887 = vld [vmem:[#allocation14 + $0xb80] sm:$0xff]
    %v1888 = vld [vmem:[#allocation14 + $0xb88] sm:$0xff]
    %v1889 = vld [vmem:[#allocation14 + $0xb90] sm:$0xff]
    %v1890 = vld [vmem:[#allocation14 + $0xb98] sm:$0xff]
    %v1891 = vld [vmem:[#allocation14 + $0xba0] sm:$0xff]
    %v1892 = vld [vmem:[#allocation14 + $0xba8] sm:$0xff]
    %v1893 = vld [vmem:[#allocation14 + $0xbb0] sm:$0xff]
    %v1894 = vld [vmem:[#allocation14 + $0xbb8] sm:$0xff]
    %v1895 = vld [vmem:[#allocation14 + $0xbc0] sm:$0xff]
    %v1896 = vld [vmem:[#allocation14 + $0xbc8] sm:$0xff]
    %v1897 = vld [vmem:[#allocation14 + $0xbd0] sm:$0xff]
    %v1898 = vld [vmem:[#allocation14 + $0xbd8] sm:$0xff]
    %v1899 = vld [vmem:[#allocation14 + $0xbe0] sm:$0xff]
    %v1900 = vld [vmem:[#allocation14 + $0xbe8] sm:$0xff]
    %v1901 = vld [vmem:[#allocation14 + $0xbf0] sm:$0xff]
    %v1902 = vld [vmem:[#allocation14 + $0xbf8] sm:$0xff]
    %v1903 = vld [vmem:[#allocation14 + $0xc00] sm:$0xff]
    %v1904 = vld [vmem:[#allocation14 + $0xc08] sm:$0xff]
    %v1905 = vld [vmem:[#allocation14 + $0xc10] sm:$0xff]
    %v1906 = vld [vmem:[#allocation14 + $0xc18] sm:$0xff]
    %v1907 = vld [vmem:[#allocation14 + $0xc20] sm:$0xff]
    %v1908 = vld [vmem:[#allocation14 + $0xc28] sm:$0xff]
    %v1909 = vld [vmem:[#allocation14 + $0xc30] sm:$0xff]
    %v1910 = vld [vmem:[#allocation14 + $0xc38] sm:$0xff]
    %v1911 = vld [vmem:[#allocation14 + $0xc40] sm:$0xff]
    %v1912 = vld [vmem:[#allocation14 + $0xc48] sm:$0xff]
    %v1913 = vld [vmem:[#allocation14 + $0xc50] sm:$0xff]
    %v1914 = vld [vmem:[#allocation14 + $0xc58] sm:$0xff]
    %v1915 = vld [vmem:[#allocation14 + $0xc60] sm:$0xff]
    %v1916 = vld [vmem:[#allocation14 + $0xc68] sm:$0xff]
    %v1917 = vld [vmem:[#allocation14 + $0xc70] sm:$0xff]
    %v1918 = vld [vmem:[#allocation14 + $0xc78] sm:$0xff]
    %v1919 = vld [vmem:[#allocation14 + $0xc80] sm:$0xff]
    %v1920 = vld [vmem:[#allocation14 + $0xc88] sm:$0xff]
    %v1921 = vld [vmem:[#allocation14 + $0xc90] sm:$0xff]
    %v1922 = vld [vmem:[#allocation14 + $0xc98] sm:$0xff]
    %v1923 = vld [vmem:[#allocation14 + $0xca0] sm:$0xff]
    %v1924 = vld [vmem:[#allocation14 + $0xca8] sm:$0xff]
    %v1925 = vld [vmem:[#allocation14 + $0xcb0] sm:$0xff]
    %v1926 = vld [vmem:[#allocation14 + $0xcb8] sm:$0xff]
    %v1927 = vld [vmem:[#allocation14 + $0xcc0] sm:$0xff]
    %v1928 = vld [vmem:[#allocation14 + $0xcc8] sm:$0xff]
    %v1929 = vld [vmem:[#allocation14 + $0xcd0] sm:$0xff]
    %v1930 = vld [vmem:[#allocation14 + $0xcd8] sm:$0xff]
    %v1931 = vld [vmem:[#allocation14 + $0xce0] sm:$0xff]
    %v1932 = vld [vmem:[#allocation14 + $0xce8] sm:$0xff]
    %v1933 = vld [vmem:[#allocation14 + $0xcf0] sm:$0xff]
    %v1934 = vld [vmem:[#allocation14 + $0xcf8] sm:$0xff]
    %v1935 = vld [vmem:[#allocation14 + $0xd00] sm:$0xff]
    %v1936 = vld [vmem:[#allocation14 + $0xd08] sm:$0xff]
    %v1937 = vld [vmem:[#allocation14 + $0xd10] sm:$0xff]
    %v1938 = vld [vmem:[#allocation14 + $0xd18] sm:$0xff]
    %v1939 = vld [vmem:[#allocation14 + $0xd20] sm:$0xff]
    %v1940 = vld [vmem:[#allocation14 + $0xd28] sm:$0xff]
    %v1941 = vld [vmem:[#allocation14 + $0xd30] sm:$0xff]
    %v1942 = vld [vmem:[#allocation14 + $0xd38] sm:$0xff]
    %v1943 = vld [vmem:[#allocation14 + $0xd40] sm:$0xff]
    %v1944 = vld [vmem:[#allocation14 + $0xd48] sm:$0xff]
    %v1945 = vld [vmem:[#allocation14 + $0xd50] sm:$0xff]
    %v1946 = vld [vmem:[#allocation14 + $0xd58] sm:$0xff]
    %v1947 = vld [vmem:[#allocation14 + $0xd60] sm:$0xff]
    %v1948 = vld [vmem:[#allocation14 + $0xd68] sm:$0xff]
    %v1949 = vld [vmem:[#allocation14 + $0xd70] sm:$0xff]
    %v1950 = vld [vmem:[#allocation14 + $0xd78] sm:$0xff]
    %v1951 = vld [vmem:[#allocation14 + $0xd80] sm:$0xff]
    %v1952 = vld [vmem:[#allocation14 + $0xd88] sm:$0xff]
    %v1953 = vld [vmem:[#allocation14 + $0xd90] sm:$0xff]
    %v1954 = vld [vmem:[#allocation14 + $0xd98] sm:$0xff]
    %v1955 = vld [vmem:[#allocation14 + $0xda0] sm:$0xff]
    %v1956 = vld [vmem:[#allocation14 + $0xda8] sm:$0xff]
    %v1957 = vld [vmem:[#allocation14 + $0xdb0] sm:$0xff]
    %v1958 = vld [vmem:[#allocation14 + $0xdb8] sm:$0xff]
    %v1959 = vld [vmem:[#allocation14 + $0xdc0] sm:$0xff]
    %v1960 = vld [vmem:[#allocation14 + $0xdc8] sm:$0xff]
    %v1961 = vld [vmem:[#allocation14 + $0xdd0] sm:$0xff]
    %v1962 = vld [vmem:[#allocation14 + $0xdd8] sm:$0xff]
    %v1963 = vld [vmem:[#allocation14 + $0xde0] sm:$0xff]
    %v1964 = vld [vmem:[#allocation14 + $0xde8] sm:$0xff]
    %v1965 = vld [vmem:[#allocation14 + $0xdf0] sm:$0xff]
    %v1966 = vld [vmem:[#allocation14 + $0xdf8] sm:$0xff]
    %v1967 = vld [vmem:[#allocation14 + $0xe00] sm:$0xff]
    %v1968 = vld [vmem:[#allocation14 + $0xe08] sm:$0xff]
    %v1969 = vld [vmem:[#allocation14 + $0xe10] sm:$0xff]
    %v1970 = vld [vmem:[#allocation14 + $0xe18] sm:$0xff]
    %v1971 = vld [vmem:[#allocation14 + $0xe20] sm:$0xff]
    %v1972 = vld [vmem:[#allocation14 + $0xe28] sm:$0xff]
    %v1973 = vld [vmem:[#allocation14 + $0xe30] sm:$0xff]
    %v1974 = vld [vmem:[#allocation14 + $0xe38] sm:$0xff]
    %v1975 = vld [vmem:[#allocation14 + $0xe40] sm:$0xff]
    %v1976 = vld [vmem:[#allocation14 + $0xe48] sm:$0xff]
    %v1977 = vld [vmem:[#allocation14 + $0xe50] sm:$0xff]
    %v1978 = vld [vmem:[#allocation14 + $0xe58] sm:$0xff]
    %v1979 = vld [vmem:[#allocation14 + $0xe60] sm:$0xff]
    %v1980 = vld [vmem:[#allocation14 + $0xe68] sm:$0xff]
    %v1981 = vld [vmem:[#allocation14 + $0xe70] sm:$0xff]
    %v1982 = vld [vmem:[#allocation14 + $0xe78] sm:$0xff]
    %v1983 = vld [vmem:[#allocation14 + $0xe80] sm:$0xff]
    %v1984 = vld [vmem:[#allocation14 + $0xe88] sm:$0xff]
    %v1985 = vld [vmem:[#allocation14 + $0xe90] sm:$0xff]
    %v1986 = vld [vmem:[#allocation14 + $0xe98] sm:$0xff]
    %v1987 = vld [vmem:[#allocation14 + $0xea0] sm:$0xff]
    %v1988 = vld [vmem:[#allocation14 + $0xea8] sm:$0xff]
    %v1989 = vld [vmem:[#allocation14 + $0xeb0] sm:$0xff]
    %v1990 = vld [vmem:[#allocation14 + $0xeb8] sm:$0xff]
    %v1991 = vld [vmem:[#allocation14 + $0xec0] sm:$0xff]
    %v1992 = vld [vmem:[#allocation14 + $0xec8] sm:$0xff]
    %v1993 = vld [vmem:[#allocation14 + $0xed0] sm:$0xff]
    %v1994 = vld [vmem:[#allocation14 + $0xed8] sm:$0xff]
    %v1995 = vld [vmem:[#allocation14 + $0xee0] sm:$0xff]
    %v1996 = vld [vmem:[#allocation14 + $0xee8] sm:$0xff]
    %v1997 = vld [vmem:[#allocation14 + $0xef0] sm:$0xff]
    %v1998 = vld [vmem:[#allocation14 + $0xef8] sm:$0xff]
    %v1999 = vld [vmem:[#allocation14 + $0xf00] sm:$0xff]
    %v2000 = vld [vmem:[#allocation14 + $0xf08] sm:$0xff]
    %v2001 = vld [vmem:[#allocation14 + $0xf10] sm:$0xff]
    %v2002 = vld [vmem:[#allocation14 + $0xf18] sm:$0xff]
    %v2003 = vld [vmem:[#allocation14 + $0xf20] sm:$0xff]
    %v2004 = vld [vmem:[#allocation14 + $0xf28] sm:$0xff]
    %v2005 = vld [vmem:[#allocation14 + $0xf30] sm:$0xff]
    %v2006 = vld [vmem:[#allocation14 + $0xf38] sm:$0xff]
    %v2007 = vld [vmem:[#allocation14 + $0xf40] sm:$0xff]
    %v2008 = vld [vmem:[#allocation14 + $0xf48] sm:$0xff]
    %v2009 = vld [vmem:[#allocation14 + $0xf50] sm:$0xff]
    %v2010 = vld [vmem:[#allocation14 + $0xf58] sm:$0xff]
    %v2011 = vld [vmem:[#allocation14 + $0xf60] sm:$0xff]
    %v2012 = vld [vmem:[#allocation14 + $0xf68] sm:$0xff]
    %v2013 = vld [vmem:[#allocation14 + $0xf70] sm:$0xff]
    %v2014 = vld [vmem:[#allocation14 + $0xf78] sm:$0xff]
    %v2015 = vld [vmem:[#allocation14 + $0xf80] sm:$0xff]
    %v2016 = vld [vmem:[#allocation14 + $0xf88] sm:$0xff]
    %v2017 = vld [vmem:[#allocation14 + $0xf90] sm:$0xff]
    %v2018 = vld [vmem:[#allocation14 + $0xf98] sm:$0xff]
    %v2019 = vld [vmem:[#allocation14 + $0xfa0] sm:$0xff]
    %v2020 = vld [vmem:[#allocation14 + $0xfa8] sm:$0xff]
    %v2021 = vld [vmem:[#allocation14 + $0xfb0] sm:$0xff]
    %v2022 = vld [vmem:[#allocation14 + $0xfb8] sm:$0xff]
    %v2023 = vld [vmem:[#allocation14 + $0xfc0] sm:$0xff]
    %v2024 = vld [vmem:[#allocation14 + $0xfc8] sm:$0xff]
    %v2025 = vld [vmem:[#allocation14 + $0xfd0] sm:$0xff]
    %v2026 = vld [vmem:[#allocation14 + $0xfd8] sm:$0xff]
    %v2027 = vld [vmem:[#allocation14 + $0xfe0] sm:$0xff]
    %v2028 = vld [vmem:[#allocation14 + $0xfe8] sm:$0xff]
    %v2029 = vld [vmem:[#allocation14 + $0xff0] sm:$0xff]
    %v2030 = vld [vmem:[#allocation14 + $0xff8] sm:$0xff]
    %v2031 = vld [vmem:[#allocation16] sm:$0xff]
    %v2032 = vld [vmem:[#allocation16 + $0x8] sm:$0xff]
    %v2033 = vld [vmem:[#allocation16 + $0x10] sm:$0xff]
    %v2034 = vld [vmem:[#allocation16 + $0x18] sm:$0xff]
    %v2039 = vlaneseq
    %v2040 = vshrl.u32 %v2039, 7
    %v2041 = vsub.s32 0, %v2040
    %v2042 = vrot.slane %v2031, %v2041
    %v2043 = vlaneseq
    %v2044 = vshrl.u32 %v2043, 7
    %v2045 = vsub.s32 1, %v2044
    %v2046 = vrot.slane %v2031, %v2045
    %v2047 = vlaneseq
    %v2048 = vshrl.u32 %v2047, 7
    %v2049 = vsub.s32 2, %v2048
    %v2050 = vrot.slane %v2031, %v2049
    %v2051 = vlaneseq
    %v2052 = vshrl.u32 %v2051, 7
    %v2053 = vsub.s32 3, %v2052
    %v2054 = vrot.slane %v2031, %v2053
    %v2055 = vlaneseq
    %v2056 = vshrl.u32 %v2055, 7
    %v2057 = vsub.s32 4, %v2056
    %v2058 = vrot.slane %v2031, %v2057
    %v2059 = vlaneseq
    %v2060 = vshrl.u32 %v2059, 7
    %v2061 = vsub.s32 5, %v2060
    %v2062 = vrot.slane %v2031, %v2061
    %v2063 = vlaneseq
    %v2064 = vshrl.u32 %v2063, 7
    %v2065 = vsub.s32 6, %v2064
    %v2066 = vrot.slane %v2031, %v2065
    %v2067 = vlaneseq
    %v2068 = vshrl.u32 %v2067, 7
    %v2069 = vsub.s32 7, %v2068
    %v2070 = vrot.slane %v2031, %v2069
    %v2071 = vlaneseq
    %v2072 = vshrl.u32 %v2071, 7
    %v2073 = vsub.s32 0, %v2072
    %v2074 = vrot.slane %v2032, %v2073
    %v2075 = vlaneseq
    %v2076 = vshrl.u32 %v2075, 7
    %v2077 = vsub.s32 1, %v2076
    %v2078 = vrot.slane %v2032, %v2077
    %v2079 = vlaneseq
    %v2080 = vshrl.u32 %v2079, 7
    %v2081 = vsub.s32 2, %v2080
    %v2082 = vrot.slane %v2032, %v2081
    %v2083 = vlaneseq
    %v2084 = vshrl.u32 %v2083, 7
    %v2085 = vsub.s32 3, %v2084
    %v2086 = vrot.slane %v2032, %v2085
    %v2087 = vlaneseq
    %v2088 = vshrl.u32 %v2087, 7
    %v2089 = vsub.s32 4, %v2088
    %v2090 = vrot.slane %v2032, %v2089
    %v2091 = vlaneseq
    %v2092 = vshrl.u32 %v2091, 7
    %v2093 = vsub.s32 5, %v2092
    %v2094 = vrot.slane %v2032, %v2093
    %v2095 = vlaneseq
    %v2096 = vshrl.u32 %v2095, 7
    %v2097 = vsub.s32 6, %v2096
    %v2098 = vrot.slane %v2032, %v2097
    %v2099 = vlaneseq
    %v2100 = vshrl.u32 %v2099, 7
    %v2101 = vsub.s32 7, %v2100
    %v2102 = vrot.slane %v2032, %v2101
    %v2103 = vlaneseq
    %v2104 = vshrl.u32 %v2103, 7
    %v2105 = vsub.s32 0, %v2104
    %v2106 = vrot.slane %v2033, %v2105
    %v2107 = vlaneseq
    %v2108 = vshrl.u32 %v2107, 7
    %v2109 = vsub.s32 1, %v2108
    %v2110 = vrot.slane %v2033, %v2109
    %v2111 = vlaneseq
    %v2112 = vshrl.u32 %v2111, 7
    %v2113 = vsub.s32 2, %v2112
    %v2114 = vrot.slane %v2033, %v2113
    %v2115 = vlaneseq
    %v2116 = vshrl.u32 %v2115, 7
    %v2117 = vsub.s32 3, %v2116
    %v2118 = vrot.slane %v2033, %v2117
    %v2119 = vlaneseq
    %v2120 = vshrl.u32 %v2119, 7
    %v2121 = vsub.s32 4, %v2120
    %v2122 = vrot.slane %v2033, %v2121
    %v2123 = vlaneseq
    %v2124 = vshrl.u32 %v2123, 7
    %v2125 = vsub.s32 5, %v2124
    %v2126 = vrot.slane %v2033, %v2125
    %v2127 = vlaneseq
    %v2128 = vshrl.u32 %v2127, 7
    %v2129 = vsub.s32 6, %v2128
    %v2130 = vrot.slane %v2033, %v2129
    %v2131 = vlaneseq
    %v2132 = vshrl.u32 %v2131, 7
    %v2133 = vsub.s32 7, %v2132
    %v2134 = vrot.slane %v2033, %v2133
    %v2135 = vlaneseq
    %v2136 = vshrl.u32 %v2135, 7
    %v2137 = vsub.s32 0, %v2136
    %v2138 = vrot.slane %v2034, %v2137
    %v2139 = vlaneseq
    %v2140 = vshrl.u32 %v2139, 7
    %v2141 = vsub.s32 1, %v2140
    %v2142 = vrot.slane %v2034, %v2141
    %v2143 = vlaneseq
    %v2144 = vshrl.u32 %v2143, 7
    %v2145 = vsub.s32 2, %v2144
    %v2146 = vrot.slane %v2034, %v2145
    %v2147 = vlaneseq
    %v2148 = vshrl.u32 %v2147, 7
    %v2149 = vsub.s32 3, %v2148
    %v2150 = vrot.slane %v2034, %v2149
    %v2151 = vlaneseq
    %v2152 = vshrl.u32 %v2151, 7
    %v2153 = vsub.s32 4, %v2152
    %v2154 = vrot.slane %v2034, %v2153
    %v2155 = vlaneseq
    %v2156 = vshrl.u32 %v2155, 7
    %v2157 = vsub.s32 5, %v2156
    %v2158 = vrot.slane %v2034, %v2157
    %v2159 = vlaneseq
    %v2160 = vshrl.u32 %v2159, 7
    %v2161 = vsub.s32 6, %v2160
    %v2162 = vrot.slane %v2034, %v2161
    %v2163 = vlaneseq
    %v2164 = vshrl.u32 %v2163, 7
    %v2165 = vsub.s32 7, %v2164
    %v2166 = vrot.slane %v2034, %v2165
    %v2711 = vunpack.c.l.b16 %v1519
    %v2712 = vunpack.c.h.b16 %v1519
    %v2713 = vunpack.c.l.b16 %v1520
    %v2714 = vunpack.c.h.b16 %v1520
    %v2715 = vunpack.c.l.b16 %v1521
    %v2716 = vunpack.c.h.b16 %v1521
    %v2717 = vunpack.c.l.b16 %v1522
    %v2718 = vunpack.c.h.b16 %v1522
    %v2719 = vunpack.c.l.b16 %v1523
    %v2720 = vunpack.c.h.b16 %v1523
    %v2721 = vunpack.c.l.b16 %v1524
    %v2722 = vunpack.c.h.b16 %v1524
    %v2723 = vunpack.c.l.b16 %v1525
    %v2724 = vunpack.c.h.b16 %v1525
    %v2725 = vunpack.c.l.b16 %v1526
    %v2726 = vunpack.c.h.b16 %v1526
    %v2727 = vunpack.c.l.b16 %v1527
    %v2728 = vunpack.c.h.b16 %v1527
    %v2729 = vunpack.c.l.b16 %v1528
    %v2730 = vunpack.c.h.b16 %v1528
    %v2731 = vunpack.c.l.b16 %v1529
    %v2732 = vunpack.c.h.b16 %v1529
    %v2733 = vunpack.c.l.b16 %v1530
    %v2734 = vunpack.c.h.b16 %v1530
    %v2735 = vunpack.c.l.b16 %v1531
    %v2736 = vunpack.c.h.b16 %v1531
    %v2737 = vunpack.c.l.b16 %v1532
    %v2738 = vunpack.c.h.b16 %v1532
    %v2739 = vunpack.c.l.b16 %v1533
    %v2740 = vunpack.c.h.b16 %v1533
    %v2741 = vunpack.c.l.b16 %v1534
    %v2742 = vunpack.c.h.b16 %v1534
    %v2743 = vunpack.c.l.b16 %v1535
    %v2744 = vunpack.c.h.b16 %v1535
    %v2745 = vunpack.c.l.b16 %v1536
    %v2746 = vunpack.c.h.b16 %v1536
    %v2747 = vunpack.c.l.b16 %v1537
    %v2748 = vunpack.c.h.b16 %v1537
    %v2749 = vunpack.c.l.b16 %v1538
    %v2750 = vunpack.c.h.b16 %v1538
    %v2751 = vunpack.c.l.b16 %v1539
    %v2752 = vunpack.c.h.b16 %v1539
    %v2753 = vunpack.c.l.b16 %v1540
    %v2754 = vunpack.c.h.b16 %v1540
    %v2755 = vunpack.c.l.b16 %v1541
    %v2756 = vunpack.c.h.b16 %v1541
    %v2757 = vunpack.c.l.b16 %v1542
    %v2758 = vunpack.c.h.b16 %v1542
    %v2759 = vunpack.c.l.b16 %v1543
    %v2760 = vunpack.c.h.b16 %v1543
    %v2761 = vunpack.c.l.b16 %v1544
    %v2762 = vunpack.c.h.b16 %v1544
    %v2763 = vunpack.c.l.b16 %v1545
    %v2764 = vunpack.c.h.b16 %v1545
    %v2765 = vunpack.c.l.b16 %v1546
    %v2766 = vunpack.c.h.b16 %v1546
    %v2767 = vunpack.c.l.b16 %v1547
    %v2768 = vunpack.c.h.b16 %v1547
    %v2769 = vunpack.c.l.b16 %v1548
    %v2770 = vunpack.c.h.b16 %v1548
    %v2771 = vunpack.c.l.b16 %v1549
    %v2772 = vunpack.c.h.b16 %v1549
    %v2773 = vunpack.c.l.b16 %v1550
    %v2774 = vunpack.c.h.b16 %v1550
    %v2775 = vunpack.c.l.b16 %v1551
    %v2776 = vunpack.c.h.b16 %v1551
    %v2777 = vunpack.c.l.b16 %v1552
    %v2778 = vunpack.c.h.b16 %v1552
    %v2779 = vunpack.c.l.b16 %v1553
    %v2780 = vunpack.c.h.b16 %v1553
    %v2781 = vunpack.c.l.b16 %v1554
    %v2782 = vunpack.c.h.b16 %v1554
    %v2783 = vunpack.c.l.b16 %v1555
    %v2784 = vunpack.c.h.b16 %v1555
    %v2785 = vunpack.c.l.b16 %v1556
    %v2786 = vunpack.c.h.b16 %v1556
    %v2787 = vunpack.c.l.b16 %v1557
    %v2788 = vunpack.c.h.b16 %v1557
    %v2789 = vunpack.c.l.b16 %v1558
    %v2790 = vunpack.c.h.b16 %v1558
    %v2791 = vunpack.c.l.b16 %v1559
    %v2792 = vunpack.c.h.b16 %v1559
    %v2793 = vunpack.c.l.b16 %v1560
    %v2794 = vunpack.c.h.b16 %v1560
    %v2795 = vunpack.c.l.b16 %v1561
    %v2796 = vunpack.c.h.b16 %v1561
    %v2797 = vunpack.c.l.b16 %v1562
    %v2798 = vunpack.c.h.b16 %v1562
    %v2799 = vunpack.c.l.b16 %v1563
    %v2800 = vunpack.c.h.b16 %v1563
    %v2801 = vunpack.c.l.b16 %v1564
    %v2802 = vunpack.c.h.b16 %v1564
    %v2803 = vunpack.c.l.b16 %v1565
    %v2804 = vunpack.c.h.b16 %v1565
    %v2805 = vunpack.c.l.b16 %v1566
    %v2806 = vunpack.c.h.b16 %v1566
    %v2807 = vunpack.c.l.b16 %v1567
    %v2808 = vunpack.c.h.b16 %v1567
    %v2809 = vunpack.c.l.b16 %v1568
    %v2810 = vunpack.c.h.b16 %v1568
    %v2811 = vunpack.c.l.b16 %v1569
    %v2812 = vunpack.c.h.b16 %v1569
    %v2813 = vunpack.c.l.b16 %v1570
    %v2814 = vunpack.c.h.b16 %v1570
    %v2815 = vunpack.c.l.b16 %v1571
    %v2816 = vunpack.c.h.b16 %v1571
    %v2817 = vunpack.c.l.b16 %v1572
    %v2818 = vunpack.c.h.b16 %v1572
    %v2819 = vunpack.c.l.b16 %v1573
    %v2820 = vunpack.c.h.b16 %v1573
    %v2821 = vunpack.c.l.b16 %v1574
    %v2822 = vunpack.c.h.b16 %v1574
    %v2823 = vunpack.c.l.b16 %v1575
    %v2824 = vunpack.c.h.b16 %v1575
    %v2825 = vunpack.c.l.b16 %v1576
    %v2826 = vunpack.c.h.b16 %v1576
    %v2827 = vunpack.c.l.b16 %v1577
    %v2828 = vunpack.c.h.b16 %v1577
    %v2829 = vunpack.c.l.b16 %v1578
    %v2830 = vunpack.c.h.b16 %v1578
    %v2831 = vunpack.c.l.b16 %v1579
    %v2832 = vunpack.c.h.b16 %v1579
    %v2833 = vunpack.c.l.b16 %v1580
    %v2834 = vunpack.c.h.b16 %v1580
    %v2835 = vunpack.c.l.b16 %v1581
    %v2836 = vunpack.c.h.b16 %v1581
    %v2837 = vunpack.c.l.b16 %v1582
    %v2838 = vunpack.c.h.b16 %v1582
    %v2839 = vunpack.c.l.b16 %v1583
    %v2840 = vunpack.c.h.b16 %v1583
    %v2841 = vunpack.c.l.b16 %v1584
    %v2842 = vunpack.c.h.b16 %v1584
    %v2843 = vunpack.c.l.b16 %v1585
    %v2844 = vunpack.c.h.b16 %v1585
    %v2845 = vunpack.c.l.b16 %v1586
    %v2846 = vunpack.c.h.b16 %v1586
    %v2847 = vunpack.c.l.b16 %v1587
    %v2848 = vunpack.c.h.b16 %v1587
    %v2849 = vunpack.c.l.b16 %v1588
    %v2850 = vunpack.c.h.b16 %v1588
    %v2851 = vunpack.c.l.b16 %v1589
    %v2852 = vunpack.c.h.b16 %v1589
    %v2853 = vunpack.c.l.b16 %v1590
    %v2854 = vunpack.c.h.b16 %v1590
    %v2855 = vunpack.c.l.b16 %v1591
    %v2856 = vunpack.c.h.b16 %v1591
    %v2857 = vunpack.c.l.b16 %v1592
    %v2858 = vunpack.c.h.b16 %v1592
    %v2859 = vunpack.c.l.b16 %v1593
    %v2860 = vunpack.c.h.b16 %v1593
    %v2861 = vunpack.c.l.b16 %v1594
    %v2862 = vunpack.c.h.b16 %v1594
    %v2863 = vunpack.c.l.b16 %v1595
    %v2864 = vunpack.c.h.b16 %v1595
    %v2865 = vunpack.c.l.b16 %v1596
    %v2866 = vunpack.c.h.b16 %v1596
    %v2867 = vunpack.c.l.b16 %v1597
    %v2868 = vunpack.c.h.b16 %v1597
    %v2869 = vunpack.c.l.b16 %v1598
    %v2870 = vunpack.c.h.b16 %v1598
    %v2871 = vunpack.c.l.b16 %v1599
    %v2872 = vunpack.c.h.b16 %v1599
    %v2873 = vunpack.c.l.b16 %v1600
    %v2874 = vunpack.c.h.b16 %v1600
    %v2875 = vunpack.c.l.b16 %v1601
    %v2876 = vunpack.c.h.b16 %v1601
    %v2877 = vunpack.c.l.b16 %v1602
    %v2878 = vunpack.c.h.b16 %v1602
    %v2879 = vunpack.c.l.b16 %v1603
    %v2880 = vunpack.c.h.b16 %v1603
    %v2881 = vunpack.c.l.b16 %v1604
    %v2882 = vunpack.c.h.b16 %v1604
    %v2883 = vunpack.c.l.b16 %v1605
    %v2884 = vunpack.c.h.b16 %v1605
    %v2885 = vunpack.c.l.b16 %v1606
    %v2886 = vunpack.c.h.b16 %v1606
    %v2887 = vunpack.c.l.b16 %v1607
    %v2888 = vunpack.c.h.b16 %v1607
    %v2889 = vunpack.c.l.b16 %v1608
    %v2890 = vunpack.c.h.b16 %v1608
    %v2891 = vunpack.c.l.b16 %v1609
    %v2892 = vunpack.c.h.b16 %v1609
    %v2893 = vunpack.c.l.b16 %v1610
    %v2894 = vunpack.c.h.b16 %v1610
    %v2895 = vunpack.c.l.b16 %v1611
    %v2896 = vunpack.c.h.b16 %v1611
    %v2897 = vunpack.c.l.b16 %v1612
    %v2898 = vunpack.c.h.b16 %v1612
    %v2899 = vunpack.c.l.b16 %v1613
    %v2900 = vunpack.c.h.b16 %v1613
    %v2901 = vunpack.c.l.b16 %v1614
    %v2902 = vunpack.c.h.b16 %v1614
    %v2903 = vunpack.c.l.b16 %v1615
    %v2904 = vunpack.c.h.b16 %v1615
    %v2905 = vunpack.c.l.b16 %v1616
    %v2906 = vunpack.c.h.b16 %v1616
    %v2907 = vunpack.c.l.b16 %v1617
    %v2908 = vunpack.c.h.b16 %v1617
    %v2909 = vunpack.c.l.b16 %v1618
    %v2910 = vunpack.c.h.b16 %v1618
    %v2911 = vunpack.c.l.b16 %v1619
    %v2912 = vunpack.c.h.b16 %v1619
    %v2913 = vunpack.c.l.b16 %v1620
    %v2914 = vunpack.c.h.b16 %v1620
    %v2915 = vunpack.c.l.b16 %v1621
    %v2916 = vunpack.c.h.b16 %v1621
    %v2917 = vunpack.c.l.b16 %v1622
    %v2918 = vunpack.c.h.b16 %v1622
    %v2919 = vunpack.c.l.b16 %v1623
    %v2920 = vunpack.c.h.b16 %v1623
    %v2921 = vunpack.c.l.b16 %v1624
    %v2922 = vunpack.c.h.b16 %v1624
    %v2923 = vunpack.c.l.b16 %v1625
    %v2924 = vunpack.c.h.b16 %v1625
    %v2925 = vunpack.c.l.b16 %v1626
    %v2926 = vunpack.c.h.b16 %v1626
    %v2927 = vunpack.c.l.b16 %v1627
    %v2928 = vunpack.c.h.b16 %v1627
    %v2929 = vunpack.c.l.b16 %v1628
    %v2930 = vunpack.c.h.b16 %v1628
    %v2931 = vunpack.c.l.b16 %v1629
    %v2932 = vunpack.c.h.b16 %v1629
    %v2933 = vunpack.c.l.b16 %v1630
    %v2934 = vunpack.c.h.b16 %v1630
    %v2935 = vunpack.c.l.b16 %v1631
    %v2936 = vunpack.c.h.b16 %v1631
    %v2937 = vunpack.c.l.b16 %v1632
    %v2938 = vunpack.c.h.b16 %v1632
    %v2939 = vunpack.c.l.b16 %v1633
    %v2940 = vunpack.c.h.b16 %v1633
    %v2941 = vunpack.c.l.b16 %v1634
    %v2942 = vunpack.c.h.b16 %v1634
    %v2943 = vunpack.c.l.b16 %v1635
    %v2944 = vunpack.c.h.b16 %v1635
    %v2945 = vunpack.c.l.b16 %v1636
    %v2946 = vunpack.c.h.b16 %v1636
    %v2947 = vunpack.c.l.b16 %v1637
    %v2948 = vunpack.c.h.b16 %v1637
    %v2949 = vunpack.c.l.b16 %v1638
    %v2950 = vunpack.c.h.b16 %v1638
    %v2951 = vunpack.c.l.b16 %v1639
    %v2952 = vunpack.c.h.b16 %v1639
    %v2953 = vunpack.c.l.b16 %v1640
    %v2954 = vunpack.c.h.b16 %v1640
    %v2955 = vunpack.c.l.b16 %v1641
    %v2956 = vunpack.c.h.b16 %v1641
    %v2957 = vunpack.c.l.b16 %v1642
    %v2958 = vunpack.c.h.b16 %v1642
    %v2959 = vunpack.c.l.b16 %v1643
    %v2960 = vunpack.c.h.b16 %v1643
    %v2961 = vunpack.c.l.b16 %v1644
    %v2962 = vunpack.c.h.b16 %v1644
    %v2963 = vunpack.c.l.b16 %v1645
    %v2964 = vunpack.c.h.b16 %v1645
    %v2965 = vunpack.c.l.b16 %v1646
    %v2966 = vunpack.c.h.b16 %v1646
    %v2967 = vunpack.c.l.b16 %v1647
    %v2968 = vunpack.c.h.b16 %v1647
    %v2969 = vunpack.c.l.b16 %v1648
    %v2970 = vunpack.c.h.b16 %v1648
    %v2971 = vunpack.c.l.b16 %v1649
    %v2972 = vunpack.c.h.b16 %v1649
    %v2973 = vunpack.c.l.b16 %v1650
    %v2974 = vunpack.c.h.b16 %v1650
    %v2975 = vunpack.c.l.b16 %v1651
    %v2976 = vunpack.c.h.b16 %v1651
    %v2977 = vunpack.c.l.b16 %v1652
    %v2978 = vunpack.c.h.b16 %v1652
    %v2979 = vunpack.c.l.b16 %v1653
    %v2980 = vunpack.c.h.b16 %v1653
    %v2981 = vunpack.c.l.b16 %v1654
    %v2982 = vunpack.c.h.b16 %v1654
    %v2983 = vunpack.c.l.b16 %v1655
    %v2984 = vunpack.c.h.b16 %v1655
    %v2985 = vunpack.c.l.b16 %v1656
    %v2986 = vunpack.c.h.b16 %v1656
    %v2987 = vunpack.c.l.b16 %v1657
    %v2988 = vunpack.c.h.b16 %v1657
    %v2989 = vunpack.c.l.b16 %v1658
    %v2990 = vunpack.c.h.b16 %v1658
    %v2991 = vunpack.c.l.b16 %v1659
    %v2992 = vunpack.c.h.b16 %v1659
    %v2993 = vunpack.c.l.b16 %v1660
    %v2994 = vunpack.c.h.b16 %v1660
    %v2995 = vunpack.c.l.b16 %v1661
    %v2996 = vunpack.c.h.b16 %v1661
    %v2997 = vunpack.c.l.b16 %v1662
    %v2998 = vunpack.c.h.b16 %v1662
    %v2999 = vunpack.c.l.b16 %v1663
    %v3000 = vunpack.c.h.b16 %v1663
    %v3001 = vunpack.c.l.b16 %v1664
    %v3002 = vunpack.c.h.b16 %v1664
    %v3003 = vunpack.c.l.b16 %v1665
    %v3004 = vunpack.c.h.b16 %v1665
    %v3005 = vunpack.c.l.b16 %v1666
    %v3006 = vunpack.c.h.b16 %v1666
    %v3007 = vunpack.c.l.b16 %v1667
    %v3008 = vunpack.c.h.b16 %v1667
    %v3009 = vunpack.c.l.b16 %v1668
    %v3010 = vunpack.c.h.b16 %v1668
    %v3011 = vunpack.c.l.b16 %v1669
    %v3012 = vunpack.c.h.b16 %v1669
    %v3013 = vunpack.c.l.b16 %v1670
    %v3014 = vunpack.c.h.b16 %v1670
    %v3015 = vunpack.c.l.b16 %v1671
    %v3016 = vunpack.c.h.b16 %v1671
    %v3017 = vunpack.c.l.b16 %v1672
    %v3018 = vunpack.c.h.b16 %v1672
    %v3019 = vunpack.c.l.b16 %v1673
    %v3020 = vunpack.c.h.b16 %v1673
    %v3021 = vunpack.c.l.b16 %v1674
    %v3022 = vunpack.c.h.b16 %v1674
    %v3023 = vunpack.c.l.b16 %v1675
    %v3024 = vunpack.c.h.b16 %v1675
    %v3025 = vunpack.c.l.b16 %v1676
    %v3026 = vunpack.c.h.b16 %v1676
    %v3027 = vunpack.c.l.b16 %v1677
    %v3028 = vunpack.c.h.b16 %v1677
    %v3029 = vunpack.c.l.b16 %v1678
    %v3030 = vunpack.c.h.b16 %v1678
    %v3031 = vunpack.c.l.b16 %v1679
    %v3032 = vunpack.c.h.b16 %v1679
    %v3033 = vunpack.c.l.b16 %v1680
    %v3034 = vunpack.c.h.b16 %v1680
    %v3035 = vunpack.c.l.b16 %v1681
    %v3036 = vunpack.c.h.b16 %v1681
    %v3037 = vunpack.c.l.b16 %v1682
    %v3038 = vunpack.c.h.b16 %v1682
    %v3039 = vunpack.c.l.b16 %v1683
    %v3040 = vunpack.c.h.b16 %v1683
    %v3041 = vunpack.c.l.b16 %v1684
    %v3042 = vunpack.c.h.b16 %v1684
    %v3043 = vunpack.c.l.b16 %v1685
    %v3044 = vunpack.c.h.b16 %v1685
    %v3045 = vunpack.c.l.b16 %v1686
    %v3046 = vunpack.c.h.b16 %v1686
    %v3047 = vunpack.c.l.b16 %v1687
    %v3048 = vunpack.c.h.b16 %v1687
    %v3049 = vunpack.c.l.b16 %v1688
    %v3050 = vunpack.c.h.b16 %v1688
    %v3051 = vunpack.c.l.b16 %v1689
    %v3052 = vunpack.c.h.b16 %v1689
    %v3053 = vunpack.c.l.b16 %v1690
    %v3054 = vunpack.c.h.b16 %v1690
    %v3055 = vunpack.c.l.b16 %v1691
    %v3056 = vunpack.c.h.b16 %v1691
    %v3057 = vunpack.c.l.b16 %v1692
    %v3058 = vunpack.c.h.b16 %v1692
    %v3059 = vunpack.c.l.b16 %v1693
    %v3060 = vunpack.c.h.b16 %v1693
    %v3061 = vunpack.c.l.b16 %v1694
    %v3062 = vunpack.c.h.b16 %v1694
    %v3063 = vunpack.c.l.b16 %v1695
    %v3064 = vunpack.c.h.b16 %v1695
    %v3065 = vunpack.c.l.b16 %v1696
    %v3066 = vunpack.c.h.b16 %v1696
    %v3067 = vunpack.c.l.b16 %v1697
    %v3068 = vunpack.c.h.b16 %v1697
    %v3069 = vunpack.c.l.b16 %v1698
    %v3070 = vunpack.c.h.b16 %v1698
    %v3071 = vunpack.c.l.b16 %v1699
    %v3072 = vunpack.c.h.b16 %v1699
    %v3073 = vunpack.c.l.b16 %v1700
    %v3074 = vunpack.c.h.b16 %v1700
    %v3075 = vunpack.c.l.b16 %v1701
    %v3076 = vunpack.c.h.b16 %v1701
    %v3077 = vunpack.c.l.b16 %v1702
    %v3078 = vunpack.c.h.b16 %v1702
    %v3079 = vunpack.c.l.b16 %v1703
    %v3080 = vunpack.c.h.b16 %v1703
    %v3081 = vunpack.c.l.b16 %v1704
    %v3082 = vunpack.c.h.b16 %v1704
    %v3083 = vunpack.c.l.b16 %v1705
    %v3084 = vunpack.c.h.b16 %v1705
    %v3085 = vunpack.c.l.b16 %v1706
    %v3086 = vunpack.c.h.b16 %v1706
    %v3087 = vunpack.c.l.b16 %v1707
    %v3088 = vunpack.c.h.b16 %v1707
    %v3089 = vunpack.c.l.b16 %v1708
    %v3090 = vunpack.c.h.b16 %v1708
    %v3091 = vunpack.c.l.b16 %v1709
    %v3092 = vunpack.c.h.b16 %v1709
    %v3093 = vunpack.c.l.b16 %v1710
    %v3094 = vunpack.c.h.b16 %v1710
    %v3095 = vunpack.c.l.b16 %v1711
    %v3096 = vunpack.c.h.b16 %v1711
    %v3097 = vunpack.c.l.b16 %v1712
    %v3098 = vunpack.c.h.b16 %v1712
    %v3099 = vunpack.c.l.b16 %v1713
    %v3100 = vunpack.c.h.b16 %v1713
    %v3101 = vunpack.c.l.b16 %v1714
    %v3102 = vunpack.c.h.b16 %v1714
    %v3103 = vunpack.c.l.b16 %v1715
    %v3104 = vunpack.c.h.b16 %v1715
    %v3105 = vunpack.c.l.b16 %v1716
    %v3106 = vunpack.c.h.b16 %v1716
    %v3107 = vunpack.c.l.b16 %v1717
    %v3108 = vunpack.c.h.b16 %v1717
    %v3109 = vunpack.c.l.b16 %v1718
    %v3110 = vunpack.c.h.b16 %v1718
    %v3111 = vunpack.c.l.b16 %v1719
    %v3112 = vunpack.c.h.b16 %v1719
    %v3113 = vunpack.c.l.b16 %v1720
    %v3114 = vunpack.c.h.b16 %v1720
    %v3115 = vunpack.c.l.b16 %v1721
    %v3116 = vunpack.c.h.b16 %v1721
    %v3117 = vunpack.c.l.b16 %v1722
    %v3118 = vunpack.c.h.b16 %v1722
    %v3119 = vunpack.c.l.b16 %v1723
    %v3120 = vunpack.c.h.b16 %v1723
    %v3121 = vunpack.c.l.b16 %v1724
    %v3122 = vunpack.c.h.b16 %v1724
    %v3123 = vunpack.c.l.b16 %v1725
    %v3124 = vunpack.c.h.b16 %v1725
    %v3125 = vunpack.c.l.b16 %v1726
    %v3126 = vunpack.c.h.b16 %v1726
    %v3127 = vunpack.c.l.b16 %v1727
    %v3128 = vunpack.c.h.b16 %v1727
    %v3129 = vunpack.c.l.b16 %v1728
    %v3130 = vunpack.c.h.b16 %v1728
    %v3131 = vunpack.c.l.b16 %v1729
    %v3132 = vunpack.c.h.b16 %v1729
    %v3133 = vunpack.c.l.b16 %v1730
    %v3134 = vunpack.c.h.b16 %v1730
    %v3135 = vunpack.c.l.b16 %v1731
    %v3136 = vunpack.c.h.b16 %v1731
    %v3137 = vunpack.c.l.b16 %v1732
    %v3138 = vunpack.c.h.b16 %v1732
    %v3139 = vunpack.c.l.b16 %v1733
    %v3140 = vunpack.c.h.b16 %v1733
    %v3141 = vunpack.c.l.b16 %v1734
    %v3142 = vunpack.c.h.b16 %v1734
    %v3143 = vunpack.c.l.b16 %v1735
    %v3144 = vunpack.c.h.b16 %v1735
    %v3145 = vunpack.c.l.b16 %v1736
    %v3146 = vunpack.c.h.b16 %v1736
    %v3147 = vunpack.c.l.b16 %v1737
    %v3148 = vunpack.c.h.b16 %v1737
    %v3149 = vunpack.c.l.b16 %v1738
    %v3150 = vunpack.c.h.b16 %v1738
    %v3151 = vunpack.c.l.b16 %v1739
    %v3152 = vunpack.c.h.b16 %v1739
    %v3153 = vunpack.c.l.b16 %v1740
    %v3154 = vunpack.c.h.b16 %v1740
    %v3155 = vunpack.c.l.b16 %v1741
    %v3156 = vunpack.c.h.b16 %v1741
    %v3157 = vunpack.c.l.b16 %v1742
    %v3158 = vunpack.c.h.b16 %v1742
    %v3159 = vunpack.c.l.b16 %v1743
    %v3160 = vunpack.c.h.b16 %v1743
    %v3161 = vunpack.c.l.b16 %v1744
    %v3162 = vunpack.c.h.b16 %v1744
    %v3163 = vunpack.c.l.b16 %v1745
    %v3164 = vunpack.c.h.b16 %v1745
    %v3165 = vunpack.c.l.b16 %v1746
    %v3166 = vunpack.c.h.b16 %v1746
    %v3167 = vunpack.c.l.b16 %v1747
    %v3168 = vunpack.c.h.b16 %v1747
    %v3169 = vunpack.c.l.b16 %v1748
    %v3170 = vunpack.c.h.b16 %v1748
    %v3171 = vunpack.c.l.b16 %v1749
    %v3172 = vunpack.c.h.b16 %v1749
    %v3173 = vunpack.c.l.b16 %v1750
    %v3174 = vunpack.c.h.b16 %v1750
    %v3175 = vunpack.c.l.b16 %v1751
    %v3176 = vunpack.c.h.b16 %v1751
    %v3177 = vunpack.c.l.b16 %v1752
    %v3178 = vunpack.c.h.b16 %v1752
    %v3179 = vunpack.c.l.b16 %v1753
    %v3180 = vunpack.c.h.b16 %v1753
    %v3181 = vunpack.c.l.b16 %v1754
    %v3182 = vunpack.c.h.b16 %v1754
    %v3183 = vunpack.c.l.b16 %v1755
    %v3184 = vunpack.c.h.b16 %v1755
    %v3185 = vunpack.c.l.b16 %v1756
    %v3186 = vunpack.c.h.b16 %v1756
    %v3187 = vunpack.c.l.b16 %v1757
    %v3188 = vunpack.c.h.b16 %v1757
    %v3189 = vunpack.c.l.b16 %v1758
    %v3190 = vunpack.c.h.b16 %v1758
    %v3191 = vunpack.c.l.b16 %v1759
    %v3192 = vunpack.c.h.b16 %v1759
    %v3193 = vunpack.c.l.b16 %v1760
    %v3194 = vunpack.c.h.b16 %v1760
    %v3195 = vunpack.c.l.b16 %v1761
    %v3196 = vunpack.c.h.b16 %v1761
    %v3197 = vunpack.c.l.b16 %v1762
    %v3198 = vunpack.c.h.b16 %v1762
    %v3199 = vunpack.c.l.b16 %v1763
    %v3200 = vunpack.c.h.b16 %v1763
    %v3201 = vunpack.c.l.b16 %v1764
    %v3202 = vunpack.c.h.b16 %v1764
    %v3203 = vunpack.c.l.b16 %v1765
    %v3204 = vunpack.c.h.b16 %v1765
    %v3205 = vunpack.c.l.b16 %v1766
    %v3206 = vunpack.c.h.b16 %v1766
    %v3207 = vunpack.c.l.b16 %v1767
    %v3208 = vunpack.c.h.b16 %v1767
    %v3209 = vunpack.c.l.b16 %v1768
    %v3210 = vunpack.c.h.b16 %v1768
    %v3211 = vunpack.c.l.b16 %v1769
    %v3212 = vunpack.c.h.b16 %v1769
    %v3213 = vunpack.c.l.b16 %v1770
    %v3214 = vunpack.c.h.b16 %v1770
    %v3215 = vunpack.c.l.b16 %v1771
    %v3216 = vunpack.c.h.b16 %v1771
    %v3217 = vunpack.c.l.b16 %v1772
    %v3218 = vunpack.c.h.b16 %v1772
    %v3219 = vunpack.c.l.b16 %v1773
    %v3220 = vunpack.c.h.b16 %v1773
    %v3221 = vunpack.c.l.b16 %v1774
    %v3222 = vunpack.c.h.b16 %v1774
    %v3223 = vunpack.c.l.b16 %v1775
    %v3224 = vunpack.c.h.b16 %v1775
    %v3225 = vunpack.c.l.b16 %v1776
    %v3226 = vunpack.c.h.b16 %v1776
    %v3227 = vunpack.c.l.b16 %v1777
    %v3228 = vunpack.c.h.b16 %v1777
    %v3229 = vunpack.c.l.b16 %v1778
    %v3230 = vunpack.c.h.b16 %v1778
    %v3231 = vunpack.c.l.b16 %v1779
    %v3232 = vunpack.c.h.b16 %v1779
    %v3233 = vunpack.c.l.b16 %v1780
    %v3234 = vunpack.c.h.b16 %v1780
    %v3235 = vunpack.c.l.b16 %v1781
    %v3236 = vunpack.c.h.b16 %v1781
    %v3237 = vunpack.c.l.b16 %v1782
    %v3238 = vunpack.c.h.b16 %v1782
    %v3239 = vunpack.c.l.b16 %v1783
    %v3240 = vunpack.c.h.b16 %v1783
    %v3241 = vunpack.c.l.b16 %v1784
    %v3242 = vunpack.c.h.b16 %v1784
    %v3243 = vunpack.c.l.b16 %v1785
    %v3244 = vunpack.c.h.b16 %v1785
    %v3245 = vunpack.c.l.b16 %v1786
    %v3246 = vunpack.c.h.b16 %v1786
    %v3247 = vunpack.c.l.b16 %v1787
    %v3248 = vunpack.c.h.b16 %v1787
    %v3249 = vunpack.c.l.b16 %v1788
    %v3250 = vunpack.c.h.b16 %v1788
    %v3251 = vunpack.c.l.b16 %v1789
    %v3252 = vunpack.c.h.b16 %v1789
    %v3253 = vunpack.c.l.b16 %v1790
    %v3254 = vunpack.c.h.b16 %v1790
    %v3255 = vunpack.c.l.b16 %v1791
    %v3256 = vunpack.c.h.b16 %v1791
    %v3257 = vunpack.c.l.b16 %v1792
    %v3258 = vunpack.c.h.b16 %v1792
    %v3259 = vunpack.c.l.b16 %v1793
    %v3260 = vunpack.c.h.b16 %v1793
    %v3261 = vunpack.c.l.b16 %v1794
    %v3262 = vunpack.c.h.b16 %v1794
    %v3263 = vunpack.c.l.b16 %v1795
    %v3264 = vunpack.c.h.b16 %v1795
    %v3265 = vunpack.c.l.b16 %v1796
    %v3266 = vunpack.c.h.b16 %v1796
    %v3267 = vunpack.c.l.b16 %v1797
    %v3268 = vunpack.c.h.b16 %v1797
    %v3269 = vunpack.c.l.b16 %v1798
    %v3270 = vunpack.c.h.b16 %v1798
    %v3271 = vunpack.c.l.b16 %v1799
    %v3272 = vunpack.c.h.b16 %v1799
    %v3273 = vunpack.c.l.b16 %v1800
    %v3274 = vunpack.c.h.b16 %v1800
    %v3275 = vunpack.c.l.b16 %v1801
    %v3276 = vunpack.c.h.b16 %v1801
    %v3277 = vunpack.c.l.b16 %v1802
    %v3278 = vunpack.c.h.b16 %v1802
    %v3279 = vunpack.c.l.b16 %v1803
    %v3280 = vunpack.c.h.b16 %v1803
    %v3281 = vunpack.c.l.b16 %v1804
    %v3282 = vunpack.c.h.b16 %v1804
    %v3283 = vunpack.c.l.b16 %v1805
    %v3284 = vunpack.c.h.b16 %v1805
    %v3285 = vunpack.c.l.b16 %v1806
    %v3286 = vunpack.c.h.b16 %v1806
    %v3287 = vunpack.c.l.b16 %v1807
    %v3288 = vunpack.c.h.b16 %v1807
    %v3289 = vunpack.c.l.b16 %v1808
    %v3290 = vunpack.c.h.b16 %v1808
    %v3291 = vunpack.c.l.b16 %v1809
    %v3292 = vunpack.c.h.b16 %v1809
    %v3293 = vunpack.c.l.b16 %v1810
    %v3294 = vunpack.c.h.b16 %v1810
    %v3295 = vunpack.c.l.b16 %v1811
    %v3296 = vunpack.c.h.b16 %v1811
    %v3297 = vunpack.c.l.b16 %v1812
    %v3298 = vunpack.c.h.b16 %v1812
    %v3299 = vunpack.c.l.b16 %v1813
    %v3300 = vunpack.c.h.b16 %v1813
    %v3301 = vunpack.c.l.b16 %v1814
    %v3302 = vunpack.c.h.b16 %v1814
    %v3303 = vunpack.c.l.b16 %v1815
    %v3304 = vunpack.c.h.b16 %v1815
    %v3305 = vunpack.c.l.b16 %v1816
    %v3306 = vunpack.c.h.b16 %v1816
    %v3307 = vunpack.c.l.b16 %v1817
    %v3308 = vunpack.c.h.b16 %v1817
    %v3309 = vunpack.c.l.b16 %v1818
    %v3310 = vunpack.c.h.b16 %v1818
    %v3311 = vunpack.c.l.b16 %v1819
    %v3312 = vunpack.c.h.b16 %v1819
    %v3313 = vunpack.c.l.b16 %v1820
    %v3314 = vunpack.c.h.b16 %v1820
    %v3315 = vunpack.c.l.b16 %v1821
    %v3316 = vunpack.c.h.b16 %v1821
    %v3317 = vunpack.c.l.b16 %v1822
    %v3318 = vunpack.c.h.b16 %v1822
    %v3319 = vunpack.c.l.b16 %v1823
    %v3320 = vunpack.c.h.b16 %v1823
    %v3321 = vunpack.c.l.b16 %v1824
    %v3322 = vunpack.c.h.b16 %v1824
    %v3323 = vunpack.c.l.b16 %v1825
    %v3324 = vunpack.c.h.b16 %v1825
    %v3325 = vunpack.c.l.b16 %v1826
    %v3326 = vunpack.c.h.b16 %v1826
    %v3327 = vunpack.c.l.b16 %v1827
    %v3328 = vunpack.c.h.b16 %v1827
    %v3329 = vunpack.c.l.b16 %v1828
    %v3330 = vunpack.c.h.b16 %v1828
    %v3331 = vunpack.c.l.b16 %v1829
    %v3332 = vunpack.c.h.b16 %v1829
    %v3333 = vunpack.c.l.b16 %v1830
    %v3334 = vunpack.c.h.b16 %v1830
    %v3335 = vunpack.c.l.b16 %v1831
    %v3336 = vunpack.c.h.b16 %v1831
    %v3337 = vunpack.c.l.b16 %v1832
    %v3338 = vunpack.c.h.b16 %v1832
    %v3339 = vunpack.c.l.b16 %v1833
    %v3340 = vunpack.c.h.b16 %v1833
    %v3341 = vunpack.c.l.b16 %v1834
    %v3342 = vunpack.c.h.b16 %v1834
    %v3343 = vunpack.c.l.b16 %v1835
    %v3344 = vunpack.c.h.b16 %v1835
    %v3345 = vunpack.c.l.b16 %v1836
    %v3346 = vunpack.c.h.b16 %v1836
    %v3347 = vunpack.c.l.b16 %v1837
    %v3348 = vunpack.c.h.b16 %v1837
    %v3349 = vunpack.c.l.b16 %v1838
    %v3350 = vunpack.c.h.b16 %v1838
    %v3351 = vunpack.c.l.b16 %v1839
    %v3352 = vunpack.c.h.b16 %v1839
    %v3353 = vunpack.c.l.b16 %v1840
    %v3354 = vunpack.c.h.b16 %v1840
    %v3355 = vunpack.c.l.b16 %v1841
    %v3356 = vunpack.c.h.b16 %v1841
    %v3357 = vunpack.c.l.b16 %v1842
    %v3358 = vunpack.c.h.b16 %v1842
    %v3359 = vunpack.c.l.b16 %v1843
    %v3360 = vunpack.c.h.b16 %v1843
    %v3361 = vunpack.c.l.b16 %v1844
    %v3362 = vunpack.c.h.b16 %v1844
    %v3363 = vunpack.c.l.b16 %v1845
    %v3364 = vunpack.c.h.b16 %v1845
    %v3365 = vunpack.c.l.b16 %v1846
    %v3366 = vunpack.c.h.b16 %v1846
    %v3367 = vunpack.c.l.b16 %v1847
    %v3368 = vunpack.c.h.b16 %v1847
    %v3369 = vunpack.c.l.b16 %v1848
    %v3370 = vunpack.c.h.b16 %v1848
    %v3371 = vunpack.c.l.b16 %v1849
    %v3372 = vunpack.c.h.b16 %v1849
    %v3373 = vunpack.c.l.b16 %v1850
    %v3374 = vunpack.c.h.b16 %v1850
    %v3375 = vunpack.c.l.b16 %v1851
    %v3376 = vunpack.c.h.b16 %v1851
    %v3377 = vunpack.c.l.b16 %v1852
    %v3378 = vunpack.c.h.b16 %v1852
    %v3379 = vunpack.c.l.b16 %v1853
    %v3380 = vunpack.c.h.b16 %v1853
    %v3381 = vunpack.c.l.b16 %v1854
    %v3382 = vunpack.c.h.b16 %v1854
    %v3383 = vunpack.c.l.b16 %v1855
    %v3384 = vunpack.c.h.b16 %v1855
    %v3385 = vunpack.c.l.b16 %v1856
    %v3386 = vunpack.c.h.b16 %v1856
    %v3387 = vunpack.c.l.b16 %v1857
    %v3388 = vunpack.c.h.b16 %v1857
    %v3389 = vunpack.c.l.b16 %v1858
    %v3390 = vunpack.c.h.b16 %v1858
    %v3391 = vunpack.c.l.b16 %v1859
    %v3392 = vunpack.c.h.b16 %v1859
    %v3393 = vunpack.c.l.b16 %v1860
    %v3394 = vunpack.c.h.b16 %v1860
    %v3395 = vunpack.c.l.b16 %v1861
    %v3396 = vunpack.c.h.b16 %v1861
    %v3397 = vunpack.c.l.b16 %v1862
    %v3398 = vunpack.c.h.b16 %v1862
    %v3399 = vunpack.c.l.b16 %v1863
    %v3400 = vunpack.c.h.b16 %v1863
    %v3401 = vunpack.c.l.b16 %v1864
    %v3402 = vunpack.c.h.b16 %v1864
    %v3403 = vunpack.c.l.b16 %v1865
    %v3404 = vunpack.c.h.b16 %v1865
    %v3405 = vunpack.c.l.b16 %v1866
    %v3406 = vunpack.c.h.b16 %v1866
    %v3407 = vunpack.c.l.b16 %v1867
    %v3408 = vunpack.c.h.b16 %v1867
    %v3409 = vunpack.c.l.b16 %v1868
    %v3410 = vunpack.c.h.b16 %v1868
    %v3411 = vunpack.c.l.b16 %v1869
    %v3412 = vunpack.c.h.b16 %v1869
    %v3413 = vunpack.c.l.b16 %v1870
    %v3414 = vunpack.c.h.b16 %v1870
    %v3415 = vunpack.c.l.b16 %v1871
    %v3416 = vunpack.c.h.b16 %v1871
    %v3417 = vunpack.c.l.b16 %v1872
    %v3418 = vunpack.c.h.b16 %v1872
    %v3419 = vunpack.c.l.b16 %v1873
    %v3420 = vunpack.c.h.b16 %v1873
    %v3421 = vunpack.c.l.b16 %v1874
    %v3422 = vunpack.c.h.b16 %v1874
    %v3423 = vunpack.c.l.b16 %v1875
    %v3424 = vunpack.c.h.b16 %v1875
    %v3425 = vunpack.c.l.b16 %v1876
    %v3426 = vunpack.c.h.b16 %v1876
    %v3427 = vunpack.c.l.b16 %v1877
    %v3428 = vunpack.c.h.b16 %v1877
    %v3429 = vunpack.c.l.b16 %v1878
    %v3430 = vunpack.c.h.b16 %v1878
    %v3431 = vunpack.c.l.b16 %v1879
    %v3432 = vunpack.c.h.b16 %v1879
    %v3433 = vunpack.c.l.b16 %v1880
    %v3434 = vunpack.c.h.b16 %v1880
    %v3435 = vunpack.c.l.b16 %v1881
    %v3436 = vunpack.c.h.b16 %v1881
    %v3437 = vunpack.c.l.b16 %v1882
    %v3438 = vunpack.c.h.b16 %v1882
    %v3439 = vunpack.c.l.b16 %v1883
    %v3440 = vunpack.c.h.b16 %v1883
    %v3441 = vunpack.c.l.b16 %v1884
    %v3442 = vunpack.c.h.b16 %v1884
    %v3443 = vunpack.c.l.b16 %v1885
    %v3444 = vunpack.c.h.b16 %v1885
    %v3445 = vunpack.c.l.b16 %v1886
    %v3446 = vunpack.c.h.b16 %v1886
    %v3447 = vunpack.c.l.b16 %v1887
    %v3448 = vunpack.c.h.b16 %v1887
    %v3449 = vunpack.c.l.b16 %v1888
    %v3450 = vunpack.c.h.b16 %v1888
    %v3451 = vunpack.c.l.b16 %v1889
    %v3452 = vunpack.c.h.b16 %v1889
    %v3453 = vunpack.c.l.b16 %v1890
    %v3454 = vunpack.c.h.b16 %v1890
    %v3455 = vunpack.c.l.b16 %v1891
    %v3456 = vunpack.c.h.b16 %v1891
    %v3457 = vunpack.c.l.b16 %v1892
    %v3458 = vunpack.c.h.b16 %v1892
    %v3459 = vunpack.c.l.b16 %v1893
    %v3460 = vunpack.c.h.b16 %v1893
    %v3461 = vunpack.c.l.b16 %v1894
    %v3462 = vunpack.c.h.b16 %v1894
    %v3463 = vunpack.c.l.b16 %v1895
    %v3464 = vunpack.c.h.b16 %v1895
    %v3465 = vunpack.c.l.b16 %v1896
    %v3466 = vunpack.c.h.b16 %v1896
    %v3467 = vunpack.c.l.b16 %v1897
    %v3468 = vunpack.c.h.b16 %v1897
    %v3469 = vunpack.c.l.b16 %v1898
    %v3470 = vunpack.c.h.b16 %v1898
    %v3471 = vunpack.c.l.b16 %v1899
    %v3472 = vunpack.c.h.b16 %v1899
    %v3473 = vunpack.c.l.b16 %v1900
    %v3474 = vunpack.c.h.b16 %v1900
    %v3475 = vunpack.c.l.b16 %v1901
    %v3476 = vunpack.c.h.b16 %v1901
    %v3477 = vunpack.c.l.b16 %v1902
    %v3478 = vunpack.c.h.b16 %v1902
    %v3479 = vunpack.c.l.b16 %v1903
    %v3480 = vunpack.c.h.b16 %v1903
    %v3481 = vunpack.c.l.b16 %v1904
    %v3482 = vunpack.c.h.b16 %v1904
    %v3483 = vunpack.c.l.b16 %v1905
    %v3484 = vunpack.c.h.b16 %v1905
    %v3485 = vunpack.c.l.b16 %v1906
    %v3486 = vunpack.c.h.b16 %v1906
    %v3487 = vunpack.c.l.b16 %v1907
    %v3488 = vunpack.c.h.b16 %v1907
    %v3489 = vunpack.c.l.b16 %v1908
    %v3490 = vunpack.c.h.b16 %v1908
    %v3491 = vunpack.c.l.b16 %v1909
    %v3492 = vunpack.c.h.b16 %v1909
    %v3493 = vunpack.c.l.b16 %v1910
    %v3494 = vunpack.c.h.b16 %v1910
    %v3495 = vunpack.c.l.b16 %v1911
    %v3496 = vunpack.c.h.b16 %v1911
    %v3497 = vunpack.c.l.b16 %v1912
    %v3498 = vunpack.c.h.b16 %v1912
    %v3499 = vunpack.c.l.b16 %v1913
    %v3500 = vunpack.c.h.b16 %v1913
    %v3501 = vunpack.c.l.b16 %v1914
    %v3502 = vunpack.c.h.b16 %v1914
    %v3503 = vunpack.c.l.b16 %v1915
    %v3504 = vunpack.c.h.b16 %v1915
    %v3505 = vunpack.c.l.b16 %v1916
    %v3506 = vunpack.c.h.b16 %v1916
    %v3507 = vunpack.c.l.b16 %v1917
    %v3508 = vunpack.c.h.b16 %v1917
    %v3509 = vunpack.c.l.b16 %v1918
    %v3510 = vunpack.c.h.b16 %v1918
    %v3511 = vunpack.c.l.b16 %v1919
    %v3512 = vunpack.c.h.b16 %v1919
    %v3513 = vunpack.c.l.b16 %v1920
    %v3514 = vunpack.c.h.b16 %v1920
    %v3515 = vunpack.c.l.b16 %v1921
    %v3516 = vunpack.c.h.b16 %v1921
    %v3517 = vunpack.c.l.b16 %v1922
    %v3518 = vunpack.c.h.b16 %v1922
    %v3519 = vunpack.c.l.b16 %v1923
    %v3520 = vunpack.c.h.b16 %v1923
    %v3521 = vunpack.c.l.b16 %v1924
    %v3522 = vunpack.c.h.b16 %v1924
    %v3523 = vunpack.c.l.b16 %v1925
    %v3524 = vunpack.c.h.b16 %v1925
    %v3525 = vunpack.c.l.b16 %v1926
    %v3526 = vunpack.c.h.b16 %v1926
    %v3527 = vunpack.c.l.b16 %v1927
    %v3528 = vunpack.c.h.b16 %v1927
    %v3529 = vunpack.c.l.b16 %v1928
    %v3530 = vunpack.c.h.b16 %v1928
    %v3531 = vunpack.c.l.b16 %v1929
    %v3532 = vunpack.c.h.b16 %v1929
    %v3533 = vunpack.c.l.b16 %v1930
    %v3534 = vunpack.c.h.b16 %v1930
    %v3535 = vunpack.c.l.b16 %v1931
    %v3536 = vunpack.c.h.b16 %v1931
    %v3537 = vunpack.c.l.b16 %v1932
    %v3538 = vunpack.c.h.b16 %v1932
    %v3539 = vunpack.c.l.b16 %v1933
    %v3540 = vunpack.c.h.b16 %v1933
    %v3541 = vunpack.c.l.b16 %v1934
    %v3542 = vunpack.c.h.b16 %v1934
    %v3543 = vunpack.c.l.b16 %v1935
    %v3544 = vunpack.c.h.b16 %v1935
    %v3545 = vunpack.c.l.b16 %v1936
    %v3546 = vunpack.c.h.b16 %v1936
    %v3547 = vunpack.c.l.b16 %v1937
    %v3548 = vunpack.c.h.b16 %v1937
    %v3549 = vunpack.c.l.b16 %v1938
    %v3550 = vunpack.c.h.b16 %v1938
    %v3551 = vunpack.c.l.b16 %v1939
    %v3552 = vunpack.c.h.b16 %v1939
    %v3553 = vunpack.c.l.b16 %v1940
    %v3554 = vunpack.c.h.b16 %v1940
    %v3555 = vunpack.c.l.b16 %v1941
    %v3556 = vunpack.c.h.b16 %v1941
    %v3557 = vunpack.c.l.b16 %v1942
    %v3558 = vunpack.c.h.b16 %v1942
    %v3559 = vunpack.c.l.b16 %v1943
    %v3560 = vunpack.c.h.b16 %v1943
    %v3561 = vunpack.c.l.b16 %v1944
    %v3562 = vunpack.c.h.b16 %v1944
    %v3563 = vunpack.c.l.b16 %v1945
    %v3564 = vunpack.c.h.b16 %v1945
    %v3565 = vunpack.c.l.b16 %v1946
    %v3566 = vunpack.c.h.b16 %v1946
    %v3567 = vunpack.c.l.b16 %v1947
    %v3568 = vunpack.c.h.b16 %v1947
    %v3569 = vunpack.c.l.b16 %v1948
    %v3570 = vunpack.c.h.b16 %v1948
    %v3571 = vunpack.c.l.b16 %v1949
    %v3572 = vunpack.c.h.b16 %v1949
    %v3573 = vunpack.c.l.b16 %v1950
    %v3574 = vunpack.c.h.b16 %v1950
    %v3575 = vunpack.c.l.b16 %v1951
    %v3576 = vunpack.c.h.b16 %v1951
    %v3577 = vunpack.c.l.b16 %v1952
    %v3578 = vunpack.c.h.b16 %v1952
    %v3579 = vunpack.c.l.b16 %v1953
    %v3580 = vunpack.c.h.b16 %v1953
    %v3581 = vunpack.c.l.b16 %v1954
    %v3582 = vunpack.c.h.b16 %v1954
    %v3583 = vunpack.c.l.b16 %v1955
    %v3584 = vunpack.c.h.b16 %v1955
    %v3585 = vunpack.c.l.b16 %v1956
    %v3586 = vunpack.c.h.b16 %v1956
    %v3587 = vunpack.c.l.b16 %v1957
    %v3588 = vunpack.c.h.b16 %v1957
    %v3589 = vunpack.c.l.b16 %v1958
    %v3590 = vunpack.c.h.b16 %v1958
    %v3591 = vunpack.c.l.b16 %v1959
    %v3592 = vunpack.c.h.b16 %v1959
    %v3593 = vunpack.c.l.b16 %v1960
    %v3594 = vunpack.c.h.b16 %v1960
    %v3595 = vunpack.c.l.b16 %v1961
    %v3596 = vunpack.c.h.b16 %v1961
    %v3597 = vunpack.c.l.b16 %v1962
    %v3598 = vunpack.c.h.b16 %v1962
    %v3599 = vunpack.c.l.b16 %v1963
    %v3600 = vunpack.c.h.b16 %v1963
    %v3601 = vunpack.c.l.b16 %v1964
    %v3602 = vunpack.c.h.b16 %v1964
    %v3603 = vunpack.c.l.b16 %v1965
    %v3604 = vunpack.c.h.b16 %v1965
    %v3605 = vunpack.c.l.b16 %v1966
    %v3606 = vunpack.c.h.b16 %v1966
    %v3607 = vunpack.c.l.b16 %v1967
    %v3608 = vunpack.c.h.b16 %v1967
    %v3609 = vunpack.c.l.b16 %v1968
    %v3610 = vunpack.c.h.b16 %v1968
    %v3611 = vunpack.c.l.b16 %v1969
    %v3612 = vunpack.c.h.b16 %v1969
    %v3613 = vunpack.c.l.b16 %v1970
    %v3614 = vunpack.c.h.b16 %v1970
    %v3615 = vunpack.c.l.b16 %v1971
    %v3616 = vunpack.c.h.b16 %v1971
    %v3617 = vunpack.c.l.b16 %v1972
    %v3618 = vunpack.c.h.b16 %v1972
    %v3619 = vunpack.c.l.b16 %v1973
    %v3620 = vunpack.c.h.b16 %v1973
    %v3621 = vunpack.c.l.b16 %v1974
    %v3622 = vunpack.c.h.b16 %v1974
    %v3623 = vunpack.c.l.b16 %v1975
    %v3624 = vunpack.c.h.b16 %v1975
    %v3625 = vunpack.c.l.b16 %v1976
    %v3626 = vunpack.c.h.b16 %v1976
    %v3627 = vunpack.c.l.b16 %v1977
    %v3628 = vunpack.c.h.b16 %v1977
    %v3629 = vunpack.c.l.b16 %v1978
    %v3630 = vunpack.c.h.b16 %v1978
    %v3631 = vunpack.c.l.b16 %v1979
    %v3632 = vunpack.c.h.b16 %v1979
    %v3633 = vunpack.c.l.b16 %v1980
    %v3634 = vunpack.c.h.b16 %v1980
    %v3635 = vunpack.c.l.b16 %v1981
    %v3636 = vunpack.c.h.b16 %v1981
    %v3637 = vunpack.c.l.b16 %v1982
    %v3638 = vunpack.c.h.b16 %v1982
    %v3639 = vunpack.c.l.b16 %v1983
    %v3640 = vunpack.c.h.b16 %v1983
    %v3641 = vunpack.c.l.b16 %v1984
    %v3642 = vunpack.c.h.b16 %v1984
    %v3643 = vunpack.c.l.b16 %v1985
    %v3644 = vunpack.c.h.b16 %v1985
    %v3645 = vunpack.c.l.b16 %v1986
    %v3646 = vunpack.c.h.b16 %v1986
    %v3647 = vunpack.c.l.b16 %v1987
    %v3648 = vunpack.c.h.b16 %v1987
    %v3649 = vunpack.c.l.b16 %v1988
    %v3650 = vunpack.c.h.b16 %v1988
    %v3651 = vunpack.c.l.b16 %v1989
    %v3652 = vunpack.c.h.b16 %v1989
    %v3653 = vunpack.c.l.b16 %v1990
    %v3654 = vunpack.c.h.b16 %v1990
    %v3655 = vunpack.c.l.b16 %v1991
    %v3656 = vunpack.c.h.b16 %v1991
    %v3657 = vunpack.c.l.b16 %v1992
    %v3658 = vunpack.c.h.b16 %v1992
    %v3659 = vunpack.c.l.b16 %v1993
    %v3660 = vunpack.c.h.b16 %v1993
    %v3661 = vunpack.c.l.b16 %v1994
    %v3662 = vunpack.c.h.b16 %v1994
    %v3663 = vunpack.c.l.b16 %v1995
    %v3664 = vunpack.c.h.b16 %v1995
    %v3665 = vunpack.c.l.b16 %v1996
    %v3666 = vunpack.c.h.b16 %v1996
    %v3667 = vunpack.c.l.b16 %v1997
    %v3668 = vunpack.c.h.b16 %v1997
    %v3669 = vunpack.c.l.b16 %v1998
    %v3670 = vunpack.c.h.b16 %v1998
    %v3671 = vunpack.c.l.b16 %v1999
    %v3672 = vunpack.c.h.b16 %v1999
    %v3673 = vunpack.c.l.b16 %v2000
    %v3674 = vunpack.c.h.b16 %v2000
    %v3675 = vunpack.c.l.b16 %v2001
    %v3676 = vunpack.c.h.b16 %v2001
    %v3677 = vunpack.c.l.b16 %v2002
    %v3678 = vunpack.c.h.b16 %v2002
    %v3679 = vunpack.c.l.b16 %v2003
    %v3680 = vunpack.c.h.b16 %v2003
    %v3681 = vunpack.c.l.b16 %v2004
    %v3682 = vunpack.c.h.b16 %v2004
    %v3683 = vunpack.c.l.b16 %v2005
    %v3684 = vunpack.c.h.b16 %v2005
    %v3685 = vunpack.c.l.b16 %v2006
    %v3686 = vunpack.c.h.b16 %v2006
    %v3687 = vunpack.c.l.b16 %v2007
    %v3688 = vunpack.c.h.b16 %v2007
    %v3689 = vunpack.c.l.b16 %v2008
    %v3690 = vunpack.c.h.b16 %v2008
    %v3691 = vunpack.c.l.b16 %v2009
    %v3692 = vunpack.c.h.b16 %v2009
    %v3693 = vunpack.c.l.b16 %v2010
    %v3694 = vunpack.c.h.b16 %v2010
    %v3695 = vunpack.c.l.b16 %v2011
    %v3696 = vunpack.c.h.b16 %v2011
    %v3697 = vunpack.c.l.b16 %v2012
    %v3698 = vunpack.c.h.b16 %v2012
    %v3699 = vunpack.c.l.b16 %v2013
    %v3700 = vunpack.c.h.b16 %v2013
    %v3701 = vunpack.c.l.b16 %v2014
    %v3702 = vunpack.c.h.b16 %v2014
    %v3703 = vunpack.c.l.b16 %v2015
    %v3704 = vunpack.c.h.b16 %v2015
    %v3705 = vunpack.c.l.b16 %v2016
    %v3706 = vunpack.c.h.b16 %v2016
    %v3707 = vunpack.c.l.b16 %v2017
    %v3708 = vunpack.c.h.b16 %v2017
    %v3709 = vunpack.c.l.b16 %v2018
    %v3710 = vunpack.c.h.b16 %v2018
    %v3711 = vunpack.c.l.b16 %v2019
    %v3712 = vunpack.c.h.b16 %v2019
    %v3713 = vunpack.c.l.b16 %v2020
    %v3714 = vunpack.c.h.b16 %v2020
    %v3715 = vunpack.c.l.b16 %v2021
    %v3716 = vunpack.c.h.b16 %v2021
    %v3717 = vunpack.c.l.b16 %v2022
    %v3718 = vunpack.c.h.b16 %v2022
    %v3719 = vunpack.c.l.b16 %v2023
    %v3720 = vunpack.c.h.b16 %v2023
    %v3721 = vunpack.c.l.b16 %v2024
    %v3722 = vunpack.c.h.b16 %v2024
    %v3723 = vunpack.c.l.b16 %v2025
    %v3724 = vunpack.c.h.b16 %v2025
    %v3725 = vunpack.c.l.b16 %v2026
    %v3726 = vunpack.c.h.b16 %v2026
    %v3727 = vunpack.c.l.b16 %v2027
    %v3728 = vunpack.c.h.b16 %v2027
    %v3729 = vunpack.c.l.b16 %v2028
    %v3730 = vunpack.c.h.b16 %v2028
    %v3731 = vunpack.c.l.b16 %v2029
    %v3732 = vunpack.c.h.b16 %v2029
    %v3733 = vunpack.c.l.b16 %v2030
    %v3734 = vunpack.c.h.b16 %v2030
    %v3735 = vpack.c.b16 %v2743, %v2711
    %v3736 = vpack.c.b16 %v2744, %v2712
    %v3737 = vpack.c.b16 %v2745, %v2713
    %v3738 = vpack.c.b16 %v2746, %v2714
    %v3739 = vpack.c.b16 %v2747, %v2715
    %v3740 = vpack.c.b16 %v2748, %v2716
    %v3741 = vpack.c.b16 %v2749, %v2717
    %v3742 = vpack.c.b16 %v2750, %v2718
    %v3743 = vpack.c.b16 %v2751, %v2719
    %v3744 = vpack.c.b16 %v2752, %v2720
    %v3745 = vpack.c.b16 %v2753, %v2721
    %v3746 = vpack.c.b16 %v2754, %v2722
    %v3747 = vpack.c.b16 %v2755, %v2723
    %v3748 = vpack.c.b16 %v2756, %v2724
    %v3749 = vpack.c.b16 %v2757, %v2725
    %v3750 = vpack.c.b16 %v2758, %v2726
    %v3751 = vpack.c.b16 %v2759, %v2727
    %v3752 = vpack.c.b16 %v2760, %v2728
    %v3753 = vpack.c.b16 %v2761, %v2729
    %v3754 = vpack.c.b16 %v2762, %v2730
    %v3755 = vpack.c.b16 %v2763, %v2731
    %v3756 = vpack.c.b16 %v2764, %v2732
    %v3757 = vpack.c.b16 %v2765, %v2733
    %v3758 = vpack.c.b16 %v2766, %v2734
    %v3759 = vpack.c.b16 %v2767, %v2735
    %v3760 = vpack.c.b16 %v2768, %v2736
    %v3761 = vpack.c.b16 %v2769, %v2737
    %v3762 = vpack.c.b16 %v2770, %v2738
    %v3763 = vpack.c.b16 %v2771, %v2739
    %v3764 = vpack.c.b16 %v2772, %v2740
    %v3765 = vpack.c.b16 %v2773, %v2741
    %v3766 = vpack.c.b16 %v2774, %v2742
    %v3767 = vpack.c.b16 %v2807, %v2775
    %v3768 = vpack.c.b16 %v2808, %v2776
    %v3769 = vpack.c.b16 %v2809, %v2777
    %v3770 = vpack.c.b16 %v2810, %v2778
    %v3771 = vpack.c.b16 %v2811, %v2779
    %v3772 = vpack.c.b16 %v2812, %v2780
    %v3773 = vpack.c.b16 %v2813, %v2781
    %v3774 = vpack.c.b16 %v2814, %v2782
    %v3775 = vpack.c.b16 %v2815, %v2783
    %v3776 = vpack.c.b16 %v2816, %v2784
    %v3777 = vpack.c.b16 %v2817, %v2785
    %v3778 = vpack.c.b16 %v2818, %v2786
    %v3779 = vpack.c.b16 %v2819, %v2787
    %v3780 = vpack.c.b16 %v2820, %v2788
    %v3781 = vpack.c.b16 %v2821, %v2789
    %v3782 = vpack.c.b16 %v2822, %v2790
    %v3783 = vpack.c.b16 %v2823, %v2791
    %v3784 = vpack.c.b16 %v2824, %v2792
    %v3785 = vpack.c.b16 %v2825, %v2793
    %v3786 = vpack.c.b16 %v2826, %v2794
    %v3787 = vpack.c.b16 %v2827, %v2795
    %v3788 = vpack.c.b16 %v2828, %v2796
    %v3789 = vpack.c.b16 %v2829, %v2797
    %v3790 = vpack.c.b16 %v2830, %v2798
    %v3791 = vpack.c.b16 %v2831, %v2799
    %v3792 = vpack.c.b16 %v2832, %v2800
    %v3793 = vpack.c.b16 %v2833, %v2801
    %v3794 = vpack.c.b16 %v2834, %v2802
    %v3795 = vpack.c.b16 %v2835, %v2803
    %v3796 = vpack.c.b16 %v2836, %v2804
    %v3797 = vpack.c.b16 %v2837, %v2805
    %v3798 = vpack.c.b16 %v2838, %v2806
    %v3799 = vpack.c.b16 %v2871, %v2839
    %v3800 = vpack.c.b16 %v2872, %v2840
    %v3801 = vpack.c.b16 %v2873, %v2841
    %v3802 = vpack.c.b16 %v2874, %v2842
    %v3803 = vpack.c.b16 %v2875, %v2843
    %v3804 = vpack.c.b16 %v2876, %v2844
    %v3805 = vpack.c.b16 %v2877, %v2845
    %v3806 = vpack.c.b16 %v2878, %v2846
    %v3807 = vpack.c.b16 %v2879, %v2847
    %v3808 = vpack.c.b16 %v2880, %v2848
    %v3809 = vpack.c.b16 %v2881, %v2849
    %v3810 = vpack.c.b16 %v2882, %v2850
    %v3811 = vpack.c.b16 %v2883, %v2851
    %v3812 = vpack.c.b16 %v2884, %v2852
    %v3813 = vpack.c.b16 %v2885, %v2853
    %v3814 = vpack.c.b16 %v2886, %v2854
    %v3815 = vpack.c.b16 %v2887, %v2855
    %v3816 = vpack.c.b16 %v2888, %v2856
    %v3817 = vpack.c.b16 %v2889, %v2857
    %v3818 = vpack.c.b16 %v2890, %v2858
    %v3819 = vpack.c.b16 %v2891, %v2859
    %v3820 = vpack.c.b16 %v2892, %v2860
    %v3821 = vpack.c.b16 %v2893, %v2861
    %v3822 = vpack.c.b16 %v2894, %v2862
    %v3823 = vpack.c.b16 %v2895, %v2863
    %v3824 = vpack.c.b16 %v2896, %v2864
    %v3825 = vpack.c.b16 %v2897, %v2865
    %v3826 = vpack.c.b16 %v2898, %v2866
    %v3827 = vpack.c.b16 %v2899, %v2867
    %v3828 = vpack.c.b16 %v2900, %v2868
    %v3829 = vpack.c.b16 %v2901, %v2869
    %v3830 = vpack.c.b16 %v2902, %v2870
    %v3831 = vpack.c.b16 %v2935, %v2903
    %v3832 = vpack.c.b16 %v2936, %v2904
    %v3833 = vpack.c.b16 %v2937, %v2905
    %v3834 = vpack.c.b16 %v2938, %v2906
    %v3835 = vpack.c.b16 %v2939, %v2907
    %v3836 = vpack.c.b16 %v2940, %v2908
    %v3837 = vpack.c.b16 %v2941, %v2909
    %v3838 = vpack.c.b16 %v2942, %v2910
    %v3839 = vpack.c.b16 %v2943, %v2911
    %v3840 = vpack.c.b16 %v2944, %v2912
    %v3841 = vpack.c.b16 %v2945, %v2913
    %v3842 = vpack.c.b16 %v2946, %v2914
    %v3843 = vpack.c.b16 %v2947, %v2915
    %v3844 = vpack.c.b16 %v2948, %v2916
    %v3845 = vpack.c.b16 %v2949, %v2917
    %v3846 = vpack.c.b16 %v2950, %v2918
    %v3847 = vpack.c.b16 %v2951, %v2919
    %v3848 = vpack.c.b16 %v2952, %v2920
    %v3849 = vpack.c.b16 %v2953, %v2921
    %v3850 = vpack.c.b16 %v2954, %v2922
    %v3851 = vpack.c.b16 %v2955, %v2923
    %v3852 = vpack.c.b16 %v2956, %v2924
    %v3853 = vpack.c.b16 %v2957, %v2925
    %v3854 = vpack.c.b16 %v2958, %v2926
    %v3855 = vpack.c.b16 %v2959, %v2927
    %v3856 = vpack.c.b16 %v2960, %v2928
    %v3857 = vpack.c.b16 %v2961, %v2929
    %v3858 = vpack.c.b16 %v2962, %v2930
    %v3859 = vpack.c.b16 %v2963, %v2931
    %v3860 = vpack.c.b16 %v2964, %v2932
    %v3861 = vpack.c.b16 %v2965, %v2933
    %v3862 = vpack.c.b16 %v2966, %v2934
    %v3863 = vpack.c.b16 %v2999, %v2967
    %v3864 = vpack.c.b16 %v3000, %v2968
    %v3865 = vpack.c.b16 %v3001, %v2969
    %v3866 = vpack.c.b16 %v3002, %v2970
    %v3867 = vpack.c.b16 %v3003, %v2971
    %v3868 = vpack.c.b16 %v3004, %v2972
    %v3869 = vpack.c.b16 %v3005, %v2973
    %v3870 = vpack.c.b16 %v3006, %v2974
    %v3871 = vpack.c.b16 %v3007, %v2975
    %v3872 = vpack.c.b16 %v3008, %v2976
    %v3873 = vpack.c.b16 %v3009, %v2977
    %v3874 = vpack.c.b16 %v3010, %v2978
    %v3875 = vpack.c.b16 %v3011, %v2979
    %v3876 = vpack.c.b16 %v3012, %v2980
    %v3877 = vpack.c.b16 %v3013, %v2981
    %v3878 = vpack.c.b16 %v3014, %v2982
    %v3879 = vpack.c.b16 %v3015, %v2983
    %v3880 = vpack.c.b16 %v3016, %v2984
    %v3881 = vpack.c.b16 %v3017, %v2985
    %v3882 = vpack.c.b16 %v3018, %v2986
    %v3883 = vpack.c.b16 %v3019, %v2987
    %v3884 = vpack.c.b16 %v3020, %v2988
    %v3885 = vpack.c.b16 %v3021, %v2989
    %v3886 = vpack.c.b16 %v3022, %v2990
    %v3887 = vpack.c.b16 %v3023, %v2991
    %v3888 = vpack.c.b16 %v3024, %v2992
    %v3889 = vpack.c.b16 %v3025, %v2993
    %v3890 = vpack.c.b16 %v3026, %v2994
    %v3891 = vpack.c.b16 %v3027, %v2995
    %v3892 = vpack.c.b16 %v3028, %v2996
    %v3893 = vpack.c.b16 %v3029, %v2997
    %v3894 = vpack.c.b16 %v3030, %v2998
    %v3895 = vpack.c.b16 %v3063, %v3031
    %v3896 = vpack.c.b16 %v3064, %v3032
    %v3897 = vpack.c.b16 %v3065, %v3033
    %v3898 = vpack.c.b16 %v3066, %v3034
    %v3899 = vpack.c.b16 %v3067, %v3035
    %v3900 = vpack.c.b16 %v3068, %v3036
    %v3901 = vpack.c.b16 %v3069, %v3037
    %v3902 = vpack.c.b16 %v3070, %v3038
    %v3903 = vpack.c.b16 %v3071, %v3039
    %v3904 = vpack.c.b16 %v3072, %v3040
    %v3905 = vpack.c.b16 %v3073, %v3041
    %v3906 = vpack.c.b16 %v3074, %v3042
    %v3907 = vpack.c.b16 %v3075, %v3043
    %v3908 = vpack.c.b16 %v3076, %v3044
    %v3909 = vpack.c.b16 %v3077, %v3045
    %v3910 = vpack.c.b16 %v3078, %v3046
    %v3911 = vpack.c.b16 %v3079, %v3047
    %v3912 = vpack.c.b16 %v3080, %v3048
    %v3913 = vpack.c.b16 %v3081, %v3049
    %v3914 = vpack.c.b16 %v3082, %v3050
    %v3915 = vpack.c.b16 %v3083, %v3051
    %v3916 = vpack.c.b16 %v3084, %v3052
    %v3917 = vpack.c.b16 %v3085, %v3053
    %v3918 = vpack.c.b16 %v3086, %v3054
    %v3919 = vpack.c.b16 %v3087, %v3055
    %v3920 = vpack.c.b16 %v3088, %v3056
    %v3921 = vpack.c.b16 %v3089, %v3057
    %v3922 = vpack.c.b16 %v3090, %v3058
    %v3923 = vpack.c.b16 %v3091, %v3059
    %v3924 = vpack.c.b16 %v3092, %v3060
    %v3925 = vpack.c.b16 %v3093, %v3061
    %v3926 = vpack.c.b16 %v3094, %v3062
    %v3927 = vpack.c.b16 %v3127, %v3095
    %v3928 = vpack.c.b16 %v3128, %v3096
    %v3929 = vpack.c.b16 %v3129, %v3097
    %v3930 = vpack.c.b16 %v3130, %v3098
    %v3931 = vpack.c.b16 %v3131, %v3099
    %v3932 = vpack.c.b16 %v3132, %v3100
    %v3933 = vpack.c.b16 %v3133, %v3101
    %v3934 = vpack.c.b16 %v3134, %v3102
    %v3935 = vpack.c.b16 %v3135, %v3103
    %v3936 = vpack.c.b16 %v3136, %v3104
    %v3937 = vpack.c.b16 %v3137, %v3105
    %v3938 = vpack.c.b16 %v3138, %v3106
    %v3939 = vpack.c.b16 %v3139, %v3107
    %v3940 = vpack.c.b16 %v3140, %v3108
    %v3941 = vpack.c.b16 %v3141, %v3109
    %v3942 = vpack.c.b16 %v3142, %v3110
    %v3943 = vpack.c.b16 %v3143, %v3111
    %v3944 = vpack.c.b16 %v3144, %v3112
    %v3945 = vpack.c.b16 %v3145, %v3113
    %v3946 = vpack.c.b16 %v3146, %v3114
    %v3947 = vpack.c.b16 %v3147, %v3115
    %v3948 = vpack.c.b16 %v3148, %v3116
    %v3949 = vpack.c.b16 %v3149, %v3117
    %v3950 = vpack.c.b16 %v3150, %v3118
    %v3951 = vpack.c.b16 %v3151, %v3119
    %v3952 = vpack.c.b16 %v3152, %v3120
    %v3953 = vpack.c.b16 %v3153, %v3121
    %v3954 = vpack.c.b16 %v3154, %v3122
    %v3955 = vpack.c.b16 %v3155, %v3123
    %v3956 = vpack.c.b16 %v3156, %v3124
    %v3957 = vpack.c.b16 %v3157, %v3125
    %v3958 = vpack.c.b16 %v3158, %v3126
    %v3959 = vpack.c.b16 %v3191, %v3159
    %v3960 = vpack.c.b16 %v3192, %v3160
    %v3961 = vpack.c.b16 %v3193, %v3161
    %v3962 = vpack.c.b16 %v3194, %v3162
    %v3963 = vpack.c.b16 %v3195, %v3163
    %v3964 = vpack.c.b16 %v3196, %v3164
    %v3965 = vpack.c.b16 %v3197, %v3165
    %v3966 = vpack.c.b16 %v3198, %v3166
    %v3967 = vpack.c.b16 %v3199, %v3167
    %v3968 = vpack.c.b16 %v3200, %v3168
    %v3969 = vpack.c.b16 %v3201, %v3169
    %v3970 = vpack.c.b16 %v3202, %v3170
    %v3971 = vpack.c.b16 %v3203, %v3171
    %v3972 = vpack.c.b16 %v3204, %v3172
    %v3973 = vpack.c.b16 %v3205, %v3173
    %v3974 = vpack.c.b16 %v3206, %v3174
    %v3975 = vpack.c.b16 %v3207, %v3175
    %v3976 = vpack.c.b16 %v3208, %v3176
    %v3977 = vpack.c.b16 %v3209, %v3177
    %v3978 = vpack.c.b16 %v3210, %v3178
    %v3979 = vpack.c.b16 %v3211, %v3179
    %v3980 = vpack.c.b16 %v3212, %v3180
    %v3981 = vpack.c.b16 %v3213, %v3181
    %v3982 = vpack.c.b16 %v3214, %v3182
    %v3983 = vpack.c.b16 %v3215, %v3183
    %v3984 = vpack.c.b16 %v3216, %v3184
    %v3985 = vpack.c.b16 %v3217, %v3185
    %v3986 = vpack.c.b16 %v3218, %v3186
    %v3987 = vpack.c.b16 %v3219, %v3187
    %v3988 = vpack.c.b16 %v3220, %v3188
    %v3989 = vpack.c.b16 %v3221, %v3189
    %v3990 = vpack.c.b16 %v3222, %v3190
    %v3991 = vpack.c.b16 %v3255, %v3223
    %v3992 = vpack.c.b16 %v3256, %v3224
    %v3993 = vpack.c.b16 %v3257, %v3225
    %v3994 = vpack.c.b16 %v3258, %v3226
    %v3995 = vpack.c.b16 %v3259, %v3227
    %v3996 = vpack.c.b16 %v3260, %v3228
    %v3997 = vpack.c.b16 %v3261, %v3229
    %v3998 = vpack.c.b16 %v3262, %v3230
    %v3999 = vpack.c.b16 %v3263, %v3231
    %v4000 = vpack.c.b16 %v3264, %v3232
    %v4001 = vpack.c.b16 %v3265, %v3233
    %v4002 = vpack.c.b16 %v3266, %v3234
    %v4003 = vpack.c.b16 %v3267, %v3235
    %v4004 = vpack.c.b16 %v3268, %v3236
    %v4005 = vpack.c.b16 %v3269, %v3237
    %v4006 = vpack.c.b16 %v3270, %v3238
    %v4007 = vpack.c.b16 %v3271, %v3239
    %v4008 = vpack.c.b16 %v3272, %v3240
    %v4009 = vpack.c.b16 %v3273, %v3241
    %v4010 = vpack.c.b16 %v3274, %v3242
    %v4011 = vpack.c.b16 %v3275, %v3243
    %v4012 = vpack.c.b16 %v3276, %v3244
    %v4013 = vpack.c.b16 %v3277, %v3245
    %v4014 = vpack.c.b16 %v3278, %v3246
    %v4015 = vpack.c.b16 %v3279, %v3247
    %v4016 = vpack.c.b16 %v3280, %v3248
    %v4017 = vpack.c.b16 %v3281, %v3249
    %v4018 = vpack.c.b16 %v3282, %v3250
    %v4019 = vpack.c.b16 %v3283, %v3251
    %v4020 = vpack.c.b16 %v3284, %v3252
    %v4021 = vpack.c.b16 %v3285, %v3253
    %v4022 = vpack.c.b16 %v3286, %v3254
    %v4023 = vpack.c.b16 %v3319, %v3287
    %v4024 = vpack.c.b16 %v3320, %v3288
    %v4025 = vpack.c.b16 %v3321, %v3289
    %v4026 = vpack.c.b16 %v3322, %v3290
    %v4027 = vpack.c.b16 %v3323, %v3291
    %v4028 = vpack.c.b16 %v3324, %v3292
    %v4029 = vpack.c.b16 %v3325, %v3293
    %v4030 = vpack.c.b16 %v3326, %v3294
    %v4031 = vpack.c.b16 %v3327, %v3295
    %v4032 = vpack.c.b16 %v3328, %v3296
    %v4033 = vpack.c.b16 %v3329, %v3297
    %v4034 = vpack.c.b16 %v3330, %v3298
    %v4035 = vpack.c.b16 %v3331, %v3299
    %v4036 = vpack.c.b16 %v3332, %v3300
    %v4037 = vpack.c.b16 %v3333, %v3301
    %v4038 = vpack.c.b16 %v3334, %v3302
    %v4039 = vpack.c.b16 %v3335, %v3303
    %v4040 = vpack.c.b16 %v3336, %v3304
    %v4041 = vpack.c.b16 %v3337, %v3305
    %v4042 = vpack.c.b16 %v3338, %v3306
    %v4043 = vpack.c.b16 %v3339, %v3307
    %v4044 = vpack.c.b16 %v3340, %v3308
    %v4045 = vpack.c.b16 %v3341, %v3309
    %v4046 = vpack.c.b16 %v3342, %v3310
    %v4047 = vpack.c.b16 %v3343, %v3311
    %v4048 = vpack.c.b16 %v3344, %v3312
    %v4049 = vpack.c.b16 %v3345, %v3313
    %v4050 = vpack.c.b16 %v3346, %v3314
    %v4051 = vpack.c.b16 %v3347, %v3315
    %v4052 = vpack.c.b16 %v3348, %v3316
    %v4053 = vpack.c.b16 %v3349, %v3317
    %v4054 = vpack.c.b16 %v3350, %v3318
    %v4055 = vpack.c.b16 %v3383, %v3351
    %v4056 = vpack.c.b16 %v3384, %v3352
    %v4057 = vpack.c.b16 %v3385, %v3353
    %v4058 = vpack.c.b16 %v3386, %v3354
    %v4059 = vpack.c.b16 %v3387, %v3355
    %v4060 = vpack.c.b16 %v3388, %v3356
    %v4061 = vpack.c.b16 %v3389, %v3357
    %v4062 = vpack.c.b16 %v3390, %v3358
    %v4063 = vpack.c.b16 %v3391, %v3359
    %v4064 = vpack.c.b16 %v3392, %v3360
    %v4065 = vpack.c.b16 %v3393, %v3361
    %v4066 = vpack.c.b16 %v3394, %v3362
    %v4067 = vpack.c.b16 %v3395, %v3363
    %v4068 = vpack.c.b16 %v3396, %v3364
    %v4069 = vpack.c.b16 %v3397, %v3365
    %v4070 = vpack.c.b16 %v3398, %v3366
    %v4071 = vpack.c.b16 %v3399, %v3367
    %v4072 = vpack.c.b16 %v3400, %v3368
    %v4073 = vpack.c.b16 %v3401, %v3369
    %v4074 = vpack.c.b16 %v3402, %v3370
    %v4075 = vpack.c.b16 %v3403, %v3371
    %v4076 = vpack.c.b16 %v3404, %v3372
    %v4077 = vpack.c.b16 %v3405, %v3373
    %v4078 = vpack.c.b16 %v3406, %v3374
    %v4079 = vpack.c.b16 %v3407, %v3375
    %v4080 = vpack.c.b16 %v3408, %v3376
    %v4081 = vpack.c.b16 %v3409, %v3377
    %v4082 = vpack.c.b16 %v3410, %v3378
    %v4083 = vpack.c.b16 %v3411, %v3379
    %v4084 = vpack.c.b16 %v3412, %v3380
    %v4085 = vpack.c.b16 %v3413, %v3381
    %v4086 = vpack.c.b16 %v3414, %v3382
    %v4087 = vpack.c.b16 %v3447, %v3415
    %v4088 = vpack.c.b16 %v3448, %v3416
    %v4089 = vpack.c.b16 %v3449, %v3417
    %v4090 = vpack.c.b16 %v3450, %v3418
    %v4091 = vpack.c.b16 %v3451, %v3419
    %v4092 = vpack.c.b16 %v3452, %v3420
    %v4093 = vpack.c.b16 %v3453, %v3421
    %v4094 = vpack.c.b16 %v3454, %v3422
    %v4095 = vpack.c.b16 %v3455, %v3423
    %v4096 = vpack.c.b16 %v3456, %v3424
    %v4097 = vpack.c.b16 %v3457, %v3425
    %v4098 = vpack.c.b16 %v3458, %v3426
    %v4099 = vpack.c.b16 %v3459, %v3427
    %v4100 = vpack.c.b16 %v3460, %v3428
    %v4101 = vpack.c.b16 %v3461, %v3429
    %v4102 = vpack.c.b16 %v3462, %v3430
    %v4103 = vpack.c.b16 %v3463, %v3431
    %v4104 = vpack.c.b16 %v3464, %v3432
    %v4105 = vpack.c.b16 %v3465, %v3433
    %v4106 = vpack.c.b16 %v3466, %v3434
    %v4107 = vpack.c.b16 %v3467, %v3435
    %v4108 = vpack.c.b16 %v3468, %v3436
    %v4109 = vpack.c.b16 %v3469, %v3437
    %v4110 = vpack.c.b16 %v3470, %v3438
    %v4111 = vpack.c.b16 %v3471, %v3439
    %v4112 = vpack.c.b16 %v3472, %v3440
    %v4113 = vpack.c.b16 %v3473, %v3441
    %v4114 = vpack.c.b16 %v3474, %v3442
    %v4115 = vpack.c.b16 %v3475, %v3443
    %v4116 = vpack.c.b16 %v3476, %v3444
    %v4117 = vpack.c.b16 %v3477, %v3445
    %v4118 = vpack.c.b16 %v3478, %v3446
    %v4119 = vpack.c.b16 %v3511, %v3479
    %v4120 = vpack.c.b16 %v3512, %v3480
    %v4121 = vpack.c.b16 %v3513, %v3481
    %v4122 = vpack.c.b16 %v3514, %v3482
    %v4123 = vpack.c.b16 %v3515, %v3483
    %v4124 = vpack.c.b16 %v3516, %v3484
    %v4125 = vpack.c.b16 %v3517, %v3485
    %v4126 = vpack.c.b16 %v3518, %v3486
    %v4127 = vpack.c.b16 %v3519, %v3487
    %v4128 = vpack.c.b16 %v3520, %v3488
    %v4129 = vpack.c.b16 %v3521, %v3489
    %v4130 = vpack.c.b16 %v3522, %v3490
    %v4131 = vpack.c.b16 %v3523, %v3491
    %v4132 = vpack.c.b16 %v3524, %v3492
    %v4133 = vpack.c.b16 %v3525, %v3493
    %v4134 = vpack.c.b16 %v3526, %v3494
    %v4135 = vpack.c.b16 %v3527, %v3495
    %v4136 = vpack.c.b16 %v3528, %v3496
    %v4137 = vpack.c.b16 %v3529, %v3497
    %v4138 = vpack.c.b16 %v3530, %v3498
    %v4139 = vpack.c.b16 %v3531, %v3499
    %v4140 = vpack.c.b16 %v3532, %v3500
    %v4141 = vpack.c.b16 %v3533, %v3501
    %v4142 = vpack.c.b16 %v3534, %v3502
    %v4143 = vpack.c.b16 %v3535, %v3503
    %v4144 = vpack.c.b16 %v3536, %v3504
    %v4145 = vpack.c.b16 %v3537, %v3505
    %v4146 = vpack.c.b16 %v3538, %v3506
    %v4147 = vpack.c.b16 %v3539, %v3507
    %v4148 = vpack.c.b16 %v3540, %v3508
    %v4149 = vpack.c.b16 %v3541, %v3509
    %v4150 = vpack.c.b16 %v3542, %v3510
    %v4151 = vpack.c.b16 %v3575, %v3543
    %v4152 = vpack.c.b16 %v3576, %v3544
    %v4153 = vpack.c.b16 %v3577, %v3545
    %v4154 = vpack.c.b16 %v3578, %v3546
    %v4155 = vpack.c.b16 %v3579, %v3547
    %v4156 = vpack.c.b16 %v3580, %v3548
    %v4157 = vpack.c.b16 %v3581, %v3549
    %v4158 = vpack.c.b16 %v3582, %v3550
    %v4159 = vpack.c.b16 %v3583, %v3551
    %v4160 = vpack.c.b16 %v3584, %v3552
    %v4161 = vpack.c.b16 %v3585, %v3553
    %v4162 = vpack.c.b16 %v3586, %v3554
    %v4163 = vpack.c.b16 %v3587, %v3555
    %v4164 = vpack.c.b16 %v3588, %v3556
    %v4165 = vpack.c.b16 %v3589, %v3557
    %v4166 = vpack.c.b16 %v3590, %v3558
    %v4167 = vpack.c.b16 %v3591, %v3559
    %v4168 = vpack.c.b16 %v3592, %v3560
    %v4169 = vpack.c.b16 %v3593, %v3561
    %v4170 = vpack.c.b16 %v3594, %v3562
    %v4171 = vpack.c.b16 %v3595, %v3563
    %v4172 = vpack.c.b16 %v3596, %v3564
    %v4173 = vpack.c.b16 %v3597, %v3565
    %v4174 = vpack.c.b16 %v3598, %v3566
    %v4175 = vpack.c.b16 %v3599, %v3567
    %v4176 = vpack.c.b16 %v3600, %v3568
    %v4177 = vpack.c.b16 %v3601, %v3569
    %v4178 = vpack.c.b16 %v3602, %v3570
    %v4179 = vpack.c.b16 %v3603, %v3571
    %v4180 = vpack.c.b16 %v3604, %v3572
    %v4181 = vpack.c.b16 %v3605, %v3573
    %v4182 = vpack.c.b16 %v3606, %v3574
    %v4183 = vpack.c.b16 %v3639, %v3607
    %v4184 = vpack.c.b16 %v3640, %v3608
    %v4185 = vpack.c.b16 %v3641, %v3609
    %v4186 = vpack.c.b16 %v3642, %v3610
    %v4187 = vpack.c.b16 %v3643, %v3611
    %v4188 = vpack.c.b16 %v3644, %v3612
    %v4189 = vpack.c.b16 %v3645, %v3613
    %v4190 = vpack.c.b16 %v3646, %v3614
    %v4191 = vpack.c.b16 %v3647, %v3615
    %v4192 = vpack.c.b16 %v3648, %v3616
    %v4193 = vpack.c.b16 %v3649, %v3617
    %v4194 = vpack.c.b16 %v3650, %v3618
    %v4195 = vpack.c.b16 %v3651, %v3619
    %v4196 = vpack.c.b16 %v3652, %v3620
    %v4197 = vpack.c.b16 %v3653, %v3621
    %v4198 = vpack.c.b16 %v3654, %v3622
    %v4199 = vpack.c.b16 %v3655, %v3623
    %v4200 = vpack.c.b16 %v3656, %v3624
    %v4201 = vpack.c.b16 %v3657, %v3625
    %v4202 = vpack.c.b16 %v3658, %v3626
    %v4203 = vpack.c.b16 %v3659, %v3627
    %v4204 = vpack.c.b16 %v3660, %v3628
    %v4205 = vpack.c.b16 %v3661, %v3629
    %v4206 = vpack.c.b16 %v3662, %v3630
    %v4207 = vpack.c.b16 %v3663, %v3631
    %v4208 = vpack.c.b16 %v3664, %v3632
    %v4209 = vpack.c.b16 %v3665, %v3633
    %v4210 = vpack.c.b16 %v3666, %v3634
    %v4211 = vpack.c.b16 %v3667, %v3635
    %v4212 = vpack.c.b16 %v3668, %v3636
    %v4213 = vpack.c.b16 %v3669, %v3637
    %v4214 = vpack.c.b16 %v3670, %v3638
    %v4215 = vpack.c.b16 %v3703, %v3671
    %v4216 = vpack.c.b16 %v3704, %v3672
    %v4217 = vpack.c.b16 %v3705, %v3673
    %v4218 = vpack.c.b16 %v3706, %v3674
    %v4219 = vpack.c.b16 %v3707, %v3675
    %v4220 = vpack.c.b16 %v3708, %v3676
    %v4221 = vpack.c.b16 %v3709, %v3677
    %v4222 = vpack.c.b16 %v3710, %v3678
    %v4223 = vpack.c.b16 %v3711, %v3679
    %v4224 = vpack.c.b16 %v3712, %v3680
    %v4225 = vpack.c.b16 %v3713, %v3681
    %v4226 = vpack.c.b16 %v3714, %v3682
    %v4227 = vpack.c.b16 %v3715, %v3683
    %v4228 = vpack.c.b16 %v3716, %v3684
    %v4229 = vpack.c.b16 %v3717, %v3685
    %v4230 = vpack.c.b16 %v3718, %v3686
    %v4231 = vpack.c.b16 %v3719, %v3687
    %v4232 = vpack.c.b16 %v3720, %v3688
    %v4233 = vpack.c.b16 %v3721, %v3689
    %v4234 = vpack.c.b16 %v3722, %v3690
    %v4235 = vpack.c.b16 %v3723, %v3691
    %v4236 = vpack.c.b16 %v3724, %v3692
    %v4237 = vpack.c.b16 %v3725, %v3693
    %v4238 = vpack.c.b16 %v3726, %v3694
    %v4239 = vpack.c.b16 %v3727, %v3695
    %v4240 = vpack.c.b16 %v3728, %v3696
    %v4241 = vpack.c.b16 %v3729, %v3697
    %v4242 = vpack.c.b16 %v3730, %v3698
    %v4243 = vpack.c.b16 %v3731, %v3699
    %v4244 = vpack.c.b16 %v3732, %v3700
    %v4245 = vpack.c.b16 %v3733, %v3701
    %v4246 = vpack.c.b16 %v3734, %v3702
    %4759 = vmatprep.subr.bf16.mxu0 %v3736
    %4760 = vmatpush1.bf16.msra.mxu0 %v3735
    %4761 = vmatprep.subr.bf16.mxu0 %v3768
    %4762 = vmatpush1.bf16.msra.mxu0 %v3767
    %4763 = vmatprep.subr.bf16.mxu0 %v3800
    %4764 = vmatpush1.bf16.msra.mxu0 %v3799
    %4765 = vmatprep.subr.bf16.mxu0 %v3832
    %4766 = vmatpush1.bf16.msra.mxu0 %v3831
    %4767 = vmatprep.subr.bf16.mxu0 %v3864
    %4768 = vmatpush1.bf16.msra.mxu0 %v3863
    %4769 = vmatprep.subr.bf16.mxu0 %v3896
    %4770 = vmatpush1.bf16.msra.mxu0 %v3895
    %4771 = vmatprep.subr.bf16.mxu0 %v3928
    %4772 = vmatpush1.bf16.msra.mxu0 %v3927
    %4773 = vmatprep.subr.bf16.mxu0 %v3960
    %4774 = vmatpush1.bf16.msra.mxu0 %v3959
    %4775 = vmatprep.subr.bf16.mxu0 %v3992
    %4776 = vmatpush1.bf16.msra.mxu0 %v3991
    %4777 = vmatprep.subr.bf16.mxu0 %v4024
    %4778 = vmatpush1.bf16.msra.mxu0 %v4023
    %4779 = vmatprep.subr.bf16.mxu0 %v4056
    %4780 = vmatpush1.bf16.msra.mxu0 %v4055
    %4781 = vmatprep.subr.bf16.mxu0 %v4088
    %4782 = vmatpush1.bf16.msra.mxu0 %v4087
    %4783 = vmatprep.subr.bf16.mxu0 %v4120
    %4784 = vmatpush1.bf16.msra.mxu0 %v4119
    %4785 = vmatprep.subr.bf16.mxu0 %v4152
    %4786 = vmatpush1.bf16.msra.mxu0 %v4151
    %4787 = vmatprep.subr.bf16.mxu0 %v4184
    %4788 = vmatpush1.bf16.msra.mxu0 %v4183
    %4789 = vmatprep.subr.bf16.mxu0 %v4216
    %4790 = vmatpush1.bf16.msra.mxu0 %v4215
    %4791 = vmatprep.mubr.bf16.mxu0 %v620
    %4792 = vmatmul.mubr.bf16.gmra.mrb[0].mxu0 %v619
    %v4793 = vpop.f32.mrb[0].mxu0
    %v4794 = vadd.f32 %v2042, %v4793
    %v4795 = vpop.f32.mrb[0].mxu0
    %v4796 = vadd.f32 %v2046, %v4795
    %v4797 = vpop.f32.mrb[0].mxu0
    %v4798 = vpop.f32.mrb[0].mxu0
    %4799 = vdwg.mxu0
    %4800 = vmatprep.subr.bf16.mxu0 %v3738
    %4801 = vmatpush1.bf16.msra.mxu0 %v3737
    %4802 = vmatprep.subr.bf16.mxu0 %v3770
    %4803 = vmatpush1.bf16.msra.mxu0 %v3769
    %4804 = vmatprep.subr.bf16.mxu0 %v3802
    %4805 = vmatpush1.bf16.msra.mxu0 %v3801
    %4806 = vmatprep.subr.bf16.mxu0 %v3834
    %4807 = vmatpush1.bf16.msra.mxu0 %v3833
    %4808 = vmatprep.subr.bf16.mxu0 %v3866
    %4809 = vmatpush1.bf16.msra.mxu0 %v3865
    %4810 = vmatprep.subr.bf16.mxu0 %v3898
    %4811 = vmatpush1.bf16.msra.mxu0 %v3897
    %4812 = vmatprep.subr.bf16.mxu0 %v3930
    %4813 = vmatpush1.bf16.msra.mxu0 %v3929
    %4814 = vmatprep.subr.bf16.mxu0 %v3962
    %4815 = vmatpush1.bf16.msra.mxu0 %v3961
    %4816 = vmatprep.subr.bf16.mxu0 %v3994
    %4817 = vmatpush1.bf16.msra.mxu0 %v3993
    %4818 = vmatprep.subr.bf16.mxu0 %v4026
    %4819 = vmatpush1.bf16.msra.mxu0 %v4025
    %4820 = vmatprep.subr.bf16.mxu0 %v4058
    %4821 = vmatpush1.bf16.msra.mxu0 %v4057
    %4822 = vmatprep.subr.bf16.mxu0 %v4090
    %4823 = vmatpush1.bf16.msra.mxu0 %v4089
    %4824 = vmatprep.subr.bf16.mxu0 %v4122
    %4825 = vmatpush1.bf16.msra.mxu0 %v4121
    %4826 = vmatprep.subr.bf16.mxu0 %v4154
    %4827 = vmatpush1.bf16.msra.mxu0 %v4153
    %4828 = vmatprep.subr.bf16.mxu0 %v4186
    %4829 = vmatpush1.bf16.msra.mxu0 %v4185
    %4830 = vmatprep.subr.bf16.mxu0 %v4218
    %4831 = vmatpush1.bf16.msra.mxu0 %v4217
    %4832 = vmatprep.mubr.bf16.mxu0 %v620
    %4833 = vmatmul.mubr.bf16.gmra.mrb[0].mxu0 %v619
    %v4834 = vpop.f32.mrb[0].mxu0
    %v4835 = vadd.f32 %v2050, %v4834
    %v4836 = vpop.f32.mrb[0].mxu0
    %v4837 = vadd.f32 %v2054, %v4836
    %v4838 = vpop.f32.mrb[0].mxu0
    %v4839 = vpop.f32.mrb[0].mxu0
    %4840 = vdwg.mxu0
    %4841 = vmatprep.subr.bf16.mxu0 %v3740
    %4842 = vmatpush1.bf16.msra.mxu0 %v3739
    %4843 = vmatprep.subr.bf16.mxu0 %v3772
    %4844 = vmatpush1.bf16.msra.mxu0 %v3771
    %4845 = vmatprep.subr.bf16.mxu0 %v3804
    %4846 = vmatpush1.bf16.msra.mxu0 %v3803
    %4847 = vmatprep.subr.bf16.mxu0 %v3836
    %4848 = vmatpush1.bf16.msra.mxu0 %v3835
    %4849 = vmatprep.subr.bf16.mxu0 %v3868
    %4850 = vmatpush1.bf16.msra.mxu0 %v3867
    %4851 = vmatprep.subr.bf16.mxu0 %v3900
    %4852 = vmatpush1.bf16.msra.mxu0 %v3899
    %4853 = vmatprep.subr.bf16.mxu0 %v3932
    %4854 = vmatpush1.bf16.msra.mxu0 %v3931
    %4855 = vmatprep.subr.bf16.mxu0 %v3964
    %4856 = vmatpush1.bf16.msra.mxu0 %v3963
    %4857 = vmatprep.subr.bf16.mxu0 %v3996
    %4858 = vmatpush1.bf16.msra.mxu0 %v3995
    %4859 = vmatprep.subr.bf16.mxu0 %v4028
    %4860 = vmatpush1.bf16.msra.mxu0 %v4027
    %4861 = vmatprep.subr.bf16.mxu0 %v4060
    %4862 = vmatpush1.bf16.msra.mxu0 %v4059
    %4863 = vmatprep.subr.bf16.mxu0 %v4092
    %4864 = vmatpush1.bf16.msra.mxu0 %v4091
    %4865 = vmatprep.subr.bf16.mxu0 %v4124
    %4866 = vmatpush1.bf16.msra.mxu0 %v4123
    %4867 = vmatprep.subr.bf16.mxu0 %v4156
    %4868 = vmatpush1.bf16.msra.mxu0 %v4155
    %4869 = vmatprep.subr.bf16.mxu0 %v4188
    %4870 = vmatpush1.bf16.msra.mxu0 %v4187
    %4871 = vmatprep.subr.bf16.mxu0 %v4220
    %4872 = vmatpush1.bf16.msra.mxu0 %v4219
    %4873 = vmatprep.mubr.bf16.mxu0 %v620
    %4874 = vmatmul.mubr.bf16.gmra.mrb[0].mxu0 %v619
    %v4875 = vpop.f32.mrb[0].mxu0
    %v4876 = vadd.f32 %v2058, %v4875
    %v4877 = vpop.f32.mrb[0].mxu0
    %v4878 = vadd.f32 %v2062, %v4877
    %v4879 = vpop.f32.mrb[0].mxu0
    %v4880 = vpop.f32.mrb[0].mxu0
    %4881 = vdwg.mxu0
    %4882 = vmatprep.subr.bf16.mxu0 %v3742
    %4883 = vmatpush1.bf16.msra.mxu0 %v3741
    %4884 = vmatprep.subr.bf16.mxu0 %v3774
    %4885 = vmatpush1.bf16.msra.mxu0 %v3773
    %4886 = vmatprep.subr.bf16.mxu0 %v3806
    %4887 = vmatpush1.bf16.msra.mxu0 %v3805
    %4888 = vmatprep.subr.bf16.mxu0 %v3838
    %4889 = vmatpush1.bf16.msra.mxu0 %v3837
    %4890 = vmatprep.subr.bf16.mxu0 %v3870
    %4891 = vmatpush1.bf16.msra.mxu0 %v3869
    %4892 = vmatprep.subr.bf16.mxu0 %v3902
    %4893 = vmatpush1.bf16.msra.mxu0 %v3901
    %4894 = vmatprep.subr.bf16.mxu0 %v3934
    %4895 = vmatpush1.bf16.msra.mxu0 %v3933
    %4896 = vmatprep.subr.bf16.mxu0 %v3966
    %4897 = vmatpush1.bf16.msra.mxu0 %v3965
    %4898 = vmatprep.subr.bf16.mxu0 %v3998
    %4899 = vmatpush1.bf16.msra.mxu0 %v3997
    %4900 = vmatprep.subr.bf16.mxu0 %v4030
    %4901 = vmatpush1.bf16.msra.mxu0 %v4029
    %4902 = vmatprep.subr.bf16.mxu0 %v4062
    %4903 = vmatpush1.bf16.msra.mxu0 %v4061
    %4904 = vmatprep.subr.bf16.mxu0 %v4094
    %4905 = vmatpush1.bf16.msra.mxu0 %v4093
    %4906 = vmatprep.subr.bf16.mxu0 %v4126
    %4907 = vmatpush1.bf16.msra.mxu0 %v4125
    %4908 = vmatprep.subr.bf16.mxu0 %v4158
    %4909 = vmatpush1.bf16.msra.mxu0 %v4157
    %4910 = vmatprep.subr.bf16.mxu0 %v4190
    %4911 = vmatpush1.bf16.msra.mxu0 %v4189
    %4912 = vmatprep.subr.bf16.mxu0 %v4222
    %4913 = vmatpush1.bf16.msra.mxu0 %v4221
    %4914 = vmatprep.mubr.bf16.mxu0 %v620
    %4915 = vmatmul.mubr.bf16.gmra.mrb[0].mxu0 %v619
    %v4916 = vpop.f32.mrb[0].mxu0
    %v4917 = vadd.f32 %v2066, %v4916
    %v4918 = vpop.f32.mrb[0].mxu0
    %v4919 = vadd.f32 %v2070, %v4918
    %v4920 = vpop.f32.mrb[0].mxu0
    %v4921 = vpop.f32.mrb[0].mxu0
    %4922 = vdwg.mxu0
    %4923 = vmatprep.subr.bf16.mxu0 %v3744
    %4924 = vmatpush1.bf16.msra.mxu0 %v3743
    %4925 = vmatprep.subr.bf16.mxu0 %v3776
    %4926 = vmatpush1.bf16.msra.mxu0 %v3775
    %4927 = vmatprep.subr.bf16.mxu0 %v3808
    %4928 = vmatpush1.bf16.msra.mxu0 %v3807
    %4929 = vmatprep.subr.bf16.mxu0 %v3840
    %4930 = vmatpush1.bf16.msra.mxu0 %v3839
    %4931 = vmatprep.subr.bf16.mxu0 %v3872
    %4932 = vmatpush1.bf16.msra.mxu0 %v3871
    %4933 = vmatprep.subr.bf16.mxu0 %v3904
    %4934 = vmatpush1.bf16.msra.mxu0 %v3903
    %4935 = vmatprep.subr.bf16.mxu0 %v3936
    %4936 = vmatpush1.bf16.msra.mxu0 %v3935
    %4937 = vmatprep.subr.bf16.mxu0 %v3968
    %4938 = vmatpush1.bf16.msra.mxu0 %v3967
    %4939 = vmatprep.subr.bf16.mxu0 %v4000
    %4940 = vmatpush1.bf16.msra.mxu0 %v3999
    %4941 = vmatprep.subr.bf16.mxu0 %v4032
    %4942 = vmatpush1.bf16.msra.mxu0 %v4031
    %4943 = vmatprep.subr.bf16.mxu0 %v4064
    %4944 = vmatpush1.bf16.msra.mxu0 %v4063
    %4945 = vmatprep.subr.bf16.mxu0 %v4096
    %4946 = vmatpush1.bf16.msra.mxu0 %v4095
    %4947 = vmatprep.subr.bf16.mxu0 %v4128
    %4948 = vmatpush1.bf16.msra.mxu0 %v4127
    %4949 = vmatprep.subr.bf16.mxu0 %v4160
    %4950 = vmatpush1.bf16.msra.mxu0 %v4159
    %4951 = vmatprep.subr.bf16.mxu0 %v4192
    %4952 = vmatpush1.bf16.msra.mxu0 %v4191
    %4953 = vmatprep.subr.bf16.mxu0 %v4224
    %4954 = vmatpush1.bf16.msra.mxu0 %v4223
    %4955 = vmatprep.mubr.bf16.mxu0 %v620
    %4956 = vmatmul.mubr.bf16.gmra.mrb[0].mxu0 %v619
    %v4957 = vpop.f32.mrb[0].mxu0
    %v4958 = vadd.f32 %v2074, %v4957
    %v4959 = vpop.f32.mrb[0].mxu0
    %v4960 = vadd.f32 %v2078, %v4959
    %v4961 = vpop.f32.mrb[0].mxu0
    %v4962 = vpop.f32.mrb[0].mxu0
    %4963 = vdwg.mxu0
    %4964 = vmatprep.subr.bf16.mxu0 %v3746
    %4965 = vmatpush1.bf16.msra.mxu0 %v3745
    %4966 = vmatprep.subr.bf16.mxu0 %v3778
    %4967 = vmatpush1.bf16.msra.mxu0 %v3777
    %4968 = vmatprep.subr.bf16.mxu0 %v3810
    %4969 = vmatpush1.bf16.msra.mxu0 %v3809
    %4970 = vmatprep.subr.bf16.mxu0 %v3842
    %4971 = vmatpush1.bf16.msra.mxu0 %v3841
    %4972 = vmatprep.subr.bf16.mxu0 %v3874
    %4973 = vmatpush1.bf16.msra.mxu0 %v3873
    %4974 = vmatprep.subr.bf16.mxu0 %v3906
    %4975 = vmatpush1.bf16.msra.mxu0 %v3905
    %4976 = vmatprep.subr.bf16.mxu0 %v3938
    %4977 = vmatpush1.bf16.msra.mxu0 %v3937
    %4978 = vmatprep.subr.bf16.mxu0 %v3970
    %4979 = vmatpush1.bf16.msra.mxu0 %v3969
    %4980 = vmatprep.subr.bf16.mxu0 %v4002
    %4981 = vmatpush1.bf16.msra.mxu0 %v4001
    %4982 = vmatprep.subr.bf16.mxu0 %v4034
    %4983 = vmatpush1.bf16.msra.mxu0 %v4033
    %4984 = vmatprep.subr.bf16.mxu0 %v4066
    %4985 = vmatpush1.bf16.msra.mxu0 %v4065
    %4986 = vmatprep.subr.bf16.mxu0 %v4098
    %4987 = vmatpush1.bf16.msra.mxu0 %v4097
    %4988 = vmatprep.subr.bf16.mxu0 %v4130
    %4989 = vmatpush1.bf16.msra.mxu0 %v4129
    %4990 = vmatprep.subr.bf16.mxu0 %v4162
    %4991 = vmatpush1.bf16.msra.mxu0 %v4161
    %4992 = vmatprep.subr.bf16.mxu0 %v4194
    %4993 = vmatpush1.bf16.msra.mxu0 %v4193
    %4994 = vmatprep.subr.bf16.mxu0 %v4226
    %4995 = vmatpush1.bf16.msra.mxu0 %v4225
    %4996 = vmatprep.mubr.bf16.mxu0 %v620
    %4997 = vmatmul.mubr.bf16.gmra.mrb[0].mxu0 %v619
    %v4998 = vpop.f32.mrb[0].mxu0
    %v4999 = vadd.f32 %v2082, %v4998
    %v5000 = vpop.f32.mrb[0].mxu0
    %v5001 = vadd.f32 %v2086, %v5000
    %v5002 = vpop.f32.mrb[0].mxu0
    %v5003 = vpop.f32.mrb[0].mxu0
    %5004 = vdwg.mxu0
    %5005 = vmatprep.subr.bf16.mxu0 %v3748
    %5006 = vmatpush1.bf16.msra.mxu0 %v3747
    %5007 = vmatprep.subr.bf16.mxu0 %v3780
    %5008 = vmatpush1.bf16.msra.mxu0 %v3779
    %5009 = vmatprep.subr.bf16.mxu0 %v3812
    %5010 = vmatpush1.bf16.msra.mxu0 %v3811
    %5011 = vmatprep.subr.bf16.mxu0 %v3844
    %5012 = vmatpush1.bf16.msra.mxu0 %v3843
    %5013 = vmatprep.subr.bf16.mxu0 %v3876
    %5014 = vmatpush1.bf16.msra.mxu0 %v3875
    %5015 = vmatprep.subr.bf16.mxu0 %v3908
    %5016 = vmatpush1.bf16.msra.mxu0 %v3907
    %5017 = vmatprep.subr.bf16.mxu0 %v3940
    %5018 = vmatpush1.bf16.msra.mxu0 %v3939
    %5019 = vmatprep.subr.bf16.mxu0 %v3972
    %5020 = vmatpush1.bf16.msra.mxu0 %v3971
    %5021 = vmatprep.subr.bf16.mxu0 %v4004
    %5022 = vmatpush1.bf16.msra.mxu0 %v4003
    %5023 = vmatprep.subr.bf16.mxu0 %v4036
    %5024 = vmatpush1.bf16.msra.mxu0 %v4035
    %5025 = vmatprep.subr.bf16.mxu0 %v4068
    %5026 = vmatpush1.bf16.msra.mxu0 %v4067
    %5027 = vmatprep.subr.bf16.mxu0 %v4100
    %5028 = vmatpush1.bf16.msra.mxu0 %v4099
    %5029 = vmatprep.subr.bf16.mxu0 %v4132
    %5030 = vmatpush1.bf16.msra.mxu0 %v4131
    %5031 = vmatprep.subr.bf16.mxu0 %v4164
    %5032 = vmatpush1.bf16.msra.mxu0 %v4163
    %5033 = vmatprep.subr.bf16.mxu0 %v4196
    %5034 = vmatpush1.bf16.msra.mxu0 %v4195
    %5035 = vmatprep.subr.bf16.mxu0 %v4228
    %5036 = vmatpush1.bf16.msra.mxu0 %v4227
    %5037 = vmatprep.mubr.bf16.mxu0 %v620
    %5038 = vmatmul.mubr.bf16.gmra.mrb[0].mxu0 %v619
    %v5039 = vpop.f32.mrb[0].mxu0
    %v5040 = vadd.f32 %v2090, %v5039
    %v5041 = vpop.f32.mrb[0].mxu0
    %v5042 = vadd.f32 %v2094, %v5041
    %v5043 = vpop.f32.mrb[0].mxu0
    %v5044 = vpop.f32.mrb[0].mxu0
    %5045 = vdwg.mxu0
    %5046 = vmatprep.subr.bf16.mxu0 %v3750
    %5047 = vmatpush1.bf16.msra.mxu0 %v3749
    %5048 = vmatprep.subr.bf16.mxu0 %v3782
    %5049 = vmatpush1.bf16.msra.mxu0 %v3781
    %5050 = vmatprep.subr.bf16.mxu0 %v3814
    %5051 = vmatpush1.bf16.msra.mxu0 %v3813
    %5052 = vmatprep.subr.bf16.mxu0 %v3846
    %5053 = vmatpush1.bf16.msra.mxu0 %v3845
    %5054 = vmatprep.subr.bf16.mxu0 %v3878
    %5055 = vmatpush1.bf16.msra.mxu0 %v3877
    %5056 = vmatprep.subr.bf16.mxu0 %v3910
    %5057 = vmatpush1.bf16.msra.mxu0 %v3909
    %5058 = vmatprep.subr.bf16.mxu0 %v3942
    %5059 = vmatpush1.bf16.msra.mxu0 %v3941
    %5060 = vmatprep.subr.bf16.mxu0 %v3974
    %5061 = vmatpush1.bf16.msra.mxu0 %v3973
    %5062 = vmatprep.subr.bf16.mxu0 %v4006
    %5063 = vmatpush1.bf16.msra.mxu0 %v4005
    %5064 = vmatprep.subr.bf16.mxu0 %v4038
    %5065 = vmatpush1.bf16.msra.mxu0 %v4037
    %5066 = vmatprep.subr.bf16.mxu0 %v4070
    %5067 = vmatpush1.bf16.msra.mxu0 %v4069
    %5068 = vmatprep.subr.bf16.mxu0 %v4102
    %5069 = vmatpush1.bf16.msra.mxu0 %v4101
    %5070 = vmatprep.subr.bf16.mxu0 %v4134
    %5071 = vmatpush1.bf16.msra.mxu0 %v4133
    %5072 = vmatprep.subr.bf16.mxu0 %v4166
    %5073 = vmatpush1.bf16.msra.mxu0 %v4165
    %5074 = vmatprep.subr.bf16.mxu0 %v4198
    %5075 = vmatpush1.bf16.msra.mxu0 %v4197
    %5076 = vmatprep.subr.bf16.mxu0 %v4230
    %5077 = vmatpush1.bf16.msra.mxu0 %v4229
    %5078 = vmatprep.mubr.bf16.mxu0 %v620
    %5079 = vmatmul.mubr.bf16.gmra.mrb[0].mxu0 %v619
    %v5080 = vpop.f32.mrb[0].mxu0
    %v5081 = vadd.f32 %v2098, %v5080
    %v5082 = vpop.f32.mrb[0].mxu0
    %v5083 = vadd.f32 %v2102, %v5082
    %v5084 = vpop.f32.mrb[0].mxu0
    %v5085 = vpop.f32.mrb[0].mxu0
    %5086 = vdwg.mxu0
    %5087 = vmatprep.subr.bf16.mxu0 %v3752
    %5088 = vmatpush1.bf16.msra.mxu0 %v3751
    %5089 = vmatprep.subr.bf16.mxu0 %v3784
    %5090 = vmatpush1.bf16.msra.mxu0 %v3783
    %5091 = vmatprep.subr.bf16.mxu0 %v3816
    %5092 = vmatpush1.bf16.msra.mxu0 %v3815
    %5093 = vmatprep.subr.bf16.mxu0 %v3848
    %5094 = vmatpush1.bf16.msra.mxu0 %v3847
    %5095 = vmatprep.subr.bf16.mxu0 %v3880
    %5096 = vmatpush1.bf16.msra.mxu0 %v3879
    %5097 = vmatprep.subr.bf16.mxu0 %v3912
    %5098 = vmatpush1.bf16.msra.mxu0 %v3911
    %5099 = vmatprep.subr.bf16.mxu0 %v3944
    %5100 = vmatpush1.bf16.msra.mxu0 %v3943
    %5101 = vmatprep.subr.bf16.mxu0 %v3976
    %5102 = vmatpush1.bf16.msra.mxu0 %v3975
    %5103 = vmatprep.subr.bf16.mxu0 %v4008
    %5104 = vmatpush1.bf16.msra.mxu0 %v4007
    %5105 = vmatprep.subr.bf16.mxu0 %v4040
    %5106 = vmatpush1.bf16.msra.mxu0 %v4039
    %5107 = vmatprep.subr.bf16.mxu0 %v4072
    %5108 = vmatpush1.bf16.msra.mxu0 %v4071
    %5109 = vmatprep.subr.bf16.mxu0 %v4104
    %5110 = vmatpush1.bf16.msra.mxu0 %v4103
    %5111 = vmatprep.subr.bf16.mxu0 %v4136
    %5112 = vmatpush1.bf16.msra.mxu0 %v4135
    %5113 = vmatprep.subr.bf16.mxu0 %v4168
    %5114 = vmatpush1.bf16.msra.mxu0 %v4167
    %5115 = vmatprep.subr.bf16.mxu0 %v4200
    %5116 = vmatpush1.bf16.msra.mxu0 %v4199
    %5117 = vmatprep.subr.bf16.mxu0 %v4232
    %5118 = vmatpush1.bf16.msra.mxu0 %v4231
    %5119 = vmatprep.mubr.bf16.mxu0 %v620
    %5120 = vmatmul.mubr.bf16.gmra.mrb[0].mxu0 %v619
    %v5121 = vpop.f32.mrb[0].mxu0
    %v5122 = vadd.f32 %v2106, %v5121
    %v5123 = vpop.f32.mrb[0].mxu0
    %v5124 = vadd.f32 %v2110, %v5123
    %v5125 = vpop.f32.mrb[0].mxu0
    %v5126 = vpop.f32.mrb[0].mxu0
    %5127 = vdwg.mxu0
    %5128 = vmatprep.subr.bf16.mxu0 %v3754
    %5129 = vmatpush1.bf16.msra.mxu0 %v3753
    %5130 = vmatprep.subr.bf16.mxu0 %v3786
    %5131 = vmatpush1.bf16.msra.mxu0 %v3785
    %5132 = vmatprep.subr.bf16.mxu0 %v3818
    %5133 = vmatpush1.bf16.msra.mxu0 %v3817
    %5134 = vmatprep.subr.bf16.mxu0 %v3850
    %5135 = vmatpush1.bf16.msra.mxu0 %v3849
    %5136 = vmatprep.subr.bf16.mxu0 %v3882
    %5137 = vmatpush1.bf16.msra.mxu0 %v3881
    %5138 = vmatprep.subr.bf16.mxu0 %v3914
    %5139 = vmatpush1.bf16.msra.mxu0 %v3913
    %5140 = vmatprep.subr.bf16.mxu0 %v3946
    %5141 = vmatpush1.bf16.msra.mxu0 %v3945
    %5142 = vmatprep.subr.bf16.mxu0 %v3978
    %5143 = vmatpush1.bf16.msra.mxu0 %v3977
    %5144 = vmatprep.subr.bf16.mxu0 %v4010
    %5145 = vmatpush1.bf16.msra.mxu0 %v4009
    %5146 = vmatprep.subr.bf16.mxu0 %v4042
    %5147 = vmatpush1.bf16.msra.mxu0 %v4041
    %5148 = vmatprep.subr.bf16.mxu0 %v4074
    %5149 = vmatpush1.bf16.msra.mxu0 %v4073
    %5150 = vmatprep.subr.bf16.mxu0 %v4106
    %5151 = vmatpush1.bf16.msra.mxu0 %v4105
    %5152 = vmatprep.subr.bf16.mxu0 %v4138
    %5153 = vmatpush1.bf16.msra.mxu0 %v4137
    %5154 = vmatprep.subr.bf16.mxu0 %v4170
    %5155 = vmatpush1.bf16.msra.mxu0 %v4169
    %5156 = vmatprep.subr.bf16.mxu0 %v4202
    %5157 = vmatpush1.bf16.msra.mxu0 %v4201
    %5158 = vmatprep.subr.bf16.mxu0 %v4234
    %5159 = vmatpush1.bf16.msra.mxu0 %v4233
    %5160 = vmatprep.mubr.bf16.mxu0 %v620
    %5161 = vmatmul.mubr.bf16.gmra.mrb[0].mxu0 %v619
    %v5162 = vpop.f32.mrb[0].mxu0
    %v5163 = vadd.f32 %v2114, %v5162
    %v5164 = vpop.f32.mrb[0].mxu0
    %v5165 = vadd.f32 %v2118, %v5164
    %v5166 = vpop.f32.mrb[0].mxu0
    %v5167 = vpop.f32.mrb[0].mxu0
    %5168 = vdwg.mxu0
    %5169 = vmatprep.subr.bf16.mxu0 %v3756
    %5170 = vmatpush1.bf16.msra.mxu0 %v3755
    %5171 = vmatprep.subr.bf16.mxu0 %v3788
    %5172 = vmatpush1.bf16.msra.mxu0 %v3787
    %5173 = vmatprep.subr.bf16.mxu0 %v3820
    %5174 = vmatpush1.bf16.msra.mxu0 %v3819
    %5175 = vmatprep.subr.bf16.mxu0 %v3852
    %5176 = vmatpush1.bf16.msra.mxu0 %v3851
    %5177 = vmatprep.subr.bf16.mxu0 %v3884
    %5178 = vmatpush1.bf16.msra.mxu0 %v3883
    %5179 = vmatprep.subr.bf16.mxu0 %v3916
    %5180 = vmatpush1.bf16.msra.mxu0 %v3915
    %5181 = vmatprep.subr.bf16.mxu0 %v3948
    %5182 = vmatpush1.bf16.msra.mxu0 %v3947
    %5183 = vmatprep.subr.bf16.mxu0 %v3980
    %5184 = vmatpush1.bf16.msra.mxu0 %v3979
    %5185 = vmatprep.subr.bf16.mxu0 %v4012
    %5186 = vmatpush1.bf16.msra.mxu0 %v4011
    %5187 = vmatprep.subr.bf16.mxu0 %v4044
    %5188 = vmatpush1.bf16.msra.mxu0 %v4043
    %5189 = vmatprep.subr.bf16.mxu0 %v4076
    %5190 = vmatpush1.bf16.msra.mxu0 %v4075
    %5191 = vmatprep.subr.bf16.mxu0 %v4108
    %5192 = vmatpush1.bf16.msra.mxu0 %v4107
    %5193 = vmatprep.subr.bf16.mxu0 %v4140
    %5194 = vmatpush1.bf16.msra.mxu0 %v4139
    %5195 = vmatprep.subr.bf16.mxu0 %v4172
    %5196 = vmatpush1.bf16.msra.mxu0 %v4171
    %5197 = vmatprep.subr.bf16.mxu0 %v4204
    %5198 = vmatpush1.bf16.msra.mxu0 %v4203
    %5199 = vmatprep.subr.bf16.mxu0 %v4236
    %5200 = vmatpush1.bf16.msra.mxu0 %v4235
    %5201 = vmatprep.mubr.bf16.mxu0 %v620
    %5202 = vmatmul.mubr.bf16.gmra.mrb[0].mxu0 %v619
    %v5203 = vpop.f32.mrb[0].mxu0
    %v5204 = vadd.f32 %v2122, %v5203
    %v5205 = vpop.f32.mrb[0].mxu0
    %v5206 = vadd.f32 %v2126, %v5205
    %v5207 = vpop.f32.mrb[0].mxu0
    %v5208 = vpop.f32.mrb[0].mxu0
    %5209 = vdwg.mxu0
    %5210 = vmatprep.subr.bf16.mxu0 %v3758
    %5211 = vmatpush1.bf16.msra.mxu0 %v3757
    %5212 = vmatprep.subr.bf16.mxu0 %v3790
    %5213 = vmatpush1.bf16.msra.mxu0 %v3789
    %5214 = vmatprep.subr.bf16.mxu0 %v3822
    %5215 = vmatpush1.bf16.msra.mxu0 %v3821
    %5216 = vmatprep.subr.bf16.mxu0 %v3854
    %5217 = vmatpush1.bf16.msra.mxu0 %v3853
    %5218 = vmatprep.subr.bf16.mxu0 %v3886
    %5219 = vmatpush1.bf16.msra.mxu0 %v3885
    %5220 = vmatprep.subr.bf16.mxu0 %v3918
    %5221 = vmatpush1.bf16.msra.mxu0 %v3917
    %5222 = vmatprep.subr.bf16.mxu0 %v3950
    %5223 = vmatpush1.bf16.msra.mxu0 %v3949
    %5224 = vmatprep.subr.bf16.mxu0 %v3982
    %5225 = vmatpush1.bf16.msra.mxu0 %v3981
    %5226 = vmatprep.subr.bf16.mxu0 %v4014
    %5227 = vmatpush1.bf16.msra.mxu0 %v4013
    %5228 = vmatprep.subr.bf16.mxu0 %v4046
    %5229 = vmatpush1.bf16.msra.mxu0 %v4045
    %5230 = vmatprep.subr.bf16.mxu0 %v4078
    %5231 = vmatpush1.bf16.msra.mxu0 %v4077
    %5232 = vmatprep.subr.bf16.mxu0 %v4110
    %5233 = vmatpush1.bf16.msra.mxu0 %v4109
    %5234 = vmatprep.subr.bf16.mxu0 %v4142
    %5235 = vmatpush1.bf16.msra.mxu0 %v4141
    %5236 = vmatprep.subr.bf16.mxu0 %v4174
    %5237 = vmatpush1.bf16.msra.mxu0 %v4173
    %5238 = vmatprep.subr.bf16.mxu0 %v4206
    %5239 = vmatpush1.bf16.msra.mxu0 %v4205
    %5240 = vmatprep.subr.bf16.mxu0 %v4238
    %5241 = vmatpush1.bf16.msra.mxu0 %v4237
    %5242 = vmatprep.mubr.bf16.mxu0 %v620
    %5243 = vmatmul.mubr.bf16.gmra.mrb[0].mxu0 %v619
    %v5244 = vpop.f32.mrb[0].mxu0
    %v5245 = vadd.f32 %v2130, %v5244
    %v5246 = vpop.f32.mrb[0].mxu0
    %v5247 = vadd.f32 %v2134, %v5246
    %v5248 = vpop.f32.mrb[0].mxu0
    %v5249 = vpop.f32.mrb[0].mxu0
    %5250 = vdwg.mxu0
    %5251 = vmatprep.subr.bf16.mxu0 %v3760
    %5252 = vmatpush1.bf16.msra.mxu0 %v3759
    %5253 = vmatprep.subr.bf16.mxu0 %v3792
    %5254 = vmatpush1.bf16.msra.mxu0 %v3791
    %5255 = vmatprep.subr.bf16.mxu0 %v3824
    %5256 = vmatpush1.bf16.msra.mxu0 %v3823
    %5257 = vmatprep.subr.bf16.mxu0 %v3856
    %5258 = vmatpush1.bf16.msra.mxu0 %v3855
    %5259 = vmatprep.subr.bf16.mxu0 %v3888
    %5260 = vmatpush1.bf16.msra.mxu0 %v3887
    %5261 = vmatprep.subr.bf16.mxu0 %v3920
    %5262 = vmatpush1.bf16.msra.mxu0 %v3919
    %5263 = vmatprep.subr.bf16.mxu0 %v3952
    %5264 = vmatpush1.bf16.msra.mxu0 %v3951
    %5265 = vmatprep.subr.bf16.mxu0 %v3984
    %5266 = vmatpush1.bf16.msra.mxu0 %v3983
    %5267 = vmatprep.subr.bf16.mxu0 %v4016
    %5268 = vmatpush1.bf16.msra.mxu0 %v4015
    %5269 = vmatprep.subr.bf16.mxu0 %v4048
    %5270 = vmatpush1.bf16.msra.mxu0 %v4047
    %5271 = vmatprep.subr.bf16.mxu0 %v4080
    %5272 = vmatpush1.bf16.msra.mxu0 %v4079
    %5273 = vmatprep.subr.bf16.mxu0 %v4112
    %5274 = vmatpush1.bf16.msra.mxu0 %v4111
    %5275 = vmatprep.subr.bf16.mxu0 %v4144
    %5276 = vmatpush1.bf16.msra.mxu0 %v4143
    %5277 = vmatprep.subr.bf16.mxu0 %v4176
    %5278 = vmatpush1.bf16.msra.mxu0 %v4175
    %5279 = vmatprep.subr.bf16.mxu0 %v4208
    %5280 = vmatpush1.bf16.msra.mxu0 %v4207
    %5281 = vmatprep.subr.bf16.mxu0 %v4240
    %5282 = vmatpush1.bf16.msra.mxu0 %v4239
    %5283 = vmatprep.mubr.bf16.mxu0 %v620
    %5284 = vmatmul.mubr.bf16.gmra.mrb[0].mxu0 %v619
    %v5285 = vpop.f32.mrb[0].mxu0
    %v5286 = vadd.f32 %v2138, %v5285
    %v5287 = vpop.f32.mrb[0].mxu0
    %v5288 = vadd.f32 %v2142, %v5287
    %v5289 = vpop.f32.mrb[0].mxu0
    %v5290 = vpop.f32.mrb[0].mxu0
    %5291 = vdwg.mxu0
    %5292 = vmatprep.subr.bf16.mxu0 %v3762
    %5293 = vmatpush1.bf16.msra.mxu0 %v3761
    %5294 = vmatprep.subr.bf16.mxu0 %v3794
    %5295 = vmatpush1.bf16.msra.mxu0 %v3793
    %5296 = vmatprep.subr.bf16.mxu0 %v3826
    %5297 = vmatpush1.bf16.msra.mxu0 %v3825
    %5298 = vmatprep.subr.bf16.mxu0 %v3858
    %5299 = vmatpush1.bf16.msra.mxu0 %v3857
    %5300 = vmatprep.subr.bf16.mxu0 %v3890
    %5301 = vmatpush1.bf16.msra.mxu0 %v3889
    %5302 = vmatprep.subr.bf16.mxu0 %v3922
    %5303 = vmatpush1.bf16.msra.mxu0 %v3921
    %5304 = vmatprep.subr.bf16.mxu0 %v3954
    %5305 = vmatpush1.bf16.msra.mxu0 %v3953
    %5306 = vmatprep.subr.bf16.mxu0 %v3986
    %5307 = vmatpush1.bf16.msra.mxu0 %v3985
    %5308 = vmatprep.subr.bf16.mxu0 %v4018
    %5309 = vmatpush1.bf16.msra.mxu0 %v4017
    %5310 = vmatprep.subr.bf16.mxu0 %v4050
    %5311 = vmatpush1.bf16.msra.mxu0 %v4049
    %5312 = vmatprep.subr.bf16.mxu0 %v4082
    %5313 = vmatpush1.bf16.msra.mxu0 %v4081
    %5314 = vmatprep.subr.bf16.mxu0 %v4114
    %5315 = vmatpush1.bf16.msra.mxu0 %v4113
    %5316 = vmatprep.subr.bf16.mxu0 %v4146
    %5317 = vmatpush1.bf16.msra.mxu0 %v4145
    %5318 = vmatprep.subr.bf16.mxu0 %v4178
    %5319 = vmatpush1.bf16.msra.mxu0 %v4177
    %5320 = vmatprep.subr.bf16.mxu0 %v4210
    %5321 = vmatpush1.bf16.msra.mxu0 %v4209
    %5322 = vmatprep.subr.bf16.mxu0 %v4242
    %5323 = vmatpush1.bf16.msra.mxu0 %v4241
    %5324 = vmatprep.mubr.bf16.mxu0 %v620
    %5325 = vmatmul.mubr.bf16.gmra.mrb[0].mxu0 %v619
    %v5326 = vpop.f32.mrb[0].mxu0
    %v5327 = vadd.f32 %v2146, %v5326
    %v5328 = vpop.f32.mrb[0].mxu0
    %v5329 = vadd.f32 %v2150, %v5328
    %v5330 = vpop.f32.mrb[0].mxu0
    %v5331 = vpop.f32.mrb[0].mxu0
    %5332 = vdwg.mxu0
    %5333 = vmatprep.subr.bf16.mxu0 %v3764
    %5334 = vmatpush1.bf16.msra.mxu0 %v3763
    %5335 = vmatprep.subr.bf16.mxu0 %v3796
    %5336 = vmatpush1.bf16.msra.mxu0 %v3795
    %5337 = vmatprep.subr.bf16.mxu0 %v3828
    %5338 = vmatpush1.bf16.msra.mxu0 %v3827
    %5339 = vmatprep.subr.bf16.mxu0 %v3860
    %5340 = vmatpush1.bf16.msra.mxu0 %v3859
    %5341 = vmatprep.subr.bf16.mxu0 %v3892
    %5342 = vmatpush1.bf16.msra.mxu0 %v3891
    %5343 = vmatprep.subr.bf16.mxu0 %v3924
    %5344 = vmatpush1.bf16.msra.mxu0 %v3923
    %5345 = vmatprep.subr.bf16.mxu0 %v3956
    %5346 = vmatpush1.bf16.msra.mxu0 %v3955
    %5347 = vmatprep.subr.bf16.mxu0 %v3988
    %5348 = vmatpush1.bf16.msra.mxu0 %v3987
    %5349 = vmatprep.subr.bf16.mxu0 %v4020
    %5350 = vmatpush1.bf16.msra.mxu0 %v4019
    %5351 = vmatprep.subr.bf16.mxu0 %v4052
    %5352 = vmatpush1.bf16.msra.mxu0 %v4051
    %5353 = vmatprep.subr.bf16.mxu0 %v4084
    %5354 = vmatpush1.bf16.msra.mxu0 %v4083
    %5355 = vmatprep.subr.bf16.mxu0 %v4116
    %5356 = vmatpush1.bf16.msra.mxu0 %v4115
    %5357 = vmatprep.subr.bf16.mxu0 %v4148
    %5358 = vmatpush1.bf16.msra.mxu0 %v4147
    %5359 = vmatprep.subr.bf16.mxu0 %v4180
    %5360 = vmatpush1.bf16.msra.mxu0 %v4179
    %5361 = vmatprep.subr.bf16.mxu0 %v4212
    %5362 = vmatpush1.bf16.msra.mxu0 %v4211
    %5363 = vmatprep.subr.bf16.mxu0 %v4244
    %5364 = vmatpush1.bf16.msra.mxu0 %v4243
    %5365 = vmatprep.mubr.bf16.mxu0 %v620
    %5366 = vmatmul.mubr.bf16.gmra.mrb[0].mxu0 %v619
    %v5367 = vpop.f32.mrb[0].mxu0
    %v5368 = vadd.f32 %v2154, %v5367
    %v5369 = vpop.f32.mrb[0].mxu0
    %v5370 = vadd.f32 %v2158, %v5369
    %v5371 = vpop.f32.mrb[0].mxu0
    %v5372 = vpop.f32.mrb[0].mxu0
    %5373 = vdwg.mxu0
    %5374 = vmatprep.subr.bf16.mxu0 %v3766
    %5375 = vmatpush1.bf16.msra.mxu0 %v3765
    %5376 = vmatprep.subr.bf16.mxu0 %v3798
    %5377 = vmatpush1.bf16.msra.mxu0 %v3797
    %5378 = vmatprep.subr.bf16.mxu0 %v3830
    %5379 = vmatpush1.bf16.msra.mxu0 %v3829
    %5380 = vmatprep.subr.bf16.mxu0 %v3862
    %5381 = vmatpush1.bf16.msra.mxu0 %v3861
    %5382 = vmatprep.subr.bf16.mxu0 %v3894
    %5383 = vmatpush1.bf16.msra.mxu0 %v3893
    %5384 = vmatprep.subr.bf16.mxu0 %v3926
    %5385 = vmatpush1.bf16.msra.mxu0 %v3925
    %5386 = vmatprep.subr.bf16.mxu0 %v3958
    %5387 = vmatpush1.bf16.msra.mxu0 %v3957
    %5388 = vmatprep.subr.bf16.mxu0 %v3990
    %5389 = vmatpush1.bf16.msra.mxu0 %v3989
    %5390 = vmatprep.subr.bf16.mxu0 %v4022
    %5391 = vmatpush1.bf16.msra.mxu0 %v4021
    %5392 = vmatprep.subr.bf16.mxu0 %v4054
    %5393 = vmatpush1.bf16.msra.mxu0 %v4053
    %5394 = vmatprep.subr.bf16.mxu0 %v4086
    %5395 = vmatpush1.bf16.msra.mxu0 %v4085
    %5396 = vmatprep.subr.bf16.mxu0 %v4118
    %5397 = vmatpush1.bf16.msra.mxu0 %v4117
    %5398 = vmatprep.subr.bf16.mxu0 %v4150
    %5399 = vmatpush1.bf16.msra.mxu0 %v4149
    %5400 = vmatprep.subr.bf16.mxu0 %v4182
    %5401 = vmatpush1.bf16.msra.mxu0 %v4181
    %5402 = vmatprep.subr.bf16.mxu0 %v4214
    %5403 = vmatpush1.bf16.msra.mxu0 %v4213
    %5404 = vmatprep.subr.bf16.mxu0 %v4246
    %5405 = vmatpush1.bf16.msra.mxu0 %v4245
    %5406 = vmatprep.mubr.bf16.mxu0 %v620
    %5407 = vmatmul.mubr.bf16.gmra.mrb[0].mxu0 %v619
    %v5408 = vpop.f32.mrb[0].mxu0
    %v5409 = vadd.f32 %v2162, %v5408
    %v5410 = vpop.f32.mrb[0].mxu0
    %v5411 = vadd.f32 %v2166, %v5410
    %v5412 = vpop.f32.mrb[0].mxu0
    %v5413 = vpop.f32.mrb[0].mxu0
    %5414 = vdwg.mxu0
    %5415 = vst [vmem:[#allocation18] sm:$0xff] %v4794
    %5416 = vst [vmem:[#allocation18 + $0x8] sm:$0xff] %v4796
    %5417 = vst [vmem:[#allocation18 + $0x10] sm:$0xff] %v4835
    %5418 = vst [vmem:[#allocation18 + $0x18] sm:$0xff] %v4837
    %5419 = vst [vmem:[#allocation18 + $0x20] sm:$0xff] %v4876
    %5420 = vst [vmem:[#allocation18 + $0x28] sm:$0xff] %v4878
    %5421 = vst [vmem:[#allocation18 + $0x30] sm:$0xff] %v4917
    %5422 = vst [vmem:[#allocation18 + $0x38] sm:$0xff] %v4919
    %5423 = vst [vmem:[#allocation18 + $0x40] sm:$0xff] %v4958
    %5424 = vst [vmem:[#allocation18 + $0x48] sm:$0xff] %v4960
    %5425 = vst [vmem:[#allocation18 + $0x50] sm:$0xff] %v4999
    %5426 = vst [vmem:[#allocation18 + $0x58] sm:$0xff] %v5001
    %5427 = vst [vmem:[#allocation18 + $0x60] sm:$0xff] %v5040
    %5428 = vst [vmem:[#allocation18 + $0x68] sm:$0xff] %v5042
    %5429 = vst [vmem:[#allocation18 + $0x70] sm:$0xff] %v5081
    %5430 = vst [vmem:[#allocation18 + $0x78] sm:$0xff] %v5083
    %5431 = vst [vmem:[#allocation18 + $0x80] sm:$0xff] %v5122
    %5432 = vst [vmem:[#allocation18 + $0x88] sm:$0xff] %v5124
    %5433 = vst [vmem:[#allocation18 + $0x90] sm:$0xff] %v5163
    %5434 = vst [vmem:[#allocation18 + $0x98] sm:$0xff] %v5165
    %5435 = vst [vmem:[#allocation18 + $0xa0] sm:$0xff] %v5204
    %5436 = vst [vmem:[#allocation18 + $0xa8] sm:$0xff] %v5206
    %5437 = vst [vmem:[#allocation18 + $0xb0] sm:$0xff] %v5245
    %5438 = vst [vmem:[#allocation18 + $0xb8] sm:$0xff] %v5247
    %5439 = vst [vmem:[#allocation18 + $0xc0] sm:$0xff] %v5286
    %5440 = vst [vmem:[#allocation18 + $0xc8] sm:$0xff] %v5288
    %5441 = vst [vmem:[#allocation18 + $0xd0] sm:$0xff] %v5327
    %5442 = vst [vmem:[#allocation18 + $0xd8] sm:$0xff] %v5329
    %5443 = vst [vmem:[#allocation18 + $0xe0] sm:$0xff] %v5368
    %5444 = vst [vmem:[#allocation18 + $0xe8] sm:$0xff] %v5370
    %5445 = vst [vmem:[#allocation18 + $0xf0] sm:$0xff] %v5409
    %5446 = vst [vmem:[#allocation18 + $0xf8] sm:$0xff] %v5411
    // Predicated region
    $region74: #{tpu_custom_call.1} parent=1 // pred_check
      _
    $region75: #{tpu_custom_call.1} parent=1 // pred_check_branch
      %5448 = sbr.rel (0) target = $region77
    $region76: #{tpu_custom_call.1} parent=1 // pred_region
      %s5450 = ssub.s32 1536, 1536
      %5451 = vsyncadd [#allocation4], %s5450
      %s5453 = sshll.u32 [#allocation17], 4
      %s5454 = int_to_ptr.vmem [resolvable:$true] %s5453
      %5456 = dma.vmem_to_hbm [thread:$0]  %s5454, 1536, %s9, [#allocation4]
    $region77: #{tpu_custom_call.1} parent=1 // pred_fallthru
      _
    // Predicated region
    $region78: #{tpu_custom_call.1} parent=1 // pred_check
      _
    $region79: #{tpu_custom_call.1} parent=1 // pred_check_branch
      %5458 = sbr.rel (0) target = $region81
    $region80: #{tpu_custom_call.1} parent=1 // pred_region
      %s5460 = ssub.s32 4096, 4096
      %5461 = vsyncadd [#allocation19], %s5460
      %s5463 = sshll.u32 [#allocation18], 4
      %s5464 = int_to_ptr.vmem [resolvable:$true] %s5463
      %5466 = dma.vmem_to_hbm [thread:$0]  %s5464, 4096, %s10, [#allocation19]
    $region81: #{tpu_custom_call.1} parent=1 // pred_fallthru
      _
    // Predicated region
    $region82: #{tpu_custom_call.1} parent=1 // pred_check
      _
    $region83: #{tpu_custom_call.1} parent=1 // pred_check_branch
      %5468 = sbr.rel (0) target = $region85
    $region84: #{tpu_custom_call.1} parent=1 // pred_region
      %5469 = dma.done [#allocation4], 1536
    $region85: #{tpu_custom_call.1} parent=1 // pred_fallthru
      _
    // Predicated region
    $region86: #{tpu_custom_call.1} parent=1 // pred_check
      _
    $region87: #{tpu_custom_call.1} parent=1 // pred_check_branch
      %5471 = sbr.rel (0) target = $region89
    $region88: #{tpu_custom_call.1} parent=1 // pred_region
      %5472 = dma.done [#allocation19], 4096
    $region89: #{tpu_custom_call.1} parent=1 // pred_fallthru
      _
    %5473 = vsyncpa [#allocation3], 1
    %5474 = vsyncpa [#allocation6], 1
    %5475 = vsyncpa [#allocation9], 1
    %5476 = vsyncpa [#allocation12], 1
    %5477 = vsyncpa [#allocation15], 1
    %5478 = vsyncpa [#allocation4], 1
    %5479 = vsyncpa [#allocation19], 1

</llo_original>
